<compile_context>
chip_gen: v7x
topology: tpu7x:2x2x1
jax: 0.10.0
libtpu: 0.0.40
codegen_flags: <defaults>
</compile_context>

<pallas_src>
import functools

import jax
import jax.numpy as jnp
from jax import lax
from jax.experimental import pallas as pl
from jax.experimental.pallas import tpu as pltpu


# ----------------------------- config ----------------------------------------
class Config:
    vocab_size = 256
    hidden_size = 128
    num_hidden_layers = 2
    num_attention_heads = 4
    num_key_value_heads = 2
    head_dim = 32
    intermediate_size = 256
    max_position_embeddings = 16
    rms_norm_eps = 1e-6
    rope_theta = 10000.0
    quant = False


# ----------------------------- helpers ----------------------------------------
def _row_tile(m):
    """Largest row tile giving >=2 grid blocks (keep both v7x TensorCores busy)
    while staying a multiple of 16 (native bf16 sublane tile)."""
    for tm in (512, 256, 128, 64, 32, 16):
        if m % tm == 0 and m // tm >= 2:
            return tm
    return m


def _inter_tile(inter):
    """Intermediate-dim reduction tile: prefer 512/256 (v6e/v7x MXU is 256
    deep), fall back to 128; require >=2 blocks so the accumulator path runs."""
    for ti in (512, 256, 128):
        if inter % ti == 0 and inter // ti >= 2:
            return ti
    return inter


def _vmem_limit(blocks):
    """Scoped-VMEM request computed from the actual tile footprint
    (block bytes x buffer count, +2 MiB headroom, capped at 100 MiB)."""
    total = 0
    for shape, dtype, bufs in blocks:
        n = 1
        for s in shape:
            n *= int(s)
        total += n * jnp.dtype(dtype).itemsize * bufs
    return int(min(total + 2 * 1024 * 1024, 100 * 1024 * 1024))


def _invariant(block_shape, index_map):
    """Single-buffered BlockSpec for operands whose index_map is constant over
    the whole grid (resident weights / gamma / mask)."""
    return pl.BlockSpec(block_shape, index_map, pipeline_mode=pl.Buffered(1))


def _gelu_tanh_f32(x):
    # tanh GELU: one EUP transcendental instead of a 5-term VALU erf
    # polynomial (v5e has no f32 FMA). ~1e-3 abs err vs exact-erf GELU.
    c = 0.7978845608028654  # sqrt(2/pi)
    return 0.5 * x * (1.0 + jnp.tanh(c * (x + 0.044715 * x * x * x)))


# ----------------------------- Pallas kernels ---------------------------------
def _norm_qkv_kernel(x_ref, g_ref, w_ref, o_ref, *, eps):
    # fused RMSNorm (f32 math) + qkv projection; weight is [K, N] (K-major).
    x = x_ref[...].astype(jnp.float32)
    var = jnp.mean(x * x, axis=-1, keepdims=True)
    xn = (x * lax.rsqrt(var + eps) * (1.0 + g_ref[...])).astype(jnp.bfloat16)
    o_ref[...] = lax.dot_general(
        xn, w_ref[...],
        dimension_numbers=(((1,), (0,)), ((), ())),
        preferred_element_type=jnp.float32).astype(o_ref.dtype)


def norm_qkv_pallas(x, gamma, w_t, eps):
    """x: [M, K] bf16, w_t: [K, N] bf16 (pre-transposed) -> [M, N] f32."""
    M, K = x.shape
    N = w_t.shape[1]
    tm = _row_tile(M)
    vmem = _vmem_limit([
        ((tm, K), x.dtype, 2), ((1, K), gamma.dtype, 1),
        ((K, N), w_t.dtype, 1), ((tm, N), jnp.float32, 2),
    ])
    return pl.pallas_call(
        functools.partial(_norm_qkv_kernel, eps=eps),
        out_shape=jax.ShapeDtypeStruct((M, N), jnp.float32),
        grid=(M // tm,),
        in_specs=[
            pl.BlockSpec((tm, K), lambda i: (i, 0)),
            _invariant((1, K), lambda i: (0, 0)),
            _invariant((K, N), lambda i: (0, 0)),
        ],
        out_specs=pl.BlockSpec((tm, N), lambda i: (i, 0)),
        compiler_params=pltpu.CompilerParams(
            dimension_semantics=("parallel",), vmem_limit_bytes=vmem),
    )(x, gamma.reshape(1, K), w_t)


def _mlp_kernel(x_ref, g_ref, gw_ref, uw_ref, dw_ref, o_ref, acc_ref, *, eps):
    # fused RMSNorm + gate/up chunk matmul + tanh GELU + down-proj accumulate
    # + residual add (x is also the residual). Intermediate dim is the
    # reduction grid axis (axis 1).
    j = pl.program_id(1)

    @pl.when(j == 0)
    def _init():
        acc_ref[...] = jnp.zeros_like(acc_ref)

    x = x_ref[...].astype(jnp.float32)
    var = jnp.mean(x * x, axis=-1, keepdims=True)
    xn = (x * lax.rsqrt(var + eps) * (1.0 + g_ref[...])).astype(jnp.bfloat16)
    gate = lax.dot_general(
        xn, gw_ref[...], dimension_numbers=(((1,), (0,)), ((), ())),
        preferred_element_type=jnp.float32)                     # [tm, ti] f32
    up = lax.dot_general(
        xn, uw_ref[...], dimension_numbers=(((1,), (0,)), ((), ())),
        preferred_element_type=jnp.float32)
    fuse = (_gelu_tanh_f32(gate) * up).astype(jnp.bfloat16)
    acc_ref[...] += lax.dot_general(
        fuse, dw_ref[...], dimension_numbers=(((1,), (0,)), ((), ())),
        preferred_element_type=jnp.float32)                     # [tm, hidden]

    @pl.when(j == pl.num_programs(1) - 1)
    def _finalize():
        o_ref[...] = (acc_ref[...] + x).astype(o_ref.dtype)     # fused residual


def mlp_pallas(x, gamma, gate_w_t, up_w_t, down_w_t, eps):
    """x: [M, hidden] bf16 (residual fused from x); weights are [K, N] bf16."""
    M, K = x.shape
    inter = gate_w_t.shape[1]
    hidden = down_w_t.shape[1]
    assert hidden == K
    tm = _row_tile(M)
    ti = _inter_tile(inter)
    vmem = _vmem_limit([
        ((tm, K), x.dtype, 2), ((1, K), gamma.dtype, 1),
        ((K, ti), gate_w_t.dtype, 2), ((K, ti), up_w_t.dtype, 2),
        ((ti, hidden), down_w_t.dtype, 2),
        ((tm, hidden), x.dtype, 2),              # output
        ((tm, hidden), jnp.float32, 1),          # accumulator scratch
    ])
    return pl.pallas_call(
        functools.partial(_mlp_kernel, eps=eps),
        out_shape=jax.ShapeDtypeStruct((M, hidden), x.dtype),
        grid=(M // tm, inter // ti),
        in_specs=[
            pl.BlockSpec((tm, K), lambda i, j: (i, 0)),
            _invariant((1, K), lambda i, j: (0, 0)),
            pl.BlockSpec((K, ti), lambda i, j: (0, j)),
            pl.BlockSpec((K, ti), lambda i, j: (0, j)),
            pl.BlockSpec((ti, hidden), lambda i, j: (j, 0)),
        ],
        out_specs=pl.BlockSpec((tm, hidden), lambda i, j: (i, 0)),
        scratch_shapes=[pltpu.VMEM((tm, hidden), jnp.float32)],
        compiler_params=pltpu.CompilerParams(
            dimension_semantics=("parallel", "arbitrary"),
            vmem_limit_bytes=vmem),
    )(x, gamma.reshape(1, K), gate_w_t, up_w_t, down_w_t)


def _attn_oproj_kernel(q_ref, k_ref, v_ref, mask_ref, ow_ref, resid_ref, o_ref,
                       acc_ref, *, scaling, rep):
    # q_ref: [rep, T, Dh] f32     k_ref/v_ref: [S, Dh] bf16 (one KV head)
    # mask_ref: [T, S] f32        ow_ref: [rep*Dh, hidden] bf16 (this group)
    # resid_ref / o_ref: [T, hidden] bf16     acc_ref: [T, hidden] f32
    g = pl.program_id(1)

    @pl.when(g == 0)
    def _init():
        acc_ref[...] = jnp.zeros_like(acc_ref)

    dh = q_ref.shape[2]
    k = k_ref[...]
    v = v_ref[...]
    mask = mask_ref[...]
    acc = acc_ref[...]
    for r in range(rep):                                  # static unroll
        q = (q_ref[r] * scaling).astype(jnp.bfloat16)     # scaling folded in
        s = lax.dot_general(
            q, k, dimension_numbers=(((1,), (1,)), ((), ())),
            preferred_element_type=jnp.float32) + mask    # [T, S] f32
        m = jnp.max(s, axis=-1, keepdims=True)
        e = jnp.exp(s - m)
        denom = jnp.sum(e, axis=-1, keepdims=True)
        p = (e * pl.reciprocal(denom, approx=True)).astype(jnp.bfloat16)
        ctx = lax.dot_general(
            p, v, dimension_numbers=(((1,), (0,)), ((), ())),
            preferred_element_type=jnp.float32)           # [T, Dh] f32
        # per-head o-projection accumulate (no lane-axis concat of ctx slices)
        acc = acc + lax.dot_general(
            ctx.astype(jnp.bfloat16), ow_ref[r * dh:(r + 1) * dh, :],
            dimension_numbers=(((1,), (0,)), ((), ())),
            preferred_element_type=jnp.float32)
    acc_ref[...] = acc

    @pl.when(g == pl.num_programs(1) - 1)
    def _finalize():
        o_ref[...] = (acc + resid_ref[...].astype(jnp.float32)).astype(o_ref.dtype)


def attention_oproj_pallas(q, k_cache, v_cache, mask_ts, ow_t, resid, scaling):
    """Fused GQA attention + o-projection + residual add.

    q:       [B, KV, rep, T, Dh] f32 (RoPE'd, grouped by shared KV head)
    k/v:     [B, KV, S, Dh] bf16 cache layout (never repeated / transposed)
    mask_ts: [T, S] f32      ow_t: [H*Dh, hidden] bf16      resid: [B,T,hidden]
    """
    B, KV, rep, T, Dh = q.shape
    S = k_cache.shape[2]
    hidden = ow_t.shape[1]
    vmem = _vmem_limit([
        ((rep, T, Dh), q.dtype, 2),
        ((S, Dh), k_cache.dtype, 2), ((S, Dh), v_cache.dtype, 2),
        ((T, S), mask_ts.dtype, 1),
        ((rep * Dh, hidden), ow_t.dtype, 2),
        ((T, hidden), resid.dtype, 2),
        ((T, hidden), resid.dtype, 2),           # output block
        ((T, hidden), jnp.float32, 1),           # accumulator scratch
    ])
    return pl.pallas_call(
        functools.partial(_attn_oproj_kernel, scaling=scaling, rep=rep),
        out_shape=jax.ShapeDtypeStruct((B, T, hidden), resid.dtype),
        grid=(B, KV),
        in_specs=[
            pl.BlockSpec((pl.Squeezed(), pl.Squeezed(), rep, T, Dh),
                         lambda b, g: (b, g, 0, 0, 0)),
            pl.BlockSpec((pl.Squeezed(), pl.Squeezed(), S, Dh),
                         lambda b, g: (b, g, 0, 0)),
            pl.BlockSpec((pl.Squeezed(), pl.Squeezed(), S, Dh),
                         lambda b, g: (b, g, 0, 0)),
            _invariant((T, S), lambda b, g: (0, 0)),
            pl.BlockSpec((rep * Dh, hidden), lambda b, g: (g, 0)),
            pl.BlockSpec((pl.Squeezed(), T, hidden), lambda b, g: (b, 0, 0)),
        ],
        out_specs=pl.BlockSpec((pl.Squeezed(), T, hidden), lambda b, g: (b, 0, 0)),
        scratch_shapes=[pltpu.VMEM((T, hidden), jnp.float32)],
        compiler_params=pltpu.CompilerParams(
            dimension_semantics=("parallel", "arbitrary"),
            vmem_limit_bytes=vmem),
    )(q, k_cache, v_cache, mask_ts, ow_t, resid)


def _rmsnorm_kernel(x_ref, g_ref, o_ref, *, eps):
    x = x_ref[...].astype(jnp.float32)
    var = jnp.mean(x * x, axis=-1, keepdims=True)
    o_ref[...] = (x * lax.rsqrt(var + eps) * (1.0 + g_ref[...])).astype(o_ref.dtype)


def rmsnorm_pallas(x, gamma, eps, out_dtype=jnp.float32):
    M, D = x.shape
    tm = _row_tile(M)
    vmem = _vmem_limit([((tm, D), x.dtype, 2), ((1, D), gamma.dtype, 1),
                        ((tm, D), out_dtype, 2)])
    return pl.pallas_call(
        functools.partial(_rmsnorm_kernel, eps=eps),
        out_shape=jax.ShapeDtypeStruct((M, D), out_dtype),
        grid=(M // tm,),
        in_specs=[pl.BlockSpec((tm, D), lambda i: (i, 0)),
                  _invariant((1, D), lambda i: (0, 0))],
        out_specs=pl.BlockSpec((tm, D), lambda i: (i, 0)),
        compiler_params=pltpu.CompilerParams(
            dimension_semantics=("parallel",), vmem_limit_bytes=vmem),
    )(x, gamma.reshape(1, D))


# ----------------------------- pure-JAX reference ops -------------------------
def rmsnorm_ref(x, w, eps):
    xf = x.astype(jnp.float32)
    xn = xf * lax.rsqrt(jnp.mean(xf * xf, axis=-1, keepdims=True) + eps)
    return (xn * (1.0 + w)).astype(x.dtype)


def attention_ref(q, k, v, mask, scaling):
    scores = jnp.einsum('bhtd,bhsd->bhts', q, k) * scaling + mask
    p = jax.nn.softmax(scores.astype(jnp.float32), axis=-1).astype(q.dtype)
    return jnp.einsum('bhts,bhsd->bhtd', p, v)


# ----------------------------- glue -------------------------------------------
def precompute_freqs(dim, end, theta):
    inv = 1.0 / (theta ** (jnp.arange(0, dim, 2)[: dim // 2].astype(jnp.float32) / dim))
    t = jnp.arange(end, dtype=jnp.float32)
    freqs = t[:, None] * inv[None, :]
    return jnp.cos(freqs), jnp.sin(freqs)


def apply_rotary_emb(x, cos, sin):
    # x: [B, T, H, D]; matches torch view_as_complex-based rotary embedding:
    # out[..., :D/2] = x1*cos - x2*sin ; out[..., D/2:] = x1*sin + x2*cos
    D = x.shape[-1]
    x1 = x[..., : D // 2].astype(jnp.float32)
    x2 = x[..., D // 2:].astype(jnp.float32)
    c = cos[None, :, None, :]
    s = sin[None, :, None, :]
    out = jnp.concatenate([x1 * c - x2 * s, x1 * s + x2 * c], axis=-1)
    return out.astype(x.dtype)


def init_params(cfg, key):
    k_iter = iter(jax.random.split(key, 64))

    def nrm(shape, scl=0.05):
        return scl * jax.random.normal(next(k_iter), shape, dtype=jnp.float32)

    qkv_out = (cfg.num_attention_heads + 2 * cfg.num_key_value_heads) * cfg.head_dim
    params = {
        'embed': nrm((cfg.vocab_size, cfg.hidden_size), 0.02),
        'final_ln': nrm((cfg.hidden_size,), 0.1),
        'layers': [],
    }
    for _ in range(cfg.num_hidden_layers):
        params['layers'].append({
            'input_ln': nrm((cfg.hidden_size,), 0.1),
            'post_ln': nrm((cfg.hidden_size,), 0.1),
            'qkv_w': nrm((qkv_out, cfg.hidden_size)),
            'o_w': nrm((cfg.hidden_size, cfg.num_attention_heads * cfg.head_dim)),
            'gate_w': nrm((cfg.intermediate_size, cfg.hidden_size)),
            'up_w': nrm((cfg.intermediate_size, cfg.hidden_size)),
            'down_w': nrm((cfg.hidden_size, cfg.intermediate_size)),
        })
    cos, sin = precompute_freqs(cfg.head_dim, cfg.max_position_embeddings * 2,
                                cfg.rope_theta)
    params['rope_cos'] = cos
    params['rope_sin'] = sin
    return params


def prepare_pallas_params(params):
    """Pre-transpose all projection weights to [K, N] bf16 on the host so every
    in-kernel dot contracts rhs dim 0 (lane-dense weight DMA, no XLU transpose)."""
    pp = {'layers': []}
    for lp in params['layers']:
        pp['layers'].append({
            'qkv_w_t': lp['qkv_w'].T.astype(jnp.bfloat16),     # [hidden, Nqkv]
            'ow_t': lp['o_w'].T.astype(jnp.bfloat16),          # [H*Dh, hidden]
            'gate_w_t': lp['gate_w'].T.astype(jnp.bfloat16),   # [hidden, I]
            'up_w_t': lp['up_w'].T.astype(jnp.bfloat16),       # [hidden, I]
            'down_w_t': lp['down_w'].T.astype(jnp.bfloat16),   # [I, hidden]
        })
    return pp


def gemma_forward(params, pparams, input_token_ids, input_positions, kv_caches,
                  mask, cfg, use_pallas=True):
    B, T = input_token_ids.shape
    H, KV, Dh = cfg.num_attention_heads, cfg.num_key_value_heads, cfg.head_dim
    rep = H // KV
    hidden = cfg.hidden_size
    eps = cfg.rms_norm_eps
    M = B * T
    scaling = Dh ** -0.5
    q_size, kv_size = H * Dh, KV * Dh

    cos = params['rope_cos'][input_positions]      # freqs_cis.index_select(0, pos)
    sin = params['rope_sin'][input_positions]

    # TODO(synk): embedding gather stays in XLA (data-dependent row gather).
    h = jnp.take(params['embed'], input_token_ids, axis=0) * (hidden ** 0.5)
    if use_pallas:
        h = h.astype(jnp.bfloat16)                 # bf16 residual stream in HBM

    mask_ts = mask[0, 0]                           # [T, S]

    new_caches = []
    for i in range(cfg.num_hidden_layers):
        lp = params['layers'][i]
        k_cache, v_cache = kv_caches[i]

        if use_pallas:
            plp = pparams['layers'][i]
            # --- fused RMSNorm + qkv projection ------------------------------
            qkv = norm_qkv_pallas(h.reshape(M, hidden), lp['input_ln'],
                                  plp['qkv_w_t'], eps).reshape(B, T, -1)
            xq = qkv[..., :q_size].reshape(B, T, H, Dh)
            xk = qkv[..., q_size:q_size + kv_size].reshape(B, T, KV, Dh)
            xv = qkv[..., q_size + kv_size:].reshape(B, T, KV, Dh)
            # TODO(synk): RoPE rotation + data-dependent KV-cache scatter stay
            # in XLA; only the new T-slice is transposed/cast (not the cache).
            xq = apply_rotary_emb(xq, cos, sin)
            xk = apply_rotary_emb(xk, cos, sin)
            k_cache = k_cache.at[:, :, input_positions, :].set(
                jnp.transpose(xk, (0, 2, 1, 3)).astype(k_cache.dtype))
            v_cache = v_cache.at[:, :, input_positions, :].set(
                jnp.transpose(xv, (0, 2, 1, 3)).astype(v_cache.dtype))
            new_caches.append((k_cache, v_cache))

            # --- fused GQA attention + o-proj + residual ---------------------
            qg = jnp.transpose(xq, (0, 2, 1, 3)).reshape(B, KV, rep, T, Dh)
            h = attention_oproj_pallas(qg, k_cache, v_cache, mask_ts,
                                       plp['ow_t'], h, scaling)   # [B,T,hidden]

            # --- fused RMSNorm + MLP + residual ------------------------------
            h = mlp_pallas(h.reshape(M, hidden), lp['post_ln'],
                           plp['gate_w_t'], plp['up_w_t'], plp['down_w_t'],
                           eps).reshape(B, T, hidden)
        else:
            # ---------------- pure-JAX (torch-faithful) reference ------------
            resid = h
            hn = rmsnorm_ref(h.reshape(M, hidden), lp['input_ln'], eps)
            qkv = (hn @ lp['qkv_w'].T).reshape(B, T, -1)
            xq = qkv[..., :q_size].reshape(B, T, H, Dh)
            xk = qkv[..., q_size:q_size + kv_size].reshape(B, T, KV, Dh)
            xv = qkv[..., q_size + kv_size:].reshape(B, T, KV, Dh)
            xq = apply_rotary_emb(xq, cos, sin)
            xk = apply_rotary_emb(xk, cos, sin)
            k_cache = k_cache.at[:, input_positions].set(xk)
            v_cache = v_cache.at[:, input_positions].set(xv)
            new_caches.append((k_cache, v_cache))
            key_ = jnp.repeat(k_cache, rep, axis=2)
            val_ = jnp.repeat(v_cache, rep, axis=2)
            q = jnp.transpose(xq, (0, 2, 1, 3))
            kk = jnp.transpose(key_, (0, 2, 1, 3))
            vv = jnp.transpose(val_, (0, 2, 1, 3))
            ao = attention_ref(q, kk, vv, mask, scaling)
            ao = jnp.transpose(ao, (0, 2, 1, 3)).reshape(B * T, H * Dh)
            h = resid + (ao @ lp['o_w'].T).reshape(B, T, hidden)

            resid = h
            hn = rmsnorm_ref(h.reshape(M, hidden), lp['post_ln'], eps)
            gate = jax.nn.gelu(hn @ lp['gate_w'].T, approximate=False)
            up = hn @ lp['up_w'].T
            h = resid + ((gate * up) @ lp['down_w'].T).reshape(B, T, hidden)

    if use_pallas:
        h = rmsnorm_pallas(h.reshape(M, hidden), params['final_ln'], eps,
                           out_dtype=jnp.float32)
    else:
        h = rmsnorm_ref(h.reshape(M, hidden), params['final_ln'], eps)
    return h.reshape(B, T, hidden), new_caches


# ----------------------------- main --------------------------------------------
if __name__ == "__main__":
    cfg = Config()
    key = jax.random.PRNGKey(0)
    pkey, tkey = jax.random.split(key)
    params = init_params(cfg, pkey)
    pparams = prepare_pallas_params(params)

    B, T = 2, 16
    S = cfg.max_position_embeddings
    input_token_ids = jax.random.randint(tkey, (B, T), 0, cfg.vocab_size,
                                         dtype=jnp.int32)
    input_positions = jnp.arange(T, dtype=jnp.int32)

    # Pallas path: bf16 [B, KV, S, Dh] caches (half the HBM, no per-layer
    # transpose/cast); reference path: f32 torch-layout [B, S, KV, Dh] caches.
    kv_caches = [
        (jnp.zeros((B, cfg.num_key_value_heads, S, cfg.head_dim), jnp.bfloat16),
         jnp.zeros((B, cfg.num_key_value_heads, S, cfg.head_dim), jnp.bfloat16))
        for _ in range(cfg.num_hidden_layers)
    ]
    kv_caches_ref = [
        (jnp.zeros((B, S, cfg.num_key_value_heads, cfg.head_dim), jnp.float32),
         jnp.zeros((B, S, cfg.num_key_value_heads, cfg.head_dim), jnp.float32))
        for _ in range(cfg.num_hidden_layers)
    ]
    mask2d = jnp.triu(jnp.full((S, S), -2.3819763e38, dtype=jnp.float32), k=1)
    mask = mask2d[None, None, :T, :]                     # [1, 1, T, S]

    fwd = jax.jit(functools.partial(gemma_forward, cfg=cfg, use_pallas=True))
    out, _ = fwd(params, pparams, input_token_ids, input_positions, kv_caches, mask)
    out = jax.block_until_ready(out)

    ref, _ = gemma_forward(params, None, input_token_ids, input_positions,
                           kv_caches_ref, mask, cfg, use_pallas=False)
    ref = jax.block_until_ready(ref)

    assert out.shape == (B, T, cfg.hidden_size)
    assert bool(jnp.all(jnp.isfinite(out)))
    max_err = float(jnp.max(jnp.abs(out - ref)))
    assert max_err < 5e-2, f"mismatch vs pure-JAX reference: {max_err}"
    print("KERNEL_OK")
</pallas_src>

<mosaic_0001>
module attributes {stable_mosaic.version = 11 : i64} {
  func.func @_norm_qkv_kernel(%arg0: i32, %arg1: memref<16x128xbf16, #tpu.memory_space<vmem>>, %arg2: memref<1x128xf32, #tpu.memory_space<vmem>>, %arg3: memref<128x256xbf16, #tpu.memory_space<vmem>>, %arg4: memref<16x256xf32, #tpu.memory_space<vmem>>) attributes {dimension_semantics = [#tpu.dimension_semantics<parallel>], iteration_bounds = array<i64: 2>, scalar_prefetch = 0 : i64, scratch_operands = 0 : i64, tpu.core_type = #tpu.core_type<tc>, window_params = [{transform_indices = @transform_0, window_bounds = array<i64: 16, 128>}, {pipeline_mode = #tpu.pipeline_mode<synchronous>, transform_indices = @transform_1, window_bounds = array<i64: 1, 128>}, {pipeline_mode = #tpu.pipeline_mode<synchronous>, transform_indices = @transform_2, window_bounds = array<i64: 128, 256>}, {transform_indices = @transform_3, window_bounds = array<i64: 16, 256>}]} {
    %c0 = arith.constant 0 : index
    %c0_0 = arith.constant 0 : index
    %0 = vector.load %arg1[%c0, %c0_0] : memref<16x128xbf16, #tpu.memory_space<vmem>>, vector<16x128xbf16>
    %1 = arith.extf %0 : vector<16x128xbf16> to vector<16x128xf32>
    %2 = arith.mulf %1, %1 : vector<16x128xf32>
    %cst = arith.constant dense<0.000000e+00> : vector<16xf32>
    %3 = vector.multi_reduction <add>, %2, %cst [1] : vector<16x128xf32> to vector<16xf32>
    %4 = vector.shape_cast %3 : vector<16xf32> to vector<16x1xf32>
    %cst_1 = arith.constant 1.280000e+02 : f32
    %5 = vector.broadcast %cst_1 : f32 to vector<16x1xf32>
    %6 = arith.divf %4, %5 : vector<16x1xf32>
    %cst_2 = arith.constant 9.99999997E-7 : f32
    %7 = vector.broadcast %cst_2 : f32 to vector<16x1xf32>
    %8 = arith.addf %6, %7 : vector<16x1xf32>
    %9 = math.rsqrt %8 : vector<16x1xf32>
    %10 = vector.broadcast %9 : vector<16x1xf32> to vector<16x128xf32>
    %11 = arith.mulf %1, %10 : vector<16x128xf32>
    %c0_3 = arith.constant 0 : index
    %c0_4 = arith.constant 0 : index
    %12 = vector.load %arg2[%c0_3, %c0_4] : memref<1x128xf32, #tpu.memory_space<vmem>>, vector<1x128xf32>
    %cst_5 = arith.constant 1.000000e+00 : f32
    %13 = vector.broadcast %cst_5 : f32 to vector<1x128xf32>
    %14 = arith.addf %13, %12 : vector<1x128xf32>
    %15 = vector.broadcast %14 : vector<1x128xf32> to vector<16x128xf32>
    %16 = arith.mulf %11, %15 : vector<16x128xf32>
    %17 = arith.truncf %16 : vector<16x128xf32> to vector<16x128xbf16>
    %c0_6 = arith.constant 0 : index
    %c0_7 = arith.constant 0 : index
    %18 = vector.load %arg3[%c0_6, %c0_7] : memref<128x256xbf16, #tpu.memory_space<vmem>>, vector<128x256xbf16>
    %cst_8 = arith.constant dense<0.000000e+00> : vector<16x256xf32>
    %19 = tpu.matmul %17, %18, %cst_8 {dimension_numbers = #tpu.dot_dimension_numbers<[1], [0], [0], [1], [0, 0, 1, 1], [], []>} : vector<16x128xbf16>, vector<128x256xbf16>, vector<16x256xf32> -> vector<16x256xf32>
    %c0_9 = arith.constant 0 : index
    %c0_10 = arith.constant 0 : index
    %20 = vector.load %arg4[%c0_9, %c0_10] : memref<16x256xf32, #tpu.memory_space<vmem>>, vector<16x256xf32>
    tpu.vector_store %arg4[%c0_9, %c0_10], %19 {strides = array<i32>} : memref<16x256xf32, #tpu.memory_space<vmem>>, vector<16x256xf32>,
    return
  }
  func.func @transform_0(%arg0: i32) -> (i32, i32) {
    %c0_i32 = arith.constant 0 : i32
    %c0_i32_0 = arith.constant 0 : i32
    return %arg0, %c0_i32 : i32, i32
  }
  func.func @transform_1(%arg0: i32) -> (i32, i32) {
    %c0_i32 = arith.constant 0 : i32
    %c0_i32_0 = arith.constant 0 : i32
    %c0_i32_1 = arith.constant 0 : i32
    return %c0_i32, %c0_i32_0 : i32, i32
  }
  func.func @transform_2(%arg0: i32) -> (i32, i32) {
    %c0_i32 = arith.constant 0 : i32
    %c0_i32_0 = arith.constant 0 : i32
    %c0_i32_1 = arith.constant 0 : i32
    return %c0_i32, %c0_i32_0 : i32, i32
  }
  func.func @transform_3(%arg0: i32) -> (i32, i32) {
    %c0_i32 = arith.constant 0 : i32
    %c0_i32_0 = arith.constant 0 : i32
    return %arg0, %c0_i32 : i32, i32
  }
}

module attributes {stable_mosaic.version = 11 : i64} {
  func.func @_attn_oproj_kernel(%arg0: i32, %arg1: i32, %arg2: memref<1x1x2x16x32xf32, #tpu.memory_space<vmem>>, %arg3: memref<1x1x16x32xbf16, #tpu.memory_space<vmem>>, %arg4: memref<1x1x16x32xbf16, #tpu.memory_space<vmem>>, %arg5: memref<16x16xf32, #tpu.memory_space<vmem>>, %arg6: memref<64x128xbf16, #tpu.memory_space<vmem>>, %arg7: memref<1x16x128xbf16, #tpu.memory_space<vmem>>, %arg8: memref<1x16x128xbf16, #tpu.memory_space<vmem>>, %arg9: memref<16x128xf32, #tpu.memory_space<vmem>>) attributes {dimension_semantics = [#tpu.dimension_semantics<parallel>, #tpu.dimension_semantics<arbitrary>], iteration_bounds = array<i64: 2, 2>, scalar_prefetch = 0 : i64, scratch_operands = 1 : i64, tpu.core_type = #tpu.core_type<tc>, window_params = [{transform_indices = @transform_0, window_bounds = array<i64: 1, 1, 2, 16, 32>}, {transform_indices = @transform_1, window_bounds = array<i64: 1, 1, 16, 32>}, {transform_indices = @transform_2, window_bounds = array<i64: 1, 1, 16, 32>}, {pipeline_mode = #tpu.pipeline_mode<synchronous>, transform_indices = @transform_3, window_bounds = array<i64: 16, 16>}, {transform_indices = @transform_4, window_bounds = array<i64: 64, 128>}, {transform_indices = @transform_5, window_bounds = array<i64: 1, 16, 128>}, {transform_indices = @transform_6, window_bounds = array<i64: 1, 16, 128>}]} {
    %c0_i32 = arith.constant 0 : i32
    %0 = arith.cmpi eq, %arg1, %c0_i32 : i32
    %1 = arith.extui %0 : i1 to i32
    %c0_i32_0 = arith.constant 0 : i32
    %2 = arith.cmpi ne, %1, %c0_i32_0 : i32
    scf.if %2 {
      %cst_38 = arith.constant 0.000000e+00 : f32
      %59 = vector.broadcast %cst_38 : f32 to vector<16x128xf32>
      %c0_39 = arith.constant 0 : index
      %c0_40 = arith.constant 0 : index
      %60 = vector.load %arg9[%c0_39, %c0_40] : memref<16x128xf32, #tpu.memory_space<vmem>>, vector<16x128xf32>
      tpu.vector_store %arg9[%c0_39, %c0_40], %59 {strides = array<i32>} : memref<16x128xf32, #tpu.memory_space<vmem>>, vector<16x128xf32>,
    } else {
    }
    %c0 = arith.constant 0 : index
    %c0_1 = arith.constant 0 : index
    %c0_2 = arith.constant 0 : index
    %c0_3 = arith.constant 0 : index
    %3 = vector.load %arg3[%c0, %c0_1, %c0_2, %c0_3] : memref<1x1x16x32xbf16, #tpu.memory_space<vmem>>, vector<1x1x16x32xbf16>
    %4 = vector.shape_cast %3 : vector<1x1x16x32xbf16> to vector<16x32xbf16>
    %c0_4 = arith.constant 0 : index
    %c0_5 = arith.constant 0 : index
    %c0_6 = arith.constant 0 : index
    %c0_7 = arith.constant 0 : index
    %5 = vector.load %arg4[%c0_4, %c0_5, %c0_6, %c0_7] : memref<1x1x16x32xbf16, #tpu.memory_space<vmem>>, vector<1x1x16x32xbf16>
    %6 = vector.shape_cast %5 : vector<1x1x16x32xbf16> to vector<16x32xbf16>
    %c0_8 = arith.constant 0 : index
    %c0_9 = arith.constant 0 : index
    %7 = vector.load %arg5[%c0_8, %c0_9] : memref<16x16xf32, #tpu.memory_space<vmem>>, vector<16x16xf32>
    %c0_10 = arith.constant 0 : index
    %c0_11 = arith.constant 0 : index
    %8 = vector.load %arg9[%c0_10, %c0_11] : memref<16x128xf32, #tpu.memory_space<vmem>>, vector<16x128xf32>
    %c0_12 = arith.constant 0 : index
    %c0_13 = arith.constant 0 : index
    %c0_14 = arith.constant 0 : index
    %c0_15 = arith.constant 0 : index
    %c0_16 = arith.constant 0 : index
    %9 = vector.load %arg2[%c0_12, %c0_13, %c0_14, %c0_15, %c0_16] : memref<1x1x2x16x32xf32, #tpu.memory_space<vmem>>, vector<1x1x1x16x32xf32>
    %10 = vector.shape_cast %9 : vector<1x1x1x16x32xf32> to vector<16x32xf32>
    %cst = arith.constant 0.176776692 : f32
    %11 = vector.broadcast %cst : f32 to vector<16x32xf32>
    %12 = arith.mulf %10, %11 : vector<16x32xf32>
    %13 = arith.truncf %12 : vector<16x32xf32> to vector<16x32xbf16>
    %cst_17 = arith.constant dense<0.000000e+00> : vector<16x16xf32>
    %14 = tpu.matmul %13, %4, %cst_17 {dimension_numbers = #tpu.dot_dimension_numbers<[1], [1], [0], [0], [0, 0, 1, 0], [], []>} : vector<16x32xbf16>, vector<16x32xbf16>, vector<16x16xf32> -> vector<16x16xf32>
    %15 = arith.addf %14, %7 : vector<16x16xf32>
    %cst_18 = arith.constant dense<0xFF800000> : vector<16xf32>
    %16 = vector.multi_reduction <maximumf>, %15, %cst_18 [1] : vector<16x16xf32> to vector<16xf32>
    %17 = vector.shape_cast %16 : vector<16xf32> to vector<16x1xf32>
    %18 = vector.broadcast %17 : vector<16x1xf32> to vector<16x16xf32>
    %19 = arith.subf %15, %18 : vector<16x16xf32>
    %20 = math.exp %19 : vector<16x16xf32>
    %cst_19 = arith.constant dense<0.000000e+00> : vector<16xf32>
    %21 = vector.multi_reduction <add>, %20, %cst_19 [1] : vector<16x16xf32> to vector<16xf32>
    %22 = vector.shape_cast %21 : vector<16xf32> to vector<16x1xf32>
    %23 = tpu.reciprocal %22 {approx = true} : vector<16x1xf32> -> vector<16x1xf32>
    %24 = vector.broadcast %23 : vector<16x1xf32> to vector<16x16xf32>
    %25 = arith.mulf %20, %24 : vector<16x16xf32>
    %26 = arith.truncf %25 : vector<16x16xf32> to vector<16x16xbf16>
    %cst_20 = arith.constant dense<0.000000e+00> : vector<16x32xf32>
    %27 = tpu.matmul %26, %6, %cst_20 {dimension_numbers = #tpu.dot_dimension_numbers<[1], [0], [0], [1], [0, 0, 1, 1], [], []>} : vector<16x16xbf16>, vector<16x32xbf16>, vector<16x32xf32> -> vector<16x32xf32>
    %28 = arith.truncf %27 : vector<16x32xf32> to vector<16x32xbf16>
    %c0_21 = arith.constant 0 : index
    %c0_22 = arith.constant 0 : index
    %29 = vector.load %arg6[%c0_21, %c0_22] : memref<64x128xbf16, #tpu.memory_space<vmem>>, vector<32x128xbf16>
    %cst_23 = arith.constant dense<0.000000e+00> : vector<16x128xf32>
    %30 = tpu.matmul %28, %29, %cst_23 {dimension_numbers = #tpu.dot_dimension_numbers<[1], [0], [0], [1], [0, 0, 1, 1], [], []>} : vector<16x32xbf16>, vector<32x128xbf16>, vector<16x128xf32> -> vector<16x128xf32>
    %31 = arith.addf %8, %30 : vector<16x128xf32>
    %c0_24 = arith.constant 0 : index
    %c0_25 = arith.constant 0 : index
    %c1 = arith.constant 1 : index
    %c0_26 = arith.constant 0 : index
    %c0_27 = arith.constant 0 : index
    %32 = vector.load %arg2[%c0_24, %c0_25, %c1, %c0_26, %c0_27] : memref<1x1x2x16x32xf32, #tpu.memory_space<vmem>>, vector<1x1x1x16x32xf32>
    %33 = vector.shape_cast %32 : vector<1x1x1x16x32xf32> to vector<16x32xf32>
    %cst_28 = arith.constant 0.176776692 : f32
    %34 = vector.broadcast %cst_28 : f32 to vector<16x32xf32>
    %35 = arith.mulf %33, %34 : vector<16x32xf32>
    %36 = arith.truncf %35 : vector<16x32xf32> to vector<16x32xbf16>
    %cst_29 = arith.constant dense<0.000000e+00> : vector<16x16xf32>
    %37 = tpu.matmul %36, %4, %cst_29 {dimension_numbers = #tpu.dot_dimension_numbers<[1], [1], [0], [0], [0, 0, 1, 0], [], []>} : vector<16x32xbf16>, vector<16x32xbf16>, vector<16x16xf32> -> vector<16x16xf32>
    %38 = arith.addf %37, %7 : vector<16x16xf32>
    %cst_30 = arith.constant dense<0xFF800000> : vector<16xf32>
    %39 = vector.multi_reduction <maximumf>, %38, %cst_30 [1] : vector<16x16xf32> to vector<16xf32>
    %40 = vector.shape_cast %39 : vector<16xf32> to vector<16x1xf32>
    %41 = vector.broadcast %40 : vector<16x1xf32> to vector<16x16xf32>
    %42 = arith.subf %38, %41 : vector<16x16xf32>
    %43 = math.exp %42 : vector<16x16xf32>
    %cst_31 = arith.constant dense<0.000000e+00> : vector<16xf32>
    %44 = vector.multi_reduction <add>, %43, %cst_31 [1] : vector<16x16xf32> to vector<16xf32>
    %45 = vector.shape_cast %44 : vector<16xf32> to vector<16x1xf32>
    %46 = tpu.reciprocal %45 {approx = true} : vector<16x1xf32> -> vector<16x1xf32>
    %47 = vector.broadcast %46 : vector<16x1xf32> to vector<16x16xf32>
    %48 = arith.mulf %43, %47 : vector<16x16xf32>
    %49 = arith.truncf %48 : vector<16x16xf32> to vector<16x16xbf16>
    %cst_32 = arith.constant dense<0.000000e+00> : vector<16x32xf32>
    %50 = tpu.matmul %49, %6, %cst_32 {dimension_numbers = #tpu.dot_dimension_numbers<[1], [0], [0], [1], [0, 0, 1, 1], [], []>} : vector<16x16xbf16>, vector<16x32xbf16>, vector<16x32xf32> -> vector<16x32xf32>
    %51 = arith.truncf %50 : vector<16x32xf32> to vector<16x32xbf16>
    %c32 = arith.constant 32 : index
    %c0_33 = arith.constant 0 : index
    %52 = vector.load %arg6[%c32, %c0_33] : memref<64x128xbf16, #tpu.memory_space<vmem>>, vector<32x128xbf16>
    %cst_34 = arith.constant dense<0.000000e+00> : vector<16x128xf32>
    %53 = tpu.matmul %51, %52, %cst_34 {dimension_numbers = #tpu.dot_dimension_numbers<[1], [0], [0], [1], [0, 0, 1, 1], [], []>} : vector<16x32xbf16>, vector<32x128xbf16>, vector<16x128xf32> -> vector<16x128xf32>
    %54 = arith.addf %31, %53 : vector<16x128xf32>
    %c0_35 = arith.constant 0 : index
    %c0_36 = arith.constant 0 : index
    %55 = vector.load %arg9[%c0_35, %c0_36] : memref<16x128xf32, #tpu.memory_space<vmem>>, vector<16x128xf32>
    tpu.vector_store %arg9[%c0_35, %c0_36], %54 {strides = array<i32>} : memref<16x128xf32, #tpu.memory_space<vmem>>, vector<16x128xf32>,
    %c1_i32 = arith.constant 1 : i32
    %56 = arith.cmpi eq, %arg1, %c1_i32 : i32
    %57 = arith.extui %56 : i1 to i32
    %c0_i32_37 = arith.constant 0 : i32
    %58 = arith.cmpi ne, %57, %c0_i32_37 : i32
    scf.if %58 {
      %c0_38 = arith.constant 0 : index
      %c0_39 = arith.constant 0 : index
      %c0_40 = arith.constant 0 : index
      %59 = vector.load %arg7[%c0_38, %c0_39, %c0_40] : memref<1x16x128xbf16, #tpu.memory_space<vmem>>, vector<1x16x128xbf16>
      %60 = vector.shape_cast %59 : vector<1x16x128xbf16> to vector<16x128xbf16>
      %61 = arith.extf %60 : vector<16x128xbf16> to vector<16x128xf32>
      %62 = arith.addf %54, %61 : vector<16x128xf32>
      %63 = arith.truncf %62 : vector<16x128xf32> to vector<16x128xbf16>
      %c0_41 = arith.constant 0 : index
      %c0_42 = arith.constant 0 : index
      %c0_43 = arith.constant 0 : index
      %64 = vector.load %arg8[%c0_41, %c0_42, %c0_43] : memref<1x16x128xbf16, #tpu.memory_space<vmem>>, vector<1x16x128xbf16>
      %65 = vector.shape_cast %64 : vector<1x16x128xbf16> to vector<16x128xbf16>
      %66 = vector.shape_cast %63 : vector<16x128xbf16> to vector<1x16x128xbf16>
      tpu.vector_store %arg8[%c0_41, %c0_42, %c0_43], %66 {strides = array<i32>} : memref<1x16x128xbf16, #tpu.memory_space<vmem>>, vector<1x16x128xbf16>,
    } else {
    }
    return
  }
  func.func @transform_0(%arg0: i32, %arg1: i32) -> (i32, i32, i32, i32, i32) {
    %c0_i32 = arith.constant 0 : i32
    %c0_i32_0 = arith.constant 0 : i32
    %c0_i32_1 = arith.constant 0 : i32
    %c0_i32_2 = arith.constant 0 : i32
    return %arg0, %arg1, %c0_i32, %c0_i32_0, %c0_i32_1 : i32, i32, i32, i32, i32
  }
  func.func @transform_1(%arg0: i32, %arg1: i32) -> (i32, i32, i32, i32) {
    %c0_i32 = arith.constant 0 : i32
    %c0_i32_0 = arith.constant 0 : i32
    %c0_i32_1 = arith.constant 0 : i32
    return %arg0, %arg1, %c0_i32, %c0_i32_0 : i32, i32, i32, i32
  }
  func.func @transform_2(%arg0: i32, %arg1: i32) -> (i32, i32, i32, i32) {
    %c0_i32 = arith.constant 0 : i32
    %c0_i32_0 = arith.constant 0 : i32
    %c0_i32_1 = arith.constant 0 : i32
    return %arg0, %arg1, %c0_i32, %c0_i32_0 : i32, i32, i32, i32
  }
  func.func @transform_3(%arg0: i32, %arg1: i32) -> (i32, i32) {
    %c0_i32 = arith.constant 0 : i32
    %c0_i32_0 = arith.constant 0 : i32
    %c0_i32_1 = arith.constant 0 : i32
    return %c0_i32, %c0_i32_0 : i32, i32
  }
  func.func @transform_4(%arg0: i32, %arg1: i32) -> (i32, i32) {
    %c0_i32 = arith.constant 0 : i32
    %c0_i32_0 = arith.constant 0 : i32
    return %arg1, %c0_i32 : i32, i32
  }
  func.func @transform_5(%arg0: i32, %arg1: i32) -> (i32, i32, i32) {
    %c0_i32 = arith.constant 0 : i32
    %c0_i32_0 = arith.constant 0 : i32
    %c0_i32_1 = arith.constant 0 : i32
    return %arg0, %c0_i32, %c0_i32_0 : i32, i32, i32
  }
  func.func @transform_6(%arg0: i32, %arg1: i32) -> (i32, i32, i32) {
    %c0_i32 = arith.constant 0 : i32
    %c0_i32_0 = arith.constant 0 : i32
    %c0_i32_1 = arith.constant 0 : i32
    return %arg0, %c0_i32, %c0_i32_0 : i32, i32, i32
  }
}

module attributes {stable_mosaic.version = 11 : i64} {
  func.func @_rmsnorm_kernel(%arg0: i32, %arg1: memref<16x128xbf16, #tpu.memory_space<vmem>>, %arg2: memref<1x128xf32, #tpu.memory_space<vmem>>, %arg3: memref<16x128xf32, #tpu.memory_space<vmem>>) attributes {dimension_semantics = [#tpu.dimension_semantics<parallel>], iteration_bounds = array<i64: 2>, scalar_prefetch = 0 : i64, scratch_operands = 0 : i64, tpu.core_type = #tpu.core_type<tc>, window_params = [{transform_indices = @transform_0, window_bounds = array<i64: 16, 128>}, {pipeline_mode = #tpu.pipeline_mode<synchronous>, transform_indices = @transform_1, window_bounds = array<i64: 1, 128>}, {transform_indices = @transform_2, window_bounds = array<i64: 16, 128>}]} {
    %c0 = arith.constant 0 : index
    %c0_0 = arith.constant 0 : index
    %0 = vector.load %arg1[%c0, %c0_0] : memref<16x128xbf16, #tpu.memory_space<vmem>>, vector<16x128xbf16>
    %1 = arith.extf %0 : vector<16x128xbf16> to vector<16x128xf32>
    %2 = arith.mulf %1, %1 : vector<16x128xf32>
    %cst = arith.constant dense<0.000000e+00> : vector<16xf32>
    %3 = vector.multi_reduction <add>, %2, %cst [1] : vector<16x128xf32> to vector<16xf32>
    %4 = vector.shape_cast %3 : vector<16xf32> to vector<16x1xf32>
    %cst_1 = arith.constant 1.280000e+02 : f32
    %5 = vector.broadcast %cst_1 : f32 to vector<16x1xf32>
    %6 = arith.divf %4, %5 : vector<16x1xf32>
    %cst_2 = arith.constant 9.99999997E-7 : f32
    %7 = vector.broadcast %cst_2 : f32 to vector<16x1xf32>
    %8 = arith.addf %6, %7 : vector<16x1xf32>
    %9 = math.rsqrt %8 : vector<16x1xf32>
    %10 = vector.broadcast %9 : vector<16x1xf32> to vector<16x128xf32>
    %11 = arith.mulf %1, %10 : vector<16x128xf32>
    %c0_3 = arith.constant 0 : index
    %c0_4 = arith.constant 0 : index
    %12 = vector.load %arg2[%c0_3, %c0_4] : memref<1x128xf32, #tpu.memory_space<vmem>>, vector<1x128xf32>
    %cst_5 = arith.constant 1.000000e+00 : f32
    %13 = vector.broadcast %cst_5 : f32 to vector<1x128xf32>
    %14 = arith.addf %13, %12 : vector<1x128xf32>
    %15 = vector.broadcast %14 : vector<1x128xf32> to vector<16x128xf32>
    %16 = arith.mulf %11, %15 : vector<16x128xf32>
    %c0_6 = arith.constant 0 : index
    %c0_7 = arith.constant 0 : index
    %17 = vector.load %arg3[%c0_6, %c0_7] : memref<16x128xf32, #tpu.memory_space<vmem>>, vector<16x128xf32>
    tpu.vector_store %arg3[%c0_6, %c0_7], %16 {strides = array<i32>} : memref<16x128xf32, #tpu.memory_space<vmem>>, vector<16x128xf32>,
    return
  }
  func.func @transform_0(%arg0: i32) -> (i32, i32) {
    %c0_i32 = arith.constant 0 : i32
    %c0_i32_0 = arith.constant 0 : i32
    return %arg0, %c0_i32 : i32, i32
  }
  func.func @transform_1(%arg0: i32) -> (i32, i32) {
    %c0_i32 = arith.constant 0 : i32
    %c0_i32_0 = arith.constant 0 : i32
    %c0_i32_1 = arith.constant 0 : i32
    return %c0_i32, %c0_i32_0 : i32, i32
  }
  func.func @transform_2(%arg0: i32) -> (i32, i32) {
    %c0_i32 = arith.constant 0 : i32
    %c0_i32_0 = arith.constant 0 : i32
    return %arg0, %c0_i32 : i32, i32
  }
}

module attributes {stable_mosaic.version = 11 : i64} {
  func.func @_mlp_kernel(%arg0: i32, %arg1: i32, %arg2: memref<16x128xbf16, #tpu.memory_space<vmem>>, %arg3: memref<1x128xf32, #tpu.memory_space<vmem>>, %arg4: memref<128x128xbf16, #tpu.memory_space<vmem>>, %arg5: memref<128x128xbf16, #tpu.memory_space<vmem>>, %arg6: memref<128x128xbf16, #tpu.memory_space<vmem>>, %arg7: memref<16x128xbf16, #tpu.memory_space<vmem>>, %arg8: memref<16x128xf32, #tpu.memory_space<vmem>>) attributes {dimension_semantics = [#tpu.dimension_semantics<parallel>, #tpu.dimension_semantics<arbitrary>], iteration_bounds = array<i64: 2, 2>, scalar_prefetch = 0 : i64, scratch_operands = 1 : i64, tpu.core_type = #tpu.core_type<tc>, window_params = [{transform_indices = @transform_0, window_bounds = array<i64: 16, 128>}, {pipeline_mode = #tpu.pipeline_mode<synchronous>, transform_indices = @transform_1, window_bounds = array<i64: 1, 128>}, {transform_indices = @transform_2, window_bounds = array<i64: 128, 128>}, {transform_indices = @transform_3, window_bounds = array<i64: 128, 128>}, {transform_indices = @transform_4, window_bounds = array<i64: 128, 128>}, {transform_indices = @transform_5, window_bounds = array<i64: 16, 128>}]} {
    %c0_i32 = arith.constant 0 : i32
    %0 = arith.cmpi eq, %arg1, %c0_i32 : i32
    %1 = arith.extui %0 : i1 to i32
    %c0_i32_0 = arith.constant 0 : i32
    %2 = arith.cmpi ne, %1, %c0_i32_0 : i32
    scf.if %2 {
      %cst_25 = arith.constant 0.000000e+00 : f32
      %48 = vector.broadcast %cst_25 : f32 to vector<16x128xf32>
      %c0_26 = arith.constant 0 : index
      %c0_27 = arith.constant 0 : index
      %49 = vector.load %arg8[%c0_26, %c0_27] : memref<16x128xf32, #tpu.memory_space<vmem>>, vector<16x128xf32>
      tpu.vector_store %arg8[%c0_26, %c0_27], %48 {strides = array<i32>} : memref<16x128xf32, #tpu.memory_space<vmem>>, vector<16x128xf32>,
    } else {
    }
    %c0 = arith.constant 0 : index
    %c0_1 = arith.constant 0 : index
    %3 = vector.load %arg2[%c0, %c0_1] : memref<16x128xbf16, #tpu.memory_space<vmem>>, vector<16x128xbf16>
    %4 = arith.extf %3 : vector<16x128xbf16> to vector<16x128xf32>
    %5 = arith.mulf %4, %4 : vector<16x128xf32>
    %cst = arith.constant dense<0.000000e+00> : vector<16xf32>
    %6 = vector.multi_reduction <add>, %5, %cst [1] : vector<16x128xf32> to vector<16xf32>
    %7 = vector.shape_cast %6 : vector<16xf32> to vector<16x1xf32>
    %cst_2 = arith.constant 1.280000e+02 : f32
    %8 = vector.broadcast %cst_2 : f32 to vector<16x1xf32>
    %9 = arith.divf %7, %8 : vector<16x1xf32>
    %cst_3 = arith.constant 9.99999997E-7 : f32
    %10 = vector.broadcast %cst_3 : f32 to vector<16x1xf32>
    %11 = arith.addf %9, %10 : vector<16x1xf32>
    %12 = math.rsqrt %11 : vector<16x1xf32>
    %13 = vector.broadcast %12 : vector<16x1xf32> to vector<16x128xf32>
    %14 = arith.mulf %4, %13 : vector<16x128xf32>
    %c0_4 = arith.constant 0 : index
    %c0_5 = arith.constant 0 : index
    %15 = vector.load %arg3[%c0_4, %c0_5] : memref<1x128xf32, #tpu.memory_space<vmem>>, vector<1x128xf32>
    %cst_6 = arith.constant 1.000000e+00 : f32
    %16 = vector.broadcast %cst_6 : f32 to vector<1x128xf32>
    %17 = arith.addf %16, %15 : vector<1x128xf32>
    %18 = vector.broadcast %17 : vector<1x128xf32> to vector<16x128xf32>
    %19 = arith.mulf %14, %18 : vector<16x128xf32>
    %20 = arith.truncf %19 : vector<16x128xf32> to vector<16x128xbf16>
    %c0_7 = arith.constant 0 : index
    %c0_8 = arith.constant 0 : index
    %21 = vector.load %arg4[%c0_7, %c0_8] : memref<128x128xbf16, #tpu.memory_space<vmem>>, vector<128x128xbf16>
    %cst_9 = arith.constant dense<0.000000e+00> : vector<16x128xf32>
    %22 = tpu.matmul %20, %21, %cst_9 {dimension_numbers = #tpu.dot_dimension_numbers<[1], [0], [0], [1], [0, 0, 1, 1], [], []>} : vector<16x128xbf16>, vector<128x128xbf16>, vector<16x128xf32> -> vector<16x128xf32>
    %c0_10 = arith.constant 0 : index
    %c0_11 = arith.constant 0 : index
    %23 = vector.load %arg5[%c0_10, %c0_11] : memref<128x128xbf16, #tpu.memory_space<vmem>>, vector<128x128xbf16>
    %cst_12 = arith.constant dense<0.000000e+00> : vector<16x128xf32>
    %24 = tpu.matmul %20, %23, %cst_12 {dimension_numbers = #tpu.dot_dimension_numbers<[1], [0], [0], [1], [0, 0, 1, 1], [], []>} : vector<16x128xbf16>, vector<128x128xbf16>, vector<16x128xf32> -> vector<16x128xf32>
    %cst_13 = arith.constant 5.000000e-01 : f32
    %25 = vector.broadcast %cst_13 : f32 to vector<16x128xf32>
    %26 = arith.mulf %25, %22 : vector<16x128xf32>
    %cst_14 = arith.constant 4.471500e-02 : f32
    %27 = vector.broadcast %cst_14 : f32 to vector<16x128xf32>
    %28 = arith.mulf %27, %22 : vector<16x128xf32>
    %29 = arith.mulf %28, %22 : vector<16x128xf32>
    %30 = arith.mulf %29, %22 : vector<16x128xf32>
    %31 = arith.addf %22, %30 : vector<16x128xf32>
    %cst_15 = arith.constant 0.797884583 : f32
    %32 = vector.broadcast %cst_15 : f32 to vector<16x128xf32>
    %33 = arith.mulf %32, %31 : vector<16x128xf32>
    %34 = math.tanh %33 : vector<16x128xf32>
    %cst_16 = arith.constant 1.000000e+00 : f32
    %35 = vector.broadcast %cst_16 : f32 to vector<16x128xf32>
    %36 = arith.addf %35, %34 : vector<16x128xf32>
    %37 = arith.mulf %26, %36 : vector<16x128xf32>
    %38 = arith.mulf %37, %24 : vector<16x128xf32>
    %39 = arith.truncf %38 : vector<16x128xf32> to vector<16x128xbf16>
    %c0_17 = arith.constant 0 : index
    %c0_18 = arith.constant 0 : index
    %40 = vector.load %arg8[%c0_17, %c0_18] : memref<16x128xf32, #tpu.memory_space<vmem>>, vector<16x128xf32>
    %c0_19 = arith.constant 0 : index
    %c0_20 = arith.constant 0 : index
    %41 = vector.load %arg6[%c0_19, %c0_20] : memref<128x128xbf16, #tpu.memory_space<vmem>>, vector<128x128xbf16>
    %cst_21 = arith.constant dense<0.000000e+00> : vector<16x128xf32>
    %42 = tpu.matmul %39, %41, %cst_21 {dimension_numbers = #tpu.dot_dimension_numbers<[1], [0], [0], [1], [0, 0, 1, 1], [], []>} : vector<16x128xbf16>, vector<128x128xbf16>, vector<16x128xf32> -> vector<16x128xf32>
    %43 = arith.addf %40, %42 : vector<16x128xf32>
    %c0_22 = arith.constant 0 : index
    %c0_23 = arith.constant 0 : index
    %44 = vector.load %arg8[%c0_22, %c0_23] : memref<16x128xf32, #tpu.memory_space<vmem>>, vector<16x128xf32>
    tpu.vector_store %arg8[%c0_22, %c0_23], %43 {strides = array<i32>} : memref<16x128xf32, #tpu.memory_space<vmem>>, vector<16x128xf32>,
    %c1_i32 = arith.constant 1 : i32
    %45 = arith.cmpi eq, %arg1, %c1_i32 : i32
    %46 = arith.extui %45 : i1 to i32
    %c0_i32_24 = arith.constant 0 : i32
    %47 = arith.cmpi ne, %46, %c0_i32_24 : i32
    scf.if %47 {
      %c0_25 = arith.constant 0 : index
      %c0_26 = arith.constant 0 : index
      %48 = vector.load %arg8[%c0_25, %c0_26] : memref<16x128xf32, #tpu.memory_space<vmem>>, vector<16x128xf32>
      %49 = arith.addf %48, %4 : vector<16x128xf32>
      %50 = arith.truncf %49 : vector<16x128xf32> to vector<16x128xbf16>
      %c0_27 = arith.constant 0 : index
      %c0_28 = arith.constant 0 : index
      %51 = vector.load %arg7[%c0_27, %c0_28] : memref<16x128xbf16, #tpu.memory_space<vmem>>, vector<16x128xbf16>
      tpu.vector_store %arg7[%c0_27, %c0_28], %50 {strides = array<i32>} : memref<16x128xbf16, #tpu.memory_space<vmem>>, vector<16x128xbf16>,
    } else {
    }
    return
  }
  func.func @transform_0(%arg0: i32, %arg1: i32) -> (i32, i32) {
    %c0_i32 = arith.constant 0 : i32
    %c0_i32_0 = arith.constant 0 : i32
    return %arg0, %c0_i32 : i32, i32
  }
  func.func @transform_1(%arg0: i32, %arg1: i32) -> (i32, i32) {
    %c0_i32 = arith.constant 0 : i32
    %c0_i32_0 = arith.constant 0 : i32
    %c0_i32_1 = arith.constant 0 : i32
    return %c0_i32, %c0_i32_0 : i32, i32
  }
  func.func @transform_2(%arg0: i32, %arg1: i32) -> (i32, i32) {
    %c0_i32 = arith.constant 0 : i32
    %c0_i32_0 = arith.constant 0 : i32
    return %c0_i32, %arg1 : i32, i32
  }
  func.func @transform_3(%arg0: i32, %arg1: i32) -> (i32, i32) {
    %c0_i32 = arith.constant 0 : i32
    %c0_i32_0 = arith.constant 0 : i32
    return %c0_i32, %arg1 : i32, i32
  }
  func.func @transform_4(%arg0: i32, %arg1: i32) -> (i32, i32) {
    %c0_i32 = arith.constant 0 : i32
    %c0_i32_0 = arith.constant 0 : i32
    return %arg1, %c0_i32 : i32, i32
  }
  func.func @transform_5(%arg0: i32, %arg1: i32) -> (i32, i32) {
    %c0_i32 = arith.constant 0 : i32
    %c0_i32_0 = arith.constant 0 : i32
    return %arg0, %c0_i32 : i32, i32
  }
}

</mosaic_0001>

<llo_original>
// kernel: gemma_forward.7
$region0: #{gemma_forward.7}
  #allocation0 [shape = 'u32[]', space=smem, size = 0x4, offset = 0x4, fixed_abs, tag = 'smem constant byte address 0x4 - core index']
  #allocation1 [shape = 'u32[144,128]{1,0:T(1,128)}', space=vmem, size = 0x12000, scoped, tag = 'internal scratch']
  %s0 = inlined_call_operand.vmem [shape: bf16[32,128], index: 0, kind: input, shape index: {}]
  %s1 = inlined_call_operand.vmem [shape: f32[1,128], index: 1, kind: input, shape index: {}]
  %s2 = inlined_call_operand.vmem [shape: bf16[128,256], index: 2, kind: input, shape index: {}]
  %s3 = inlined_call_operand.vmem [shape: f32[32,256], index: 3, kind: output, shape index: {}]
  %s4 = sld [smem:[#allocation0]]
  $region45: #{gemma_forward.7} parent=0
    _
  %s6 = ssub.s32 1, %s4
  %s7 = scalar_select 0, %s6, %s4
  loop: start=0, step=1, limit=4
  $region2: #{gemma_forward.7} parent=0 // loop_pre_header
    _
  $region3: #{gemma_forward.7} parent=0 // loop_header
    %s9 = sphi 0, %s13
    %p10 = scmp.ge.s32.totalorder %s9, 4
    %s19 = sphi 0, %s21
    %s22 = sphi 0, %s19
    %s23 = sphi 0, %s22
    %s39 = sphi 0, %s23
    %s43 = sphi 0, %s43
    %s45 = sphi 0, %s43
    %s46 = sphi 0, %s45
    %s60 = sphi 0, %s46
    %s64 = sphi 0, %s64
    %s66 = sphi 0, %s64
    %s67 = sphi 0, %s66
    %s81 = sphi 0, %s67
    %s87 = sphi 0, %s89
    %s90 = sphi 0, %s87
    %s91 = sphi 0, %s90
    %s107 = sphi 0, %s91
  $region4: #{gemma_forward.7} parent=0 // loop_header_branch
    %12 = sbr.rel (%p10) target = $region8
  $region5: #{gemma_forward.7} parent=0 // loop_body
    %s14 = ssub.s32 %s9, 1
    %s15 = ssub.s32 %s9, 2
    %s16 = sadd.s32 %s9, 1
    %s17 = ssub.s32 %s9, %s16
    %p18 = scmp.eq.s32.totalorder %s17, 0
    %s20 = sadd.s32 %s19, 1
    %s21 = scalar_select %p18, %s19, %s20
    %p24 = pneg %p18
    %p25 = scmp.eq.s32.totalorder %s9, 1
    %p26 = por %p24, %p25
    %p27 = scmp.ne.s32.totalorder %s19, %s22
    %p28 = scmp.eq.s32.totalorder %s9, 0
    %p29 = por %p27, %p28
    %p30 = scmp.ne.s32.totalorder %s19, %s22
    %p31 = scmp.eq.s32.totalorder %s14, 1
    %p32 = por %p30, %p31
    %p33 = scmp.ne.s32.totalorder %s22, %s23
    %p34 = scmp.eq.s32.totalorder %s14, 0
    %p35 = por %p33, %p34
    %p36 = scmp.ne.s32.totalorder %s22, %s23
    %p37 = scmp.eq.s32.totalorder %s15, 1
    %p38 = por %p36, %p37
    %p40 = scmp.ne.s32.totalorder %s23, %s39
    %p41 = scmp.eq.s32.totalorder %s15, 0
    %p42 = por %p40, %p41
    %s44 = sadd.s32 %s43, 1
    %p47 = scmp.eq.s32.totalorder %s9, 1
    %p48 = scmp.ne.s32.totalorder %s43, %s45
    %p49 = scmp.eq.s32.totalorder %s9, 0
    %p50 = por %p48, %p49
    %p51 = scmp.ne.s32.totalorder %s43, %s45
    %p52 = scmp.eq.s32.totalorder %s14, 1
    %p53 = por %p51, %p52
    %p54 = scmp.ne.s32.totalorder %s45, %s46
    %p55 = scmp.eq.s32.totalorder %s14, 0
    %p56 = por %p54, %p55
    %p57 = scmp.ne.s32.totalorder %s45, %s46
    %p58 = scmp.eq.s32.totalorder %s15, 1
    %p59 = por %p57, %p58
    %p61 = scmp.ne.s32.totalorder %s46, %s60
    %p62 = scmp.eq.s32.totalorder %s15, 0
    %p63 = por %p61, %p62
    %s65 = sadd.s32 %s64, 1
    %p68 = scmp.eq.s32.totalorder %s9, 1
    %p69 = scmp.ne.s32.totalorder %s64, %s66
    %p70 = scmp.eq.s32.totalorder %s9, 0
    %p71 = por %p69, %p70
    %p72 = scmp.ne.s32.totalorder %s64, %s66
    %p73 = scmp.eq.s32.totalorder %s14, 1
    %p74 = por %p72, %p73
    %p75 = scmp.ne.s32.totalorder %s66, %s67
    %p76 = scmp.eq.s32.totalorder %s14, 0
    %p77 = por %p75, %p76
    %p78 = scmp.ne.s32.totalorder %s66, %s67
    %p79 = scmp.eq.s32.totalorder %s15, 1
    %p80 = por %p78, %p79
    %p82 = scmp.ne.s32.totalorder %s67, %s81
    %p83 = scmp.eq.s32.totalorder %s15, 0
    %p84 = por %p82, %p83
    %s85 = ssub.s32 %s9, %s16
    %p86 = scmp.eq.s32.totalorder %s85, 0
    %s88 = sadd.s32 %s87, 1
    %s89 = scalar_select %p86, %s87, %s88
    %p92 = pneg %p86
    %p93 = scmp.eq.s32.totalorder %s9, 1
    %p94 = por %p92, %p93
    %p95 = scmp.ne.s32.totalorder %s87, %s90
    %p96 = scmp.eq.s32.totalorder %s9, 0
    %p97 = por %p95, %p96
    %p98 = scmp.ne.s32.totalorder %s87, %s90
    %p99 = scmp.eq.s32.totalorder %s14, 1
    %p100 = por %p98, %p99
    %p101 = scmp.ne.s32.totalorder %s90, %s91
    %p102 = scmp.eq.s32.totalorder %s14, 0
    %p103 = por %p101, %p102
    %p104 = scmp.ne.s32.totalorder %s90, %s91
    %p105 = scmp.eq.s32.totalorder %s15, 1
    %p106 = por %p104, %p105
    %p108 = scmp.ne.s32.totalorder %s91, %s107
    %p109 = scmp.eq.s32.totalorder %s15, 0
    %p110 = por %p108, %p109
    %p111 = scmp.le.s32.totalorder 1, %s9
    %p112 = scmp.lt.s32.totalorder %s9, 3
    %p113 = pnand %p111, %p112
    %p114 = pneg %p113
    // Predicated region
    $region9: #{gemma_forward.7} parent=5 // pred_check
      _
    $region10: #{gemma_forward.7} parent=5 // pred_check_branch
      %116 = sbr.rel (%p113) target = $region12
    $region11: #{gemma_forward.7} parent=5 // pred_region
      %s117 = ssub.s32 %s9, 1
      // Predicated region
      $region13: #{gemma_forward.7} parent=11 // pred_check
        %p118 = pneg %p56
      $region14: #{gemma_forward.7} parent=11 // pred_check_branch
        %120 = sbr.rel (%p118) target = $region16
      $region15: #{gemma_forward.7} parent=11 // pred_region
        _
      $region16: #{gemma_forward.7} parent=11 // pred_fallthru
        _
      // Predicated region
      $region17: #{gemma_forward.7} parent=11 // pred_check
        %p121 = pneg %p77
      $region18: #{gemma_forward.7} parent=11 // pred_check_branch
        %123 = sbr.rel (%p121) target = $region20
      $region19: #{gemma_forward.7} parent=11 // pred_region
        _
      $region20: #{gemma_forward.7} parent=11 // pred_fallthru
        _
    $region12: #{gemma_forward.7} parent=5 // pred_fallthru
      _
    %p124 = scmp.lt.s32.totalorder %s9, 2
    // Predicated region
    $region21: #{gemma_forward.7} parent=5 // pred_check
      %p125 = pneg %p124
    $region22: #{gemma_forward.7} parent=5 // pred_check_branch
      %127 = sbr.rel (%p125) target = $region24
    $region23: #{gemma_forward.7} parent=5 // pred_region
      // Predicated region
      $region25: #{gemma_forward.7} parent=23 // pred_check
        %p128 = pneg %p29
      $region26: #{gemma_forward.7} parent=23 // pred_check_branch
        %130 = sbr.rel (%p128) target = $region28
      $region27: #{gemma_forward.7} parent=23 // pred_region
        %s131 = smul.u32 2, %s9
        %p132 = scmp.lt.s32.totalorder %s131, 3
        %s133 = scalar_select %p132, %s131, 3
        %s134 = smul.addr %s133, 4
        %s135 = scalar_lea.vmem %s0, %s134
        %s136 = smul.u32 2, %s9
      $region28: #{gemma_forward.7} parent=23 // pred_fallthru
        _
    $region24: #{gemma_forward.7} parent=5 // pred_fallthru
      _
    %p137 = scmp.le.s32.totalorder 1, %s9
    %p138 = scmp.lt.s32.totalorder %s9, 3
    %p139 = pnand %p137, %p138
    %p140 = pneg %p139
    // Predicated region
    $region29: #{gemma_forward.7} parent=5 // pred_check
      _
    $region30: #{gemma_forward.7} parent=5 // pred_check_branch
      %142 = sbr.rel (%p139) target = $region32
    $region31: #{gemma_forward.7} parent=5 // pred_region
      %s143 = ssub.s32 %s9, 1
      %s144 = smul.u32 2, %s14
      %p145 = scmp.lt.s32.totalorder %s144, 3
      %s146 = scalar_select %p145, %s144, 3
      %s147 = smul.addr %s146, 4
      %s148 = scalar_lea.vmem %s0, %s147
      %p149 = pneg %p35
      %p150 = pneg %p32
      %p151 = pneg %p56
      %p152 = pneg %p53
      %p153 = pneg %p77
      %p154 = pneg %p74
      %p155 = pneg %p103
      %p156 = pneg %p100
      %s157 = smul.u32 2, %s14
      %p158 = scmp.lt.s32.totalorder %s157, 3
      %s159 = scalar_select %p158, %s157, 3
      %s160 = smul.addr %s159, 2
      %s161 = smul.addr %s160, 8
      %s162 = scalar_lea.vmem %s3, %s161
      %s163 = smul.u32 2, %s14
      %p164 = scmp.lt.s32.totalorder %s163, 3
      %s165 = scalar_select %p164, %s163, 3
      %s166 = smul.addr %s165, 4
      %s167 = scalar_lea.vmem %s0, %s166
      %s168 = smul.u32 2, %s14
      %s169 = smul.u32 2, %s14
      %p170 = scmp.lt.s32.totalorder %s169, 3
      %s171 = scalar_select %p170, %s169, 3
      %s172 = smul.addr %s171, 2
      %s173 = smul.addr %s172, 8
      %s174 = scalar_lea.vmem %s3, %s173
      %s175 = smul.u32 2, %s14
      %v177 = vld [vmem:[%s167] sm:$0xf]
      %v178 = vld [vmem:[%s167 + $0x4] sm:$0xf]
      %v179 = vunpack.c.l.bf16 %v177
      %v180 = vunpack.c.l.bf16 %v178
      %v181 = vmul.f32 %v179, %v179
      %v182 = vmul.f32 %v180, %v180
      %183 = vadd.xlane.f32.xlu0 %v181
      %v184 = vpop.xlane.xlu0 %183
      %185 = vadd.xlane.f32.xlu0 %v182
      %v186 = vpop.xlane.xlu0 %185
      %v187 = vrcp.pop 128.0
      %v188 = vmul.f32 %v184, %v187
      %v189 = vmul.f32 %v186, %v187
      %v190 = vadd.f32 %v188, 1e-06
      %v191 = vadd.f32 %v189, 1e-06
      %v192 = vrsqrt.pop %v190
      %v193 = vrsqrt.pop %v191
      %v194 = vmul.f32 %v179, %v192
      %v195 = vmul.f32 %v180, %v193
      %v196 = vld [vmem:[%s1] sm:$0x1]
      %v197 = vadd.f32 %v196, 1.0
      %v199 = vlaneseq
      %v200 = vshrl.u32 %v199, 7
      %v201 = vsub.s32 0, %v200
      %v202 = vrot.slane %v197, %v201
      %v204 = vmul.f32 %v194, %v202
      %v205 = vmul.f32 %v195, %v202
      %v206 = vpack.c.bf16 %v205, %v204
      %v207 = vld [vmem:[%s2] sm:$0xff]
      %v208 = vld [vmem:[%s2 + $0x8] sm:$0xff]
      %v209 = vld [vmem:[%s2 + $0x10] sm:$0xff]
      %v210 = vld [vmem:[%s2 + $0x18] sm:$0xff]
      %v211 = vld [vmem:[%s2 + $0x20] sm:$0xff]
      %v212 = vld [vmem:[%s2 + $0x28] sm:$0xff]
      %v213 = vld [vmem:[%s2 + $0x30] sm:$0xff]
      %v214 = vld [vmem:[%s2 + $0x38] sm:$0xff]
      %v215 = vld [vmem:[%s2 + $0x40] sm:$0xff]
      %v216 = vld [vmem:[%s2 + $0x48] sm:$0xff]
      %v217 = vld [vmem:[%s2 + $0x50] sm:$0xff]
      %v218 = vld [vmem:[%s2 + $0x58] sm:$0xff]
      %v219 = vld [vmem:[%s2 + $0x60] sm:$0xff]
      %v220 = vld [vmem:[%s2 + $0x68] sm:$0xff]
      %v221 = vld [vmem:[%s2 + $0x70] sm:$0xff]
      %v222 = vld [vmem:[%s2 + $0x78] sm:$0xff]
      %v239 = vunpack.c.l.b16 %v207
      %v240 = vunpack.c.h.b16 %v207
      %v241 = vunpack.c.l.b16 %v208
      %v242 = vunpack.c.h.b16 %v208
      %v243 = vunpack.c.l.b16 %v209
      %v244 = vunpack.c.h.b16 %v209
      %v245 = vunpack.c.l.b16 %v210
      %v246 = vunpack.c.h.b16 %v210
      %v247 = vunpack.c.l.b16 %v211
      %v248 = vunpack.c.h.b16 %v211
      %v249 = vunpack.c.l.b16 %v212
      %v250 = vunpack.c.h.b16 %v212
      %v251 = vunpack.c.l.b16 %v213
      %v252 = vunpack.c.h.b16 %v213
      %v253 = vunpack.c.l.b16 %v214
      %v254 = vunpack.c.h.b16 %v214
      %v255 = vunpack.c.l.b16 %v215
      %v256 = vunpack.c.h.b16 %v215
      %v257 = vunpack.c.l.b16 %v216
      %v258 = vunpack.c.h.b16 %v216
      %v259 = vunpack.c.l.b16 %v217
      %v260 = vunpack.c.h.b16 %v217
      %v261 = vunpack.c.l.b16 %v218
      %v262 = vunpack.c.h.b16 %v218
      %v263 = vunpack.c.l.b16 %v219
      %v264 = vunpack.c.h.b16 %v219
      %v265 = vunpack.c.l.b16 %v220
      %v266 = vunpack.c.h.b16 %v220
      %v267 = vunpack.c.l.b16 %v221
      %v268 = vunpack.c.h.b16 %v221
      %v269 = vunpack.c.l.b16 %v222
      %v270 = vunpack.c.h.b16 %v222
      %v271 = vpack.c.b16 %v241, %v239
      %v272 = vpack.c.b16 %v242, %v240
      %v273 = vpack.c.b16 %v245, %v243
      %v274 = vpack.c.b16 %v246, %v244
      %v275 = vpack.c.b16 %v249, %v247
      %v276 = vpack.c.b16 %v250, %v248
      %v277 = vpack.c.b16 %v253, %v251
      %v278 = vpack.c.b16 %v254, %v252
      %v279 = vpack.c.b16 %v257, %v255
      %v280 = vpack.c.b16 %v258, %v256
      %v281 = vpack.c.b16 %v261, %v259
      %v282 = vpack.c.b16 %v262, %v260
      %v283 = vpack.c.b16 %v265, %v263
      %v284 = vpack.c.b16 %v266, %v264
      %v285 = vpack.c.b16 %v269, %v267
      %v286 = vpack.c.b16 %v270, %v268
      %303 = vmatprep.subr.bf16.mxu0 %v272
      %304 = vmatpush1.bf16.msra.mxu0 %v271
      %305 = vmatprep.subr.bf16.mxu0 %v274
      %306 = vmatpush1.bf16.msra.mxu0 %v273
      %307 = vmatprep.subr.bf16.mxu0 %v276
      %308 = vmatpush1.bf16.msra.mxu0 %v275
      %309 = vmatprep.subr.bf16.mxu0 %v278
      %310 = vmatpush1.bf16.msra.mxu0 %v277
      %311 = vmatprep.subr.bf16.mxu0 %v280
      %312 = vmatpush1.bf16.msra.mxu0 %v279
      %313 = vmatprep.subr.bf16.mxu0 %v282
      %314 = vmatpush1.bf16.msra.mxu0 %v281
      %315 = vmatprep.subr.bf16.mxu0 %v284
      %316 = vmatpush1.bf16.msra.mxu0 %v283
      %317 = vmatprep.subr.bf16.mxu0 %v286
      %318 = vmatpush1.bf16.msra.mxu0 %v285
      %319 = vmatprep.subr.bf16.mxu0 0
      %320 = vmatpush1.bf16.msra.mxu0 0
      %321 = vmatprep.subr.bf16.mxu0 0
      %322 = vmatpush1.bf16.msra.mxu0 0
      %323 = vmatprep.subr.bf16.mxu0 0
      %324 = vmatpush1.bf16.msra.mxu0 0
      %325 = vmatprep.subr.bf16.mxu0 0
      %326 = vmatpush1.bf16.msra.mxu0 0
      %327 = vmatprep.subr.bf16.mxu0 0
      %328 = vmatpush1.bf16.msra.mxu0 0
      %329 = vmatprep.subr.bf16.mxu0 0
      %330 = vmatpush1.bf16.msra.mxu0 0
      %331 = vmatprep.subr.bf16.mxu0 0
      %332 = vmatpush1.bf16.msra.mxu0 0
      %333 = vmatprep.subr.bf16.mxu0 0
      %334 = vmatpush1.bf16.msra.mxu0 0
      %335 = vmatprep.mubr.bf16.mxu0 0
      %336 = vmatmul.mubr.bf16.gmra.mrb[0].mxu0 %v206
      %v337 = vpop.f32.mrb[0].mxu0
      %v338 = vadd.f32 0.0, %v337
      %v339 = vpop.f32.mrb[0].mxu0
      %v340 = vadd.f32 0.0, %v339
      %v341 = vpop.f32.mrb[0].mxu0
      %v342 = vadd.f32 0.0, %v341
      %v343 = vpop.f32.mrb[0].mxu0
      %v344 = vadd.f32 0.0, %v343
      %345 = vdwg.mxu0
      %346 = vst [vmem:[%s174] sm:$0xff] %v338
      %347 = vst [vmem:[%s174 + $0x8] sm:$0xff] %v340
      %348 = vst [vmem:[%s174 + $0x10] sm:$0xff] %v342
      %349 = vst [vmem:[%s174 + $0x18] sm:$0xff] %v344
      %s350 = smul.u32 2, %s14
      %p351 = scmp.lt.s32.totalorder %s350, 3
      %s352 = scalar_select %p351, %s350, 3
      %s353 = smul.addr %s352, 2
      %s354 = smul.addr %s353, 8
      %s355 = scalar_lea.vmem %s3, %s354
      // Predicated region
      $region33: #{gemma_forward.7} parent=31 // pred_check
        %p356 = pneg %p100
      $region34: #{gemma_forward.7} parent=31 // pred_check_branch
        %358 = sbr.rel (%p356) target = $region36
      $region35: #{gemma_forward.7} parent=31 // pred_region
        %s359 = smul.u32 2, %s14
      $region36: #{gemma_forward.7} parent=31 // pred_fallthru
        _
    $region32: #{gemma_forward.7} parent=5 // pred_fallthru
      _
    %p360 = scmp.le.s32.totalorder 2, %s9
    // Predicated region
    $region37: #{gemma_forward.7} parent=5 // pred_check
      %p361 = pneg %p360
    $region38: #{gemma_forward.7} parent=5 // pred_check_branch
      %363 = sbr.rel (%p361) target = $region40
    $region39: #{gemma_forward.7} parent=5 // pred_region
      %s364 = ssub.s32 %s9, 2
      // Predicated region
      $region41: #{gemma_forward.7} parent=39 // pred_check
        %p365 = pneg %p106
      $region42: #{gemma_forward.7} parent=39 // pred_check_branch
        %367 = sbr.rel (%p365) target = $region44
      $region43: #{gemma_forward.7} parent=39 // pred_region
        %s368 = smul.u32 2, %s15
        %p369 = scmp.lt.s32.totalorder %s368, 3
        %s370 = scalar_select %p369, %s368, 3
        %s371 = smul.addr %s370, 2
        %s372 = smul.addr %s371, 8
        %s373 = scalar_lea.vmem %s3, %s372
      $region44: #{gemma_forward.7} parent=39 // pred_fallthru
        _
    $region40: #{gemma_forward.7} parent=5 // pred_fallthru
      _
  $region6: #{gemma_forward.7} parent=0 // loop_footer
    %s13 = sadd.s32 1, %s9
  $region7: #{gemma_forward.7} parent=0 // loop_footer_branch
    %8 = sbr.rel target = $region3
  $region8: #{gemma_forward.7} parent=0 // loop_exit
    _

// kernel: gemma_forward.13
$region0: #{gemma_forward.13}
  #allocation0 [shape = 'u32[]', space=smem, size = 0x4, offset = 0x4, fixed_abs, tag = 'smem constant byte address 0x4 - core index']
  #allocation1 [shape = 'u32[144,128]{1,0:T(1,128)}', space=vmem, size = 0x12000, scoped, tag = 'internal scratch']
  %s0 = inlined_call_operand.vmem [shape: bf16[32,128], index: 0, kind: input, shape index: {}]
  %s1 = inlined_call_operand.vmem [shape: f32[1,128], index: 1, kind: input, shape index: {}]
  %s2 = inlined_call_operand.hbm [shape: f32[32,128], index: 2, kind: output, shape index: {}]
  %s3 = sld [smem:[#allocation0]]
  $region41: #{gemma_forward.13} parent=0
    _
  %s5 = ssub.s32 1, %s3
  %s6 = scalar_select 0, %s5, %s3
  $region1: #{gemma_forward.13} parent=0
    #allocation2 [shape = 'u8[16384]{0}', space=vmem, size = 0x4000, scoped, tag = 'output window, operand 0']
    #allocation3 [shape = 's32[2]{0}', space=sflag, size = 0x8, scoped, tag = 'scoped memory for gemma_forward.13']
    %7 = vsyncpa [#allocation3], 0
    %s8 = scalar_lea.sflag [#allocation3], 1
    %9 = vsyncpa %s8, 0
    loop: start=0, step=1, limit=4
    $region2: #{gemma_forward.13} parent=1 // loop_pre_header
      _
    $region3: #{gemma_forward.13} parent=1 // loop_header
      %s11 = sphi 0, %s15
      %p12 = scmp.ge.s32.totalorder %s11, 4
      %s21 = sphi 0, %s23
      %s24 = sphi 0, %s21
      %s25 = sphi 0, %s24
      %s41 = sphi 0, %s25
      %s45 = sphi 0, %s45
      %s47 = sphi 0, %s45
      %s48 = sphi 0, %s47
      %s62 = sphi 0, %s48
      %s68 = sphi 0, %s70
      %s71 = sphi 0, %s68
      %s72 = sphi 0, %s71
      %s88 = sphi 0, %s72
    $region4: #{gemma_forward.13} parent=1 // loop_header_branch
      %14 = sbr.rel (%p12) target = $region8
    $region5: #{gemma_forward.13} parent=1 // loop_body
      %s16 = ssub.s32 %s11, 1
      %s17 = ssub.s32 %s11, 2
      %s18 = sadd.s32 %s11, 1
      %s19 = ssub.s32 %s11, %s18
      %p20 = scmp.eq.s32.totalorder %s19, 0
      %s22 = sadd.s32 %s21, 1
      %s23 = scalar_select %p20, %s21, %s22
      %p26 = pneg %p20
      %p27 = scmp.eq.s32.totalorder %s11, 1
      %p28 = por %p26, %p27
      %p29 = scmp.ne.s32.totalorder %s21, %s24
      %p30 = scmp.eq.s32.totalorder %s11, 0
      %p31 = por %p29, %p30
      %p32 = scmp.ne.s32.totalorder %s21, %s24
      %p33 = scmp.eq.s32.totalorder %s16, 1
      %p34 = por %p32, %p33
      %p35 = scmp.ne.s32.totalorder %s24, %s25
      %p36 = scmp.eq.s32.totalorder %s16, 0
      %p37 = por %p35, %p36
      %p38 = scmp.ne.s32.totalorder %s24, %s25
      %p39 = scmp.eq.s32.totalorder %s17, 1
      %p40 = por %p38, %p39
      %p42 = scmp.ne.s32.totalorder %s25, %s41
      %p43 = scmp.eq.s32.totalorder %s17, 0
      %p44 = por %p42, %p43
      %s46 = sadd.s32 %s45, 1
      %p49 = scmp.eq.s32.totalorder %s11, 1
      %p50 = scmp.ne.s32.totalorder %s45, %s47
      %p51 = scmp.eq.s32.totalorder %s11, 0
      %p52 = por %p50, %p51
      %p53 = scmp.ne.s32.totalorder %s45, %s47
      %p54 = scmp.eq.s32.totalorder %s16, 1
      %p55 = por %p53, %p54
      %p56 = scmp.ne.s32.totalorder %s47, %s48
      %p57 = scmp.eq.s32.totalorder %s16, 0
      %p58 = por %p56, %p57
      %p59 = scmp.ne.s32.totalorder %s47, %s48
      %p60 = scmp.eq.s32.totalorder %s17, 1
      %p61 = por %p59, %p60
      %p63 = scmp.ne.s32.totalorder %s48, %s62
      %p64 = scmp.eq.s32.totalorder %s17, 0
      %p65 = por %p63, %p64
      %s66 = ssub.s32 %s11, %s18
      %p67 = scmp.eq.s32.totalorder %s66, 0
      %s69 = sadd.s32 %s68, 1
      %s70 = scalar_select %p67, %s68, %s69
      %p73 = pneg %p67
      %p74 = scmp.eq.s32.totalorder %s11, 1
      %p75 = por %p73, %p74
      %p76 = scmp.ne.s32.totalorder %s68, %s71
      %p77 = scmp.eq.s32.totalorder %s11, 0
      %p78 = por %p76, %p77
      %p79 = scmp.ne.s32.totalorder %s68, %s71
      %p80 = scmp.eq.s32.totalorder %s16, 1
      %p81 = por %p79, %p80
      %p82 = scmp.ne.s32.totalorder %s71, %s72
      %p83 = scmp.eq.s32.totalorder %s16, 0
      %p84 = por %p82, %p83
      %p85 = scmp.ne.s32.totalorder %s71, %s72
      %p86 = scmp.eq.s32.totalorder %s17, 1
      %p87 = por %p85, %p86
      %p89 = scmp.ne.s32.totalorder %s72, %s88
      %p90 = scmp.eq.s32.totalorder %s17, 0
      %p91 = por %p89, %p90
      %p92 = scmp.le.s32.totalorder 1, %s11
      %p93 = scmp.lt.s32.totalorder %s11, 3
      %p94 = pnand %p92, %p93
      %p95 = pneg %p94
      // Predicated region
      $region9: #{gemma_forward.13} parent=5 // pred_check
        _
      $region10: #{gemma_forward.13} parent=5 // pred_check_branch
        %97 = sbr.rel (%p94) target = $region12
      $region11: #{gemma_forward.13} parent=5 // pred_region
        %s98 = ssub.s32 %s11, 1
        // Predicated region
        $region13: #{gemma_forward.13} parent=11 // pred_check
          %p99 = pneg %p58
        $region14: #{gemma_forward.13} parent=11 // pred_check_branch
          %101 = sbr.rel (%p99) target = $region16
        $region15: #{gemma_forward.13} parent=11 // pred_region
          _
        $region16: #{gemma_forward.13} parent=11 // pred_fallthru
          _
      $region12: #{gemma_forward.13} parent=5 // pred_fallthru
        _
      %p102 = scmp.lt.s32.totalorder %s11, 2
      // Predicated region
      $region17: #{gemma_forward.13} parent=5 // pred_check
        %p103 = pneg %p102
      $region18: #{gemma_forward.13} parent=5 // pred_check_branch
        %105 = sbr.rel (%p103) target = $region20
      $region19: #{gemma_forward.13} parent=5 // pred_region
        // Predicated region
        $region21: #{gemma_forward.13} parent=19 // pred_check
          %p106 = pneg %p31
        $region22: #{gemma_forward.13} parent=19 // pred_check_branch
          %108 = sbr.rel (%p106) target = $region24
        $region23: #{gemma_forward.13} parent=19 // pred_region
          %s109 = smul.u32 2, %s11
          %p110 = scmp.lt.s32.totalorder %s109, 3
          %s111 = scalar_select %p110, %s109, 3
          %s112 = smul.addr %s111, 4
          %s113 = scalar_lea.vmem %s0, %s112
          %s114 = smul.u32 2, %s11
        $region24: #{gemma_forward.13} parent=19 // pred_fallthru
          _
      $region20: #{gemma_forward.13} parent=5 // pred_fallthru
        _
      %p115 = scmp.le.s32.totalorder 1, %s11
      %p116 = scmp.lt.s32.totalorder %s11, 3
      %p117 = pnand %p115, %p116
      %p118 = pneg %p117
      // Predicated region
      $region25: #{gemma_forward.13} parent=5 // pred_check
        _
      $region26: #{gemma_forward.13} parent=5 // pred_check_branch
        %120 = sbr.rel (%p117) target = $region28
      $region27: #{gemma_forward.13} parent=5 // pred_region
        %s121 = ssub.s32 %s11, 1
        %s122 = smul.u32 2, %s16
        %p123 = scmp.lt.s32.totalorder %s122, 3
        %s124 = scalar_select %p123, %s122, 3
        %s125 = smul.addr %s124, 4
        %s126 = scalar_lea.vmem %s0, %s125
        %p127 = pneg %p37
        %p128 = pneg %p34
        %p129 = pneg %p58
        %p130 = pneg %p55
        %p131 = pneg %p84
        %p132 = pneg %p81
        %s133 = sand.u32 %s71, 1
        %s134 = scalar_lea.sflag [#allocation3], %s133
        %s135 = sand.u32 %s71, 1
        %s136 = smul.addr %s135, 16
        %s137 = scalar_lea.vmem [#allocation2], %s136
        %s138 = smul.u32 2, %s16
        %p139 = scmp.lt.s32.totalorder %s138, 3
        %s140 = scalar_select %p139, %s138, 3
        %s141 = smul.addr %s140, 4
        %s142 = scalar_lea.vmem %s0, %s141
        %s143 = smul.u32 2, %s16
        %s144 = smul.u32 2, %s16
        %v145 = vld [vmem:[%s142] sm:$0xf]
        %v146 = vld [vmem:[%s142 + $0x4] sm:$0xf]
        %v147 = vunpack.c.l.bf16 %v145
        %v148 = vunpack.c.l.bf16 %v146
        %v149 = vmul.f32 %v147, %v147
        %v150 = vmul.f32 %v148, %v148
        %151 = vadd.xlane.f32.xlu0 %v149
        %v152 = vpop.xlane.xlu0 %151
        %153 = vadd.xlane.f32.xlu0 %v150
        %v154 = vpop.xlane.xlu0 %153
        %v155 = vrcp.pop 128.0
        %v156 = vmul.f32 %v152, %v155
        %v157 = vmul.f32 %v154, %v155
        %v158 = vadd.f32 %v156, 1e-06
        %v159 = vadd.f32 %v157, 1e-06
        %v160 = vrsqrt.pop %v158
        %v161 = vrsqrt.pop %v159
        %v162 = vmul.f32 %v147, %v160
        %v163 = vmul.f32 %v148, %v161
        %v164 = vld [vmem:[%s1] sm:$0x1]
        %v165 = vadd.f32 %v164, 1.0
        %v167 = vlaneseq
        %v168 = vshrl.u32 %v167, 7
        %v169 = vsub.s32 0, %v168
        %v170 = vrot.slane %v165, %v169
        %v172 = vmul.f32 %v162, %v170
        %v173 = vmul.f32 %v163, %v170
        %174 = vst [vmem:[%s137] sm:$0xff] %v172
        %175 = vst [vmem:[%s137 + $0x8] sm:$0xff] %v173
        %s176 = sand.u32 %s71, 1
        %s177 = scalar_lea.sflag [#allocation3], %s176
        %s178 = sand.u32 %s71, 1
        %s179 = smul.addr %s178, 16
        %s180 = scalar_lea.vmem [#allocation2], %s179
        // Predicated region
        $region29: #{gemma_forward.13} parent=27 // pred_check
          %p181 = pneg %p81
        $region30: #{gemma_forward.13} parent=27 // pred_check_branch
          %183 = sbr.rel (%p181) target = $region32
        $region31: #{gemma_forward.13} parent=27 // pred_region
          %s184 = smul.u32 2, %s16
          %s186 = ssub.s32 256, 256
          %187 = vsyncadd %s177, %s186
          %s188 = smul.addr %s184, 128
          %s189 = scalar_lea.hbm %s2, %s188
          %s190 = sshll.u32 %s180, 4
          %s191 = int_to_ptr.vmem [resolvable:$true] %s190
          %196 = dma.vmem_to_hbm [thread:$0]  %s191, 256, %s189, %s177, 128, 128, 8
        $region32: #{gemma_forward.13} parent=27 // pred_fallthru
          _
      $region28: #{gemma_forward.13} parent=5 // pred_fallthru
        _
      %p197 = scmp.le.s32.totalorder 2, %s11
      // Predicated region
      $region33: #{gemma_forward.13} parent=5 // pred_check
        %p198 = pneg %p197
      $region34: #{gemma_forward.13} parent=5 // pred_check_branch
        %200 = sbr.rel (%p198) target = $region36
      $region35: #{gemma_forward.13} parent=5 // pred_region
        %s201 = ssub.s32 %s11, 2
        // Predicated region
        $region37: #{gemma_forward.13} parent=35 // pred_check
          %p202 = pneg %p87
        $region38: #{gemma_forward.13} parent=35 // pred_check_branch
          %204 = sbr.rel (%p202) target = $region40
        $region39: #{gemma_forward.13} parent=35 // pred_region
          %s205 = sand.u32 %s72, 1
          %s206 = scalar_lea.sflag [#allocation3], %s205
          %s207 = sand.u32 %s72, 1
          %s208 = smul.addr %s207, 16
          %s209 = scalar_lea.vmem [#allocation2], %s208
          %210 = dma.done %s206, 256
        $region40: #{gemma_forward.13} parent=35 // pred_fallthru
          _
      $region36: #{gemma_forward.13} parent=5 // pred_fallthru
        _
    $region6: #{gemma_forward.13} parent=1 // loop_footer
      %s15 = sadd.s32 1, %s11
    $region7: #{gemma_forward.13} parent=1 // loop_footer_branch
      %10 = sbr.rel target = $region3
    $region8: #{gemma_forward.13} parent=1 // loop_exit
      _
    %211 = vsyncpa [#allocation3], 1
    %s212 = scalar_lea.sflag [#allocation3], 1
    %213 = vsyncpa %s212, 1

// kernel: gemma_forward.8
$region0: #{gemma_forward.8}
  #allocation0 [shape = 'u32[]', space=smem, size = 0x4, offset = 0x4, fixed_abs, tag = 'smem constant byte address 0x4 - core index']
  #allocation1 [shape = 'u32[144,128]{1,0:T(1,128)}', space=vmem, size = 0x12000, scoped, tag = 'internal scratch']
  #allocation2 [shape = 'f32[16,128]{1,0:T(8,128)}', space=vmem, size = 0x2000, scoped, tag = 'scratch operand']
  %s0 = inlined_call_operand.vmem [shape: f32[2,2,2,16,32], index: 0, kind: input, shape index: {}]
  %s1 = inlined_call_operand.vmem [shape: bf16[2,2,16,32], index: 1, kind: input, shape index: {}]
  %s2 = inlined_call_operand.vmem [shape: bf16[2,2,16,32], index: 2, kind: input, shape index: {}]
  %s3 = inlined_call_operand.vmem [shape: f32[16,16], index: 3, kind: input, shape index: {}]
  %s4 = inlined_call_operand.vmem [shape: bf16[128,128], index: 4, kind: input, shape index: {}]
  %s5 = inlined_call_operand.vmem [shape: bf16[2,16,128], index: 5, kind: input, shape index: {}]
  %s6 = inlined_call_operand.vmem [shape: bf16[2,16,128], index: 6, kind: output, shape index: {}]
  %s7 = sld [smem:[#allocation0]]
  $region65: #{gemma_forward.8} parent=0
    _
  %s9 = ssub.s32 1, %s7
  %s10 = scalar_select 0, %s9, %s7
  loop: start=0, step=1, limit=6
  $region2: #{gemma_forward.8} parent=0 // loop_pre_header
    _
  $region3: #{gemma_forward.8} parent=0 // loop_header
    %s12 = sphi 0, %s16
    %p13 = scmp.ge.s32.totalorder %s12, 6
    %s19 = sphi 0, %s31
    %s20 = sphi 0, %s27
    %s21 = sphi 0, %s19
    %s22 = sphi 0, %s20
    %s23 = sphi 0, %s21
    %s24 = sphi 0, %s22
    %s36 = sphi 0, %s38
    %s39 = sphi 0, %s36
    %s40 = sphi 0, %s39
    %s56 = sphi 0, %s40
    %s64 = sphi 0, %s66
    %s67 = sphi 0, %s64
    %s68 = sphi 0, %s67
    %s84 = sphi 0, %s68
    %s92 = sphi 0, %s94
    %s95 = sphi 0, %s92
    %s96 = sphi 0, %s95
    %s112 = sphi 0, %s96
    %s116 = sphi 0, %s116
    %s118 = sphi 0, %s116
    %s119 = sphi 0, %s118
    %s133 = sphi 0, %s119
    %s139 = sphi 0, %s141
    %s142 = sphi 0, %s139
    %s143 = sphi 0, %s142
    %s159 = sphi 0, %s143
    %s165 = sphi 0, %s167
    %s168 = sphi 0, %s165
    %s169 = sphi 0, %s168
    %s185 = sphi 0, %s169
    %s191 = sphi 0, %s193
    %s194 = sphi 0, %s191
    %s195 = sphi 0, %s194
    %s211 = sphi 0, %s195
  $region4: #{gemma_forward.8} parent=0 // loop_header_branch
    %15 = sbr.rel (%p13) target = $region8
  $region5: #{gemma_forward.8} parent=0 // loop_body
    %s17 = ssub.s32 %s12, 1
    %s18 = ssub.s32 %s12, 2
    %s25 = sadd.s32 1, %s20
    %p26 = scmp.ge.s32.totalorder %s25, 2
    %s27 = scalar_select %p26, 0, %s25
    %s28 = sadd.s32 1, %s19
    %s29 = scalar_select %p26, %s28, %s19
    %p30 = scmp.ge.s32.totalorder %s29, 2
    %s31 = scalar_select %p30, 0, %s29
    %s32 = ssub.s32 %s19, %s31
    %s33 = ssub.s32 %s20, %s27
    %s34 = sor.u32 %s32, %s33
    %p35 = scmp.eq.s32.totalorder %s34, 0
    %s37 = sadd.s32 %s36, 1
    %s38 = scalar_select %p35, %s36, %s37
    %p41 = pneg %p35
    %p42 = scmp.eq.s32.totalorder %s12, 3
    %p43 = por %p41, %p42
    %p44 = scmp.ne.s32.totalorder %s36, %s39
    %p45 = scmp.eq.s32.totalorder %s12, 0
    %p46 = por %p44, %p45
    %p47 = scmp.ne.s32.totalorder %s36, %s39
    %p48 = scmp.eq.s32.totalorder %s17, 3
    %p49 = por %p47, %p48
    %p50 = scmp.ne.s32.totalorder %s39, %s40
    %p51 = scmp.eq.s32.totalorder %s17, 0
    %p52 = por %p50, %p51
    %p53 = scmp.ne.s32.totalorder %s39, %s40
    %p54 = scmp.eq.s32.totalorder %s18, 3
    %p55 = por %p53, %p54
    %p57 = scmp.ne.s32.totalorder %s40, %s56
    %p58 = scmp.eq.s32.totalorder %s18, 0
    %p59 = por %p57, %p58
    %s60 = ssub.s32 %s19, %s31
    %s61 = ssub.s32 %s20, %s27
    %s62 = sor.u32 %s60, %s61
    %p63 = scmp.eq.s32.totalorder %s62, 0
    %s65 = sadd.s32 %s64, 1
    %s66 = scalar_select %p63, %s64, %s65
    %p69 = pneg %p63
    %p70 = scmp.eq.s32.totalorder %s12, 3
    %p71 = por %p69, %p70
    %p72 = scmp.ne.s32.totalorder %s64, %s67
    %p73 = scmp.eq.s32.totalorder %s12, 0
    %p74 = por %p72, %p73
    %p75 = scmp.ne.s32.totalorder %s64, %s67
    %p76 = scmp.eq.s32.totalorder %s17, 3
    %p77 = por %p75, %p76
    %p78 = scmp.ne.s32.totalorder %s67, %s68
    %p79 = scmp.eq.s32.totalorder %s17, 0
    %p80 = por %p78, %p79
    %p81 = scmp.ne.s32.totalorder %s67, %s68
    %p82 = scmp.eq.s32.totalorder %s18, 3
    %p83 = por %p81, %p82
    %p85 = scmp.ne.s32.totalorder %s68, %s84
    %p86 = scmp.eq.s32.totalorder %s18, 0
    %p87 = por %p85, %p86
    %s88 = ssub.s32 %s19, %s31
    %s89 = ssub.s32 %s20, %s27
    %s90 = sor.u32 %s88, %s89
    %p91 = scmp.eq.s32.totalorder %s90, 0
    %s93 = sadd.s32 %s92, 1
    %s94 = scalar_select %p91, %s92, %s93
    %p97 = pneg %p91
    %p98 = scmp.eq.s32.totalorder %s12, 3
    %p99 = por %p97, %p98
    %p100 = scmp.ne.s32.totalorder %s92, %s95
    %p101 = scmp.eq.s32.totalorder %s12, 0
    %p102 = por %p100, %p101
    %p103 = scmp.ne.s32.totalorder %s92, %s95
    %p104 = scmp.eq.s32.totalorder %s17, 3
    %p105 = por %p103, %p104
    %p106 = scmp.ne.s32.totalorder %s95, %s96
    %p107 = scmp.eq.s32.totalorder %s17, 0
    %p108 = por %p106, %p107
    %p109 = scmp.ne.s32.totalorder %s95, %s96
    %p110 = scmp.eq.s32.totalorder %s18, 3
    %p111 = por %p109, %p110
    %p113 = scmp.ne.s32.totalorder %s96, %s112
    %p114 = scmp.eq.s32.totalorder %s18, 0
    %p115 = por %p113, %p114
    %s117 = sadd.s32 %s116, 1
    %p120 = scmp.eq.s32.totalorder %s12, 3
    %p121 = scmp.ne.s32.totalorder %s116, %s118
    %p122 = scmp.eq.s32.totalorder %s12, 0
    %p123 = por %p121, %p122
    %p124 = scmp.ne.s32.totalorder %s116, %s118
    %p125 = scmp.eq.s32.totalorder %s17, 3
    %p126 = por %p124, %p125
    %p127 = scmp.ne.s32.totalorder %s118, %s119
    %p128 = scmp.eq.s32.totalorder %s17, 0
    %p129 = por %p127, %p128
    %p130 = scmp.ne.s32.totalorder %s118, %s119
    %p131 = scmp.eq.s32.totalorder %s18, 3
    %p132 = por %p130, %p131
    %p134 = scmp.ne.s32.totalorder %s119, %s133
    %p135 = scmp.eq.s32.totalorder %s18, 0
    %p136 = por %p134, %p135
    %s137 = ssub.s32 %s20, %s27
    %p138 = scmp.eq.s32.totalorder %s137, 0
    %s140 = sadd.s32 %s139, 1
    %s141 = scalar_select %p138, %s139, %s140
    %p144 = pneg %p138
    %p145 = scmp.eq.s32.totalorder %s12, 3
    %p146 = por %p144, %p145
    %p147 = scmp.ne.s32.totalorder %s139, %s142
    %p148 = scmp.eq.s32.totalorder %s12, 0
    %p149 = por %p147, %p148
    %p150 = scmp.ne.s32.totalorder %s139, %s142
    %p151 = scmp.eq.s32.totalorder %s17, 3
    %p152 = por %p150, %p151
    %p153 = scmp.ne.s32.totalorder %s142, %s143
    %p154 = scmp.eq.s32.totalorder %s17, 0
    %p155 = por %p153, %p154
    %p156 = scmp.ne.s32.totalorder %s142, %s143
    %p157 = scmp.eq.s32.totalorder %s18, 3
    %p158 = por %p156, %p157
    %p160 = scmp.ne.s32.totalorder %s143, %s159
    %p161 = scmp.eq.s32.totalorder %s18, 0
    %p162 = por %p160, %p161
    %s163 = ssub.s32 %s19, %s31
    %p164 = scmp.eq.s32.totalorder %s163, 0
    %s166 = sadd.s32 %s165, 1
    %s167 = scalar_select %p164, %s165, %s166
    %p170 = pneg %p164
    %p171 = scmp.eq.s32.totalorder %s12, 3
    %p172 = por %p170, %p171
    %p173 = scmp.ne.s32.totalorder %s165, %s168
    %p174 = scmp.eq.s32.totalorder %s12, 0
    %p175 = por %p173, %p174
    %p176 = scmp.ne.s32.totalorder %s165, %s168
    %p177 = scmp.eq.s32.totalorder %s17, 3
    %p178 = por %p176, %p177
    %p179 = scmp.ne.s32.totalorder %s168, %s169
    %p180 = scmp.eq.s32.totalorder %s17, 0
    %p181 = por %p179, %p180
    %p182 = scmp.ne.s32.totalorder %s168, %s169
    %p183 = scmp.eq.s32.totalorder %s18, 3
    %p184 = por %p182, %p183
    %p186 = scmp.ne.s32.totalorder %s169, %s185
    %p187 = scmp.eq.s32.totalorder %s18, 0
    %p188 = por %p186, %p187
    %s189 = ssub.s32 %s19, %s31
    %p190 = scmp.eq.s32.totalorder %s189, 0
    %s192 = sadd.s32 %s191, 1
    %s193 = scalar_select %p190, %s191, %s192
    %p196 = pneg %p190
    %p197 = scmp.eq.s32.totalorder %s12, 3
    %p198 = por %p196, %p197
    %p199 = scmp.ne.s32.totalorder %s191, %s194
    %p200 = scmp.eq.s32.totalorder %s12, 0
    %p201 = por %p199, %p200
    %p202 = scmp.ne.s32.totalorder %s191, %s194
    %p203 = scmp.eq.s32.totalorder %s17, 3
    %p204 = por %p202, %p203
    %p205 = scmp.ne.s32.totalorder %s194, %s195
    %p206 = scmp.eq.s32.totalorder %s17, 0
    %p207 = por %p205, %p206
    %p208 = scmp.ne.s32.totalorder %s194, %s195
    %p209 = scmp.eq.s32.totalorder %s18, 3
    %p210 = por %p208, %p209
    %p212 = scmp.ne.s32.totalorder %s195, %s211
    %p213 = scmp.eq.s32.totalorder %s18, 0
    %p214 = por %p212, %p213
    %p215 = scmp.le.s32.totalorder 1, %s12
    %p216 = scmp.lt.s32.totalorder %s12, 5
    %p217 = pnand %p215, %p216
    %p218 = pneg %p217
    // Predicated region
    $region9: #{gemma_forward.8} parent=5 // pred_check
      _
    $region10: #{gemma_forward.8} parent=5 // pred_check_branch
      %220 = sbr.rel (%p217) target = $region12
    $region11: #{gemma_forward.8} parent=5 // pred_region
      %s221 = ssub.s32 %s12, 1
      // Predicated region
      $region13: #{gemma_forward.8} parent=11 // pred_check
        %p222 = pneg %p129
      $region14: #{gemma_forward.8} parent=11 // pred_check_branch
        %224 = sbr.rel (%p222) target = $region16
      $region15: #{gemma_forward.8} parent=11 // pred_region
        _
      $region16: #{gemma_forward.8} parent=11 // pred_fallthru
        _
    $region12: #{gemma_forward.8} parent=5 // pred_fallthru
      _
    %p225 = scmp.lt.s32.totalorder %s12, 4
    // Predicated region
    $region17: #{gemma_forward.8} parent=5 // pred_check
      %p226 = pneg %p225
    $region18: #{gemma_forward.8} parent=5 // pred_check_branch
      %228 = sbr.rel (%p226) target = $region20
    $region19: #{gemma_forward.8} parent=5 // pred_region
      // Predicated region
      $region21: #{gemma_forward.8} parent=19 // pred_check
        %p229 = pneg %p46
      $region22: #{gemma_forward.8} parent=19 // pred_check_branch
        %231 = sbr.rel (%p229) target = $region24
      $region23: #{gemma_forward.8} parent=19 // pred_region
        %p232 = scmp.lt.s32.totalorder %s19, 1
        %s233 = scalar_select %p232, %s19, 1
        %p234 = scmp.lt.s32.totalorder %s20, 1
        %s235 = scalar_select %p234, %s20, 1
        %s236 = smul.addr %s235, 4
        %s237 = smul.addr %s233, 8
        %s238 = sadd.s32 %s236, %s237
        %s239 = smul.addr %s238, 8
        %s240 = scalar_lea.vmem %s0, %s239
      $region24: #{gemma_forward.8} parent=19 // pred_fallthru
        _
      // Predicated region
      $region25: #{gemma_forward.8} parent=19 // pred_check
        %p241 = pneg %p74
      $region26: #{gemma_forward.8} parent=19 // pred_check_branch
        %243 = sbr.rel (%p241) target = $region28
      $region27: #{gemma_forward.8} parent=19 // pred_region
        %p244 = scmp.lt.s32.totalorder %s19, 1
        %s245 = scalar_select %p244, %s19, 1
        %p246 = scmp.lt.s32.totalorder %s20, 1
        %s247 = scalar_select %p246, %s20, 1
        %s248 = smul.addr %s247, 2
        %s249 = smul.addr %s245, 4
        %s250 = sadd.s32 %s248, %s249
        %s251 = smul.addr %s250, 4
        %s252 = scalar_lea.vmem %s1, %s251
      $region28: #{gemma_forward.8} parent=19 // pred_fallthru
        _
      // Predicated region
      $region29: #{gemma_forward.8} parent=19 // pred_check
        %p253 = pneg %p102
      $region30: #{gemma_forward.8} parent=19 // pred_check_branch
        %255 = sbr.rel (%p253) target = $region32
      $region31: #{gemma_forward.8} parent=19 // pred_region
        %p256 = scmp.lt.s32.totalorder %s19, 1
        %s257 = scalar_select %p256, %s19, 1
        %p258 = scmp.lt.s32.totalorder %s20, 1
        %s259 = scalar_select %p258, %s20, 1
        %s260 = smul.addr %s259, 2
        %s261 = smul.addr %s257, 4
        %s262 = sadd.s32 %s260, %s261
        %s263 = smul.addr %s262, 4
        %s264 = scalar_lea.vmem %s2, %s263
      $region32: #{gemma_forward.8} parent=19 // pred_fallthru
        _
      // Predicated region
      $region33: #{gemma_forward.8} parent=19 // pred_check
        %p265 = pneg %p149
      $region34: #{gemma_forward.8} parent=19 // pred_check_branch
        %267 = sbr.rel (%p265) target = $region36
      $region35: #{gemma_forward.8} parent=19 // pred_region
        %s268 = smul.u32 8, %s20
        %p269 = scmp.lt.s32.totalorder %s268, 15
        %s270 = scalar_select %p269, %s268, 15
        %s271 = smul.addr %s270, 4
        %s272 = scalar_lea.vmem %s4, %s271
        %s273 = smul.u32 8, %s20
      $region36: #{gemma_forward.8} parent=19 // pred_fallthru
        _
      // Predicated region
      $region37: #{gemma_forward.8} parent=19 // pred_check
        %p274 = pneg %p175
      $region38: #{gemma_forward.8} parent=19 // pred_check_branch
        %276 = sbr.rel (%p274) target = $region40
      $region39: #{gemma_forward.8} parent=19 // pred_region
        %p277 = scmp.lt.s32.totalorder %s19, 1
        %s278 = scalar_select %p277, %s19, 1
        %s279 = smul.addr %s278, 2
        %s280 = smul.addr %s279, 4
        %s281 = scalar_lea.vmem %s5, %s280
      $region40: #{gemma_forward.8} parent=19 // pred_fallthru
        _
    $region20: #{gemma_forward.8} parent=5 // pred_fallthru
      _
    %p282 = scmp.le.s32.totalorder 1, %s12
    %p283 = scmp.lt.s32.totalorder %s12, 5
    %p284 = pnand %p282, %p283
    %p285 = pneg %p284
    // Predicated region
    $region41: #{gemma_forward.8} parent=5 // pred_check
      _
    $region42: #{gemma_forward.8} parent=5 // pred_check_branch
      %287 = sbr.rel (%p284) target = $region44
    $region43: #{gemma_forward.8} parent=5 // pred_region
      %s288 = ssub.s32 %s12, 1
      %p289 = scmp.lt.s32.totalorder %s21, 1
      %s290 = scalar_select %p289, %s21, 1
      %p291 = scmp.lt.s32.totalorder %s22, 1
      %s292 = scalar_select %p291, %s22, 1
      %s293 = smul.addr %s292, 4
      %s294 = smul.addr %s290, 8
      %s295 = sadd.s32 %s293, %s294
      %s296 = smul.addr %s295, 8
      %s297 = scalar_lea.vmem %s0, %s296
      %p298 = pneg %p52
      %p299 = pneg %p49
      %p300 = scmp.lt.s32.totalorder %s21, 1
      %s301 = scalar_select %p300, %s21, 1
      %p302 = scmp.lt.s32.totalorder %s22, 1
      %s303 = scalar_select %p302, %s22, 1
      %s304 = smul.addr %s303, 2
      %s305 = smul.addr %s301, 4
      %s306 = sadd.s32 %s304, %s305
      %s307 = smul.addr %s306, 4
      %s308 = scalar_lea.vmem %s1, %s307
      %p309 = pneg %p80
      %p310 = pneg %p77
      %p311 = scmp.lt.s32.totalorder %s21, 1
      %s312 = scalar_select %p311, %s21, 1
      %p313 = scmp.lt.s32.totalorder %s22, 1
      %s314 = scalar_select %p313, %s22, 1
      %s315 = smul.addr %s314, 2
      %s316 = smul.addr %s312, 4
      %s317 = sadd.s32 %s315, %s316
      %s318 = smul.addr %s317, 4
      %s319 = scalar_lea.vmem %s2, %s318
      %p320 = pneg %p108
      %p321 = pneg %p105
      %p322 = pneg %p129
      %p323 = pneg %p126
      %s324 = smul.u32 8, %s22
      %p325 = scmp.lt.s32.totalorder %s324, 15
      %s326 = scalar_select %p325, %s324, 15
      %s327 = smul.addr %s326, 4
      %s328 = scalar_lea.vmem %s4, %s327
      %p329 = pneg %p155
      %p330 = pneg %p152
      %p331 = scmp.lt.s32.totalorder %s21, 1
      %s332 = scalar_select %p331, %s21, 1
      %s333 = smul.addr %s332, 2
      %s334 = smul.addr %s333, 4
      %s335 = scalar_lea.vmem %s5, %s334
      %p336 = pneg %p181
      %p337 = pneg %p178
      %p338 = pneg %p207
      %p339 = pneg %p204
      %p340 = scmp.lt.s32.totalorder %s21, 1
      %s341 = scalar_select %p340, %s21, 1
      %s342 = smul.addr %s341, 2
      %s343 = smul.addr %s342, 4
      %s344 = scalar_lea.vmem %s6, %s343
      %p345 = scmp.lt.s32.totalorder %s21, 1
      %s346 = scalar_select %p345, %s21, 1
      %p347 = scmp.lt.s32.totalorder %s22, 1
      %s348 = scalar_select %p347, %s22, 1
      %s349 = smul.addr %s348, 4
      %s350 = smul.addr %s346, 8
      %s351 = sadd.s32 %s349, %s350
      %s352 = smul.addr %s351, 8
      %s353 = scalar_lea.vmem %s0, %s352
      %p354 = scmp.lt.s32.totalorder %s21, 1
      %s355 = scalar_select %p354, %s21, 1
      %p356 = scmp.lt.s32.totalorder %s22, 1
      %s357 = scalar_select %p356, %s22, 1
      %s358 = smul.addr %s357, 2
      %s359 = smul.addr %s355, 4
      %s360 = sadd.s32 %s358, %s359
      %s361 = smul.addr %s360, 4
      %s362 = scalar_lea.vmem %s1, %s361
      %p363 = scmp.lt.s32.totalorder %s21, 1
      %s364 = scalar_select %p363, %s21, 1
      %p365 = scmp.lt.s32.totalorder %s22, 1
      %s366 = scalar_select %p365, %s22, 1
      %s367 = smul.addr %s366, 2
      %s368 = smul.addr %s364, 4
      %s369 = sadd.s32 %s367, %s368
      %s370 = smul.addr %s369, 4
      %s371 = scalar_lea.vmem %s2, %s370
      %s372 = smul.u32 8, %s22
      %p373 = scmp.lt.s32.totalorder %s372, 15
      %s374 = scalar_select %p373, %s372, 15
      %s375 = smul.addr %s374, 4
      %s376 = scalar_lea.vmem %s4, %s375
      %s377 = smul.u32 8, %s22
      %p378 = scmp.lt.s32.totalorder %s21, 1
      %s379 = scalar_select %p378, %s21, 1
      %s380 = smul.addr %s379, 2
      %s381 = smul.addr %s380, 4
      %s382 = scalar_lea.vmem %s5, %s381
      %p383 = scmp.lt.s32.totalorder %s21, 1
      %s384 = scalar_select %p383, %s21, 1
      %s385 = smul.addr %s384, 2
      %s386 = smul.addr %s385, 4
      %s387 = scalar_lea.vmem %s6, %s386
      %p389 = scmp.eq.s32.totalorder %s22, 0
      // Predicated region
      $region45: #{gemma_forward.8} parent=43 // pred_check
        %p390 = pneg %p389
      $region46: #{gemma_forward.8} parent=43 // pred_check_branch
        %392 = sbr.rel (%p390) target = $region48
      $region47: #{gemma_forward.8} parent=43 // pred_region
        %393 = vst [vmem:[#allocation2] sm:$0xff] 0.0
        %394 = vst [vmem:[#allocation2 + $0x8] sm:$0xff] 0.0
      $region48: #{gemma_forward.8} parent=43 // pred_fallthru
        _
      %v395 = vld [vmem:[%s362] sm:$0xf]
      %v396 = vld [vmem:[%s362 + $0x4] sm:$0xf]
      %v397 = vld [vmem:[%s371] sm:$0xf]
      %v398 = vld [vmem:[%s371 + $0x4] sm:$0xf]
      %v399 = vld [vmem:[%s3] sm:$0xff]
      %v400 = vld [vmem:[%s3 + $0x8] sm:$0xff]
      %v401 = vld [vmem:[#allocation2] sm:$0xff]
      %v402 = vld [vmem:[#allocation2 + $0x8] sm:$0xff]
      %v403 = vld [vmem:[%s353] sm:$0xff]
      %v404 = vld [vmem:[%s353 + $0x8] sm:$0xff]
      %v405 = vmul.f32 %v403, 0.17677669
      %v406 = vmul.f32 %v404, 0.17677669
      %v407 = vpack.c.bf16 %v406, %v405
      %v410 = vunpack.c.l.b16 %v395
      %v411 = vunpack.c.l.b16 %v396
      %v412 = vpack.c.b16 %v411, %v410
      %vm413 = vcmask 261120
      %v415 = vsel %vm413, %v407, 0
      %v418 = vsel %vm413, %v412, 0
      %420 = vmatprep.subr.bf16.mxu0 0
      %421 = vmatpush1.bf16.xpose.msra.mxu0 %v418
      %422 = vmatprep.subr.bf16.mxu0 0
      %423 = vmatpush1.bf16.xpose.msra.mxu0 0
      %424 = vmatprep.subr.bf16.mxu0 0
      %425 = vmatpush1.bf16.xpose.msra.mxu0 0
      %426 = vmatprep.subr.bf16.mxu0 0
      %427 = vmatpush1.bf16.xpose.msra.mxu0 0
      %428 = vmatprep.subr.bf16.mxu0 0
      %429 = vmatpush1.bf16.xpose.msra.mxu0 0
      %430 = vmatprep.subr.bf16.mxu0 0
      %431 = vmatpush1.bf16.xpose.msra.mxu0 0
      %432 = vmatprep.subr.bf16.mxu0 0
      %433 = vmatpush1.bf16.xpose.msra.mxu0 0
      %434 = vmatprep.subr.bf16.mxu0 0
      %435 = vmatpush1.bf16.xpose.msra.mxu0 0
      %436 = vmatprep.subr.bf16.mxu0 0
      %437 = vmatpush1.bf16.xpose.msra.mxu0 0
      %438 = vmatprep.subr.bf16.mxu0 0
      %439 = vmatpush1.bf16.xpose.msra.mxu0 0
      %440 = vmatprep.subr.bf16.mxu0 0
      %441 = vmatpush1.bf16.xpose.msra.mxu0 0
      %442 = vmatprep.subr.bf16.mxu0 0
      %443 = vmatpush1.bf16.xpose.msra.mxu0 0
      %444 = vmatprep.subr.bf16.mxu0 0
      %445 = vmatpush1.bf16.xpose.msra.mxu0 0
      %446 = vmatprep.subr.bf16.mxu0 0
      %447 = vmatpush1.bf16.xpose.msra.mxu0 0
      %448 = vmatprep.subr.bf16.mxu0 0
      %449 = vmatpush1.bf16.xpose.msra.mxu0 0
      %450 = vmatprep.subr.bf16.mxu0 0
      %451 = vmatpush1.bf16.xpose.msra.mxu0 0
      %452 = vmatprep.mubr.bf16.mxu0 0
      %453 = vmatmul.mubr.bf16.gmra.mrb[0].mxu0 %v415
      %v454 = vpop.f32.mrb[0].mxu0
      %v455 = vadd.f32 %v399, %v454
      %v456 = vpop.f32.mrb[0].mxu0
      %v457 = vpop.f32.mrb[0].mxu0
      %v458 = vadd.f32 %v400, %v457
      %v459 = vpop.f32.mrb[0].mxu0
      %460 = vdwg.mxu0
      %vm461 = vcmask 130048
      %v462 = vsel %vm461, %v455, -inf
      %463 = vmax.xlane.f32.xlu0 %v462
      %v464 = vpop.xlane.xlu0 %463
      %v465 = vsel %vm461, %v458, -inf
      %466 = vmax.xlane.f32.xlu0 %v465
      %v467 = vpop.xlane.xlu0 %466
      %v468 = vsub.f32 %v455, %v464
      %v469 = vsub.f32 %v458, %v467
      %v470 = vmul.f32 %v468, 1.442695
      %v471 = vpow.pop %v470
      %v472 = vmul.f32 %v469, 1.442695
      %v473 = vpow.pop %v472
      %v474 = vsel %vm461, %v471, 0.0
      %475 = vadd.xlane.f32.xlu0 %v474
      %v476 = vpop.xlane.xlu0 %475
      %v477 = vsel %vm461, %v473, 0.0
      %478 = vadd.xlane.f32.xlu0 %v477
      %v479 = vpop.xlane.xlu0 %478
      %v480 = vrcp.pop %v476
      %v481 = vrcp.pop %v479
      %v482 = vmul.f32 %v471, %v480
      %v483 = vmul.f32 %v473, %v481
      %v484 = vpack.c.bf16 %v483, %v482
      %v487 = vunpack.c.l.b16 %v397
      %v488 = vunpack.c.l.b16 %v398
      %v489 = vpack.c.b16 %v488, %v487
      %v492 = vsel %vm461, %v484, 0
      %494 = vmatprep.subr.bf16.mxu0 0
      %495 = vmatpush1.bf16.msra.mxu0 %v489
      %496 = vmatprep.subr.bf16.mxu0 0
      %497 = vmatpush1.bf16.msra.mxu0 0
      %498 = vmatprep.subr.bf16.mxu0 0
      %499 = vmatpush1.bf16.msra.mxu0 0
      %500 = vmatprep.subr.bf16.mxu0 0
      %501 = vmatpush1.bf16.msra.mxu0 0
      %502 = vmatprep.subr.bf16.mxu0 0
      %503 = vmatpush1.bf16.msra.mxu0 0
      %504 = vmatprep.subr.bf16.mxu0 0
      %505 = vmatpush1.bf16.msra.mxu0 0
      %506 = vmatprep.subr.bf16.mxu0 0
      %507 = vmatpush1.bf16.msra.mxu0 0
      %508 = vmatprep.subr.bf16.mxu0 0
      %509 = vmatpush1.bf16.msra.mxu0 0
      %510 = vmatprep.subr.bf16.mxu0 0
      %511 = vmatpush1.bf16.msra.mxu0 0
      %512 = vmatprep.subr.bf16.mxu0 0
      %513 = vmatpush1.bf16.msra.mxu0 0
      %514 = vmatprep.subr.bf16.mxu0 0
      %515 = vmatpush1.bf16.msra.mxu0 0
      %516 = vmatprep.subr.bf16.mxu0 0
      %517 = vmatpush1.bf16.msra.mxu0 0
      %518 = vmatprep.subr.bf16.mxu0 0
      %519 = vmatpush1.bf16.msra.mxu0 0
      %520 = vmatprep.subr.bf16.mxu0 0
      %521 = vmatpush1.bf16.msra.mxu0 0
      %522 = vmatprep.subr.bf16.mxu0 0
      %523 = vmatpush1.bf16.msra.mxu0 0
      %524 = vmatprep.subr.bf16.mxu0 0
      %525 = vmatpush1.bf16.msra.mxu0 0
      %526 = vmatprep.mubr.bf16.mxu0 0
      %527 = vmatmul.mubr.bf16.gmra.mrb[0].mxu0 %v492
      %v528 = vpop.f32.mrb[0].mxu0
      %v529 = vadd.f32 0.0, %v528
      %v530 = vpop.f32.mrb[0].mxu0
      %v531 = vpop.f32.mrb[0].mxu0
      %v532 = vadd.f32 0.0, %v531
      %v533 = vpop.f32.mrb[0].mxu0
      %534 = vdwg.mxu0
      %v535 = vpack.c.bf16 %v532, %v529
      %v536 = vld [vmem:[%s376] sm:$0xf]
      %v537 = vld [vmem:[%s376 + $0x4] sm:$0xf]
      %v538 = vld [vmem:[%s376 + $0x8] sm:$0xf]
      %v539 = vld [vmem:[%s376 + $0xc] sm:$0xf]
      %v544 = vunpack.c.l.b16 %v536
      %v545 = vunpack.c.l.b16 %v537
      %v546 = vunpack.c.l.b16 %v538
      %v547 = vunpack.c.l.b16 %v539
      %v548 = vpack.c.b16 %v545, %v544
      %v549 = vpack.c.b16 %v547, %v546
      %v553 = vsel %vm413, %v535, 0
      %555 = vmatprep.subr.bf16.mxu0 0
      %556 = vmatpush1.bf16.msra.mxu0 %v548
      %557 = vmatprep.subr.bf16.mxu0 0
      %558 = vmatpush1.bf16.msra.mxu0 %v549
      %559 = vmatprep.subr.bf16.mxu0 0
      %560 = vmatpush1.bf16.msra.mxu0 0
      %561 = vmatprep.subr.bf16.mxu0 0
      %562 = vmatpush1.bf16.msra.mxu0 0
      %563 = vmatprep.subr.bf16.mxu0 0
      %564 = vmatpush1.bf16.msra.mxu0 0
      %565 = vmatprep.subr.bf16.mxu0 0
      %566 = vmatpush1.bf16.msra.mxu0 0
      %567 = vmatprep.subr.bf16.mxu0 0
      %568 = vmatpush1.bf16.msra.mxu0 0
      %569 = vmatprep.subr.bf16.mxu0 0
      %570 = vmatpush1.bf16.msra.mxu0 0
      %571 = vmatprep.subr.bf16.mxu0 0
      %572 = vmatpush1.bf16.msra.mxu0 0
      %573 = vmatprep.subr.bf16.mxu0 0
      %574 = vmatpush1.bf16.msra.mxu0 0
      %575 = vmatprep.subr.bf16.mxu0 0
      %576 = vmatpush1.bf16.msra.mxu0 0
      %577 = vmatprep.subr.bf16.mxu0 0
      %578 = vmatpush1.bf16.msra.mxu0 0
      %579 = vmatprep.subr.bf16.mxu0 0
      %580 = vmatpush1.bf16.msra.mxu0 0
      %581 = vmatprep.subr.bf16.mxu0 0
      %582 = vmatpush1.bf16.msra.mxu0 0
      %583 = vmatprep.subr.bf16.mxu0 0
      %584 = vmatpush1.bf16.msra.mxu0 0
      %585 = vmatprep.subr.bf16.mxu0 0
      %586 = vmatpush1.bf16.msra.mxu0 0
      %587 = vmatprep.mubr.bf16.mxu0 0
      %588 = vmatmul.mubr.bf16.gmra.mrb[0].mxu0 %v553
      %v589 = vpop.f32.mrb[0].mxu0
      %v590 = vadd.f32 0.0, %v589
      %v591 = vpop.f32.mrb[0].mxu0
      %v592 = vpop.f32.mrb[0].mxu0
      %v593 = vadd.f32 0.0, %v592
      %v594 = vpop.f32.mrb[0].mxu0
      %595 = vdwg.mxu0
      %v596 = vadd.f32 %v401, %v590
      %v597 = vadd.f32 %v402, %v593
      %s598 = scalar_lea.vmem %s353, 16
      %v599 = vld [vmem:[%s598] sm:$0xff]
      %v600 = vld [vmem:[%s598 + $0x8] sm:$0xff]
      %v601 = vmul.f32 %v599, 0.17677669
      %v602 = vmul.f32 %v600, 0.17677669
      %v603 = vpack.c.bf16 %v602, %v601
      %v605 = vsel %vm413, %v603, 0
      %607 = vmatprep.subr.bf16.mxu0 0
      %608 = vmatpush1.bf16.xpose.msra.mxu0 %v418
      %609 = vmatprep.subr.bf16.mxu0 0
      %610 = vmatpush1.bf16.xpose.msra.mxu0 0
      %611 = vmatprep.subr.bf16.mxu0 0
      %612 = vmatpush1.bf16.xpose.msra.mxu0 0
      %613 = vmatprep.subr.bf16.mxu0 0
      %614 = vmatpush1.bf16.xpose.msra.mxu0 0
      %615 = vmatprep.subr.bf16.mxu0 0
      %616 = vmatpush1.bf16.xpose.msra.mxu0 0
      %617 = vmatprep.subr.bf16.mxu0 0
      %618 = vmatpush1.bf16.xpose.msra.mxu0 0
      %619 = vmatprep.subr.bf16.mxu0 0
      %620 = vmatpush1.bf16.xpose.msra.mxu0 0
      %621 = vmatprep.subr.bf16.mxu0 0
      %622 = vmatpush1.bf16.xpose.msra.mxu0 0
      %623 = vmatprep.subr.bf16.mxu0 0
      %624 = vmatpush1.bf16.xpose.msra.mxu0 0
      %625 = vmatprep.subr.bf16.mxu0 0
      %626 = vmatpush1.bf16.xpose.msra.mxu0 0
      %627 = vmatprep.subr.bf16.mxu0 0
      %628 = vmatpush1.bf16.xpose.msra.mxu0 0
      %629 = vmatprep.subr.bf16.mxu0 0
      %630 = vmatpush1.bf16.xpose.msra.mxu0 0
      %631 = vmatprep.subr.bf16.mxu0 0
      %632 = vmatpush1.bf16.xpose.msra.mxu0 0
      %633 = vmatprep.subr.bf16.mxu0 0
      %634 = vmatpush1.bf16.xpose.msra.mxu0 0
      %635 = vmatprep.subr.bf16.mxu0 0
      %636 = vmatpush1.bf16.xpose.msra.mxu0 0
      %637 = vmatprep.subr.bf16.mxu0 0
      %638 = vmatpush1.bf16.xpose.msra.mxu0 0
      %639 = vmatprep.mubr.bf16.mxu0 0
      %640 = vmatmul.mubr.bf16.gmra.mrb[0].mxu0 %v605
      %v641 = vpop.f32.mrb[0].mxu0
      %v642 = vadd.f32 %v399, %v641
      %v643 = vpop.f32.mrb[0].mxu0
      %v644 = vpop.f32.mrb[0].mxu0
      %v645 = vadd.f32 %v400, %v644
      %v646 = vpop.f32.mrb[0].mxu0
      %647 = vdwg.mxu0
      %v648 = vsel %vm461, %v642, -inf
      %649 = vmax.xlane.f32.xlu0 %v648
      %v650 = vpop.xlane.xlu0 %649
      %v651 = vsel %vm461, %v645, -inf
      %652 = vmax.xlane.f32.xlu0 %v651
      %v653 = vpop.xlane.xlu0 %652
      %v654 = vsub.f32 %v642, %v650
      %v655 = vsub.f32 %v645, %v653
      %v656 = vmul.f32 %v654, 1.442695
      %v657 = vpow.pop %v656
      %v658 = vmul.f32 %v655, 1.442695
      %v659 = vpow.pop %v658
      %v660 = vsel %vm461, %v657, 0.0
      %661 = vadd.xlane.f32.xlu0 %v660
      %v662 = vpop.xlane.xlu0 %661
      %v663 = vsel %vm461, %v659, 0.0
      %664 = vadd.xlane.f32.xlu0 %v663
      %v665 = vpop.xlane.xlu0 %664
      %v666 = vrcp.pop %v662
      %v667 = vrcp.pop %v665
      %v668 = vmul.f32 %v657, %v666
      %v669 = vmul.f32 %v659, %v667
      %v670 = vpack.c.bf16 %v669, %v668
      %v672 = vsel %vm461, %v670, 0
      %674 = vmatprep.subr.bf16.mxu0 0
      %675 = vmatpush1.bf16.msra.mxu0 %v489
      %676 = vmatprep.subr.bf16.mxu0 0
      %677 = vmatpush1.bf16.msra.mxu0 0
      %678 = vmatprep.subr.bf16.mxu0 0
      %679 = vmatpush1.bf16.msra.mxu0 0
      %680 = vmatprep.subr.bf16.mxu0 0
      %681 = vmatpush1.bf16.msra.mxu0 0
      %682 = vmatprep.subr.bf16.mxu0 0
      %683 = vmatpush1.bf16.msra.mxu0 0
      %684 = vmatprep.subr.bf16.mxu0 0
      %685 = vmatpush1.bf16.msra.mxu0 0
      %686 = vmatprep.subr.bf16.mxu0 0
      %687 = vmatpush1.bf16.msra.mxu0 0
      %688 = vmatprep.subr.bf16.mxu0 0
      %689 = vmatpush1.bf16.msra.mxu0 0
      %690 = vmatprep.subr.bf16.mxu0 0
      %691 = vmatpush1.bf16.msra.mxu0 0
      %692 = vmatprep.subr.bf16.mxu0 0
      %693 = vmatpush1.bf16.msra.mxu0 0
      %694 = vmatprep.subr.bf16.mxu0 0
      %695 = vmatpush1.bf16.msra.mxu0 0
      %696 = vmatprep.subr.bf16.mxu0 0
      %697 = vmatpush1.bf16.msra.mxu0 0
      %698 = vmatprep.subr.bf16.mxu0 0
      %699 = vmatpush1.bf16.msra.mxu0 0
      %700 = vmatprep.subr.bf16.mxu0 0
      %701 = vmatpush1.bf16.msra.mxu0 0
      %702 = vmatprep.subr.bf16.mxu0 0
      %703 = vmatpush1.bf16.msra.mxu0 0
      %704 = vmatprep.subr.bf16.mxu0 0
      %705 = vmatpush1.bf16.msra.mxu0 0
      %706 = vmatprep.mubr.bf16.mxu0 0
      %707 = vmatmul.mubr.bf16.gmra.mrb[0].mxu0 %v672
      %v708 = vpop.f32.mrb[0].mxu0
      %v709 = vadd.f32 0.0, %v708
      %v710 = vpop.f32.mrb[0].mxu0
      %v711 = vpop.f32.mrb[0].mxu0
      %v712 = vadd.f32 0.0, %v711
      %v713 = vpop.f32.mrb[0].mxu0
      %714 = vdwg.mxu0
      %v715 = vpack.c.bf16 %v712, %v709
      %v716 = vld [vmem:[%s376 + $0x10] sm:$0xf]
      %v717 = vld [vmem:[%s376 + $0x14] sm:$0xf]
      %v718 = vld [vmem:[%s376 + $0x18] sm:$0xf]
      %v719 = vld [vmem:[%s376 + $0x1c] sm:$0xf]
      %v724 = vunpack.c.l.b16 %v716
      %v725 = vunpack.c.l.b16 %v717
      %v726 = vunpack.c.l.b16 %v718
      %v727 = vunpack.c.l.b16 %v719
      %v728 = vpack.c.b16 %v725, %v724
      %v729 = vpack.c.b16 %v727, %v726
      %v733 = vsel %vm413, %v715, 0
      %735 = vmatprep.subr.bf16.mxu0 0
      %736 = vmatpush1.bf16.msra.mxu0 %v728
      %737 = vmatprep.subr.bf16.mxu0 0
      %738 = vmatpush1.bf16.msra.mxu0 %v729
      %739 = vmatprep.subr.bf16.mxu0 0
      %740 = vmatpush1.bf16.msra.mxu0 0
      %741 = vmatprep.subr.bf16.mxu0 0
      %742 = vmatpush1.bf16.msra.mxu0 0
      %743 = vmatprep.subr.bf16.mxu0 0
      %744 = vmatpush1.bf16.msra.mxu0 0
      %745 = vmatprep.subr.bf16.mxu0 0
      %746 = vmatpush1.bf16.msra.mxu0 0
      %747 = vmatprep.subr.bf16.mxu0 0
      %748 = vmatpush1.bf16.msra.mxu0 0
      %749 = vmatprep.subr.bf16.mxu0 0
      %750 = vmatpush1.bf16.msra.mxu0 0
      %751 = vmatprep.subr.bf16.mxu0 0
      %752 = vmatpush1.bf16.msra.mxu0 0
      %753 = vmatprep.subr.bf16.mxu0 0
      %754 = vmatpush1.bf16.msra.mxu0 0
      %755 = vmatprep.subr.bf16.mxu0 0
      %756 = vmatpush1.bf16.msra.mxu0 0
      %757 = vmatprep.subr.bf16.mxu0 0
      %758 = vmatpush1.bf16.msra.mxu0 0
      %759 = vmatprep.subr.bf16.mxu0 0
      %760 = vmatpush1.bf16.msra.mxu0 0
      %761 = vmatprep.subr.bf16.mxu0 0
      %762 = vmatpush1.bf16.msra.mxu0 0
      %763 = vmatprep.subr.bf16.mxu0 0
      %764 = vmatpush1.bf16.msra.mxu0 0
      %765 = vmatprep.subr.bf16.mxu0 0
      %766 = vmatpush1.bf16.msra.mxu0 0
      %767 = vmatprep.mubr.bf16.mxu0 0
      %768 = vmatmul.mubr.bf16.gmra.mrb[0].mxu0 %v733
      %v769 = vpop.f32.mrb[0].mxu0
      %v770 = vadd.f32 0.0, %v769
      %v771 = vpop.f32.mrb[0].mxu0
      %v772 = vpop.f32.mrb[0].mxu0
      %v773 = vadd.f32 0.0, %v772
      %v774 = vpop.f32.mrb[0].mxu0
      %775 = vdwg.mxu0
      %v776 = vadd.f32 %v596, %v770
      %v777 = vadd.f32 %v597, %v773
      %778 = vst [vmem:[#allocation2] sm:$0xff] %v776
      %779 = vst [vmem:[#allocation2 + $0x8] sm:$0xff] %v777
      %p780 = scmp.eq.s32.totalorder %s22, 1
      // Predicated region
      $region49: #{gemma_forward.8} parent=43 // pred_check
        %p781 = pneg %p780
      $region50: #{gemma_forward.8} parent=43 // pred_check_branch
        %783 = sbr.rel (%p781) target = $region52
      $region51: #{gemma_forward.8} parent=43 // pred_region
        %v784 = vld [vmem:[%s382] sm:$0xf]
        %v785 = vld [vmem:[%s382 + $0x4] sm:$0xf]
        %v786 = vunpack.c.l.bf16 %v784
        %v787 = vunpack.c.l.bf16 %v785
        %v788 = vadd.f32 %v776, %v786
        %v789 = vadd.f32 %v777, %v787
        %v790 = vpack.c.bf16 %v789, %v788
        %v792 = vunpack.c.l.b16 %v790
        %v793 = vunpack.c.h.b16 %v790
        %v794 = vpack.c.b16 %v792, %v792
        %v795 = vpack.c.b16 %v793, %v793
        %798 = vst [vmem:[%s387] sm:$0xf] %v794
        %799 = vst [vmem:[%s387 + $0x4] sm:$0xf] %v795
      $region52: #{gemma_forward.8} parent=43 // pred_fallthru
        _
      %p800 = scmp.lt.s32.totalorder %s21, 1
      %s801 = scalar_select %p800, %s21, 1
      %s802 = smul.addr %s801, 2
      %s803 = smul.addr %s802, 4
      %s804 = scalar_lea.vmem %s6, %s803
      // Predicated region
      $region53: #{gemma_forward.8} parent=43 // pred_check
        %p805 = pneg %p204
      $region54: #{gemma_forward.8} parent=43 // pred_check_branch
        %807 = sbr.rel (%p805) target = $region56
      $region55: #{gemma_forward.8} parent=43 // pred_region
        _
      $region56: #{gemma_forward.8} parent=43 // pred_fallthru
        _
    $region44: #{gemma_forward.8} parent=5 // pred_fallthru
      _
    %p808 = scmp.le.s32.totalorder 2, %s12
    // Predicated region
    $region57: #{gemma_forward.8} parent=5 // pred_check
      %p809 = pneg %p808
    $region58: #{gemma_forward.8} parent=5 // pred_check_branch
      %811 = sbr.rel (%p809) target = $region60
    $region59: #{gemma_forward.8} parent=5 // pred_region
      %s812 = ssub.s32 %s12, 2
      // Predicated region
      $region61: #{gemma_forward.8} parent=59 // pred_check
        %p813 = pneg %p210
      $region62: #{gemma_forward.8} parent=59 // pred_check_branch
        %815 = sbr.rel (%p813) target = $region64
      $region63: #{gemma_forward.8} parent=59 // pred_region
        %p816 = scmp.lt.s32.totalorder %s23, 1
        %s817 = scalar_select %p816, %s23, 1
        %s818 = smul.addr %s817, 2
        %s819 = smul.addr %s818, 4
        %s820 = scalar_lea.vmem %s6, %s819
      $region64: #{gemma_forward.8} parent=59 // pred_fallthru
        _
    $region60: #{gemma_forward.8} parent=5 // pred_fallthru
      _
  $region6: #{gemma_forward.8} parent=0 // loop_footer
    %s16 = sadd.s32 1, %s12
  $region7: #{gemma_forward.8} parent=0 // loop_footer_branch
    %11 = sbr.rel target = $region3
  $region8: #{gemma_forward.8} parent=0 // loop_exit
    _

// kernel: gemma_forward.9
$region0: #{gemma_forward.9}
  #allocation0 [shape = 'u32[]', space=smem, size = 0x4, offset = 0x4, fixed_abs, tag = 'smem constant byte address 0x4 - core index']
  #allocation1 [shape = 'u32[144,128]{1,0:T(1,128)}', space=vmem, size = 0x12000, scoped, tag = 'internal scratch']
  #allocation2 [shape = 'f32[16,128]{1,0:T(8,128)}', space=vmem, size = 0x2000, scoped, tag = 'scratch operand']
  %s0 = inlined_call_operand.vmem [shape: bf16[32,128], index: 0, kind: input, shape index: {}]
  %s1 = inlined_call_operand.vmem [shape: f32[1,128], index: 1, kind: input, shape index: {}]
  %s2 = inlined_call_operand.vmem [shape: bf16[128,256], index: 2, kind: input, shape index: {}]
  %s3 = inlined_call_operand.vmem [shape: bf16[128,256], index: 3, kind: input, shape index: {}]
  %s4 = inlined_call_operand.vmem [shape: bf16[256,128], index: 4, kind: input, shape index: {}]
  %s5 = inlined_call_operand.vmem [shape: bf16[32,128], index: 5, kind: output, shape index: {}]
  %s6 = sld [smem:[#allocation0]]
  $region143: #{gemma_forward.9} parent=0
    _
  %s8 = ssub.s32 1, %s6
  %s9 = scalar_select 0, %s8, %s6
  $region1: #{gemma_forward.9} parent=0
    #allocation3 [shape = 'u8[65536]{0}', space=vmem, size = 0x10000, scoped, tag = 'input window, operand 2']
    #allocation4 [shape = 'u8[65536]{0}', space=vmem, size = 0x10000, scoped, tag = 'input window, operand 3']
    loop: start=0, step=1, limit=6
    $region2: #{gemma_forward.9} parent=1 // loop_pre_header
      _
    $region3: #{gemma_forward.9} parent=1 // loop_header
      %s11 = sphi 0, %s15
      %p12 = scmp.ge.s32.totalorder %s11, 6
      %s18 = sphi 0, %s30
      %s19 = sphi 0, %s26
      %s20 = sphi 0, %s18
      %s21 = sphi 0, %s19
      %s22 = sphi 0, %s20
      %s23 = sphi 0, %s21
      %s33 = sphi 0, %s35
      %s36 = sphi 0, %s33
      %s37 = sphi 0, %s36
      %s53 = sphi 0, %s37
      %s57 = sphi 0, %s57
      %s59 = sphi 0, %s57
      %s60 = sphi 0, %s59
      %s74 = sphi 0, %s60
      %s80 = sphi 0, %s82
      %s83 = sphi 0, %s80
      %s84 = sphi 0, %s83
      %s100 = sphi 0, %s84
      %s106 = sphi 0, %s108
      %s109 = sphi 0, %s106
      %s110 = sphi 0, %s109
      %s126 = sphi 0, %s110
      %s132 = sphi 0, %s134
      %s135 = sphi 0, %s132
      %s136 = sphi 0, %s135
      %s152 = sphi 0, %s136
      %s158 = sphi 0, %s160
      %s161 = sphi 0, %s158
      %s162 = sphi 0, %s161
      %s178 = sphi 0, %s162
    $region4: #{gemma_forward.9} parent=1 // loop_header_branch
      %14 = sbr.rel (%p12) target = $region8
    $region5: #{gemma_forward.9} parent=1 // loop_body
      %s16 = ssub.s32 %s11, 1
      %s17 = ssub.s32 %s11, 2
      %s24 = sadd.s32 1, %s19
      %p25 = scmp.ge.s32.totalorder %s24, 2
      %s26 = scalar_select %p25, 0, %s24
      %s27 = sadd.s32 1, %s18
      %s28 = scalar_select %p25, %s27, %s18
      %p29 = scmp.ge.s32.totalorder %s28, 2
      %s30 = scalar_select %p29, 0, %s28
      %s31 = ssub.s32 %s18, %s30
      %p32 = scmp.eq.s32.totalorder %s31, 0
      %s34 = sadd.s32 %s33, 1
      %s35 = scalar_select %p32, %s33, %s34
      %p38 = pneg %p32
      %p39 = scmp.eq.s32.totalorder %s11, 3
      %p40 = por %p38, %p39
      %p41 = scmp.ne.s32.totalorder %s33, %s36
      %p42 = scmp.eq.s32.totalorder %s11, 0
      %p43 = por %p41, %p42
      %p44 = scmp.ne.s32.totalorder %s33, %s36
      %p45 = scmp.eq.s32.totalorder %s16, 3
      %p46 = por %p44, %p45
      %p47 = scmp.ne.s32.totalorder %s36, %s37
      %p48 = scmp.eq.s32.totalorder %s16, 0
      %p49 = por %p47, %p48
      %p50 = scmp.ne.s32.totalorder %s36, %s37
      %p51 = scmp.eq.s32.totalorder %s17, 3
      %p52 = por %p50, %p51
      %p54 = scmp.ne.s32.totalorder %s37, %s53
      %p55 = scmp.eq.s32.totalorder %s17, 0
      %p56 = por %p54, %p55
      %s58 = sadd.s32 %s57, 1
      %p61 = scmp.eq.s32.totalorder %s11, 3
      %p62 = scmp.ne.s32.totalorder %s57, %s59
      %p63 = scmp.eq.s32.totalorder %s11, 0
      %p64 = por %p62, %p63
      %p65 = scmp.ne.s32.totalorder %s57, %s59
      %p66 = scmp.eq.s32.totalorder %s16, 3
      %p67 = por %p65, %p66
      %p68 = scmp.ne.s32.totalorder %s59, %s60
      %p69 = scmp.eq.s32.totalorder %s16, 0
      %p70 = por %p68, %p69
      %p71 = scmp.ne.s32.totalorder %s59, %s60
      %p72 = scmp.eq.s32.totalorder %s17, 3
      %p73 = por %p71, %p72
      %p75 = scmp.ne.s32.totalorder %s60, %s74
      %p76 = scmp.eq.s32.totalorder %s17, 0
      %p77 = por %p75, %p76
      %s78 = ssub.s32 %s19, %s26
      %p79 = scmp.eq.s32.totalorder %s78, 0
      %s81 = sadd.s32 %s80, 1
      %s82 = scalar_select %p79, %s80, %s81
      %p85 = pneg %p79
      %p86 = scmp.eq.s32.totalorder %s11, 3
      %p87 = por %p85, %p86
      %p88 = scmp.ne.s32.totalorder %s80, %s83
      %p89 = scmp.eq.s32.totalorder %s11, 0
      %p90 = por %p88, %p89
      %p91 = scmp.ne.s32.totalorder %s80, %s83
      %p92 = scmp.eq.s32.totalorder %s16, 3
      %p93 = por %p91, %p92
      %p94 = scmp.ne.s32.totalorder %s83, %s84
      %p95 = scmp.eq.s32.totalorder %s16, 0
      %p96 = por %p94, %p95
      %p97 = scmp.ne.s32.totalorder %s83, %s84
      %p98 = scmp.eq.s32.totalorder %s17, 3
      %p99 = por %p97, %p98
      %p101 = scmp.ne.s32.totalorder %s84, %s100
      %p102 = scmp.eq.s32.totalorder %s17, 0
      %p103 = por %p101, %p102
      %s104 = ssub.s32 %s19, %s26
      %p105 = scmp.eq.s32.totalorder %s104, 0
      %s107 = sadd.s32 %s106, 1
      %s108 = scalar_select %p105, %s106, %s107
      %p111 = pneg %p105
      %p112 = scmp.eq.s32.totalorder %s11, 3
      %p113 = por %p111, %p112
      %p114 = scmp.ne.s32.totalorder %s106, %s109
      %p115 = scmp.eq.s32.totalorder %s11, 0
      %p116 = por %p114, %p115
      %p117 = scmp.ne.s32.totalorder %s106, %s109
      %p118 = scmp.eq.s32.totalorder %s16, 3
      %p119 = por %p117, %p118
      %p120 = scmp.ne.s32.totalorder %s109, %s110
      %p121 = scmp.eq.s32.totalorder %s16, 0
      %p122 = por %p120, %p121
      %p123 = scmp.ne.s32.totalorder %s109, %s110
      %p124 = scmp.eq.s32.totalorder %s17, 3
      %p125 = por %p123, %p124
      %p127 = scmp.ne.s32.totalorder %s110, %s126
      %p128 = scmp.eq.s32.totalorder %s17, 0
      %p129 = por %p127, %p128
      %s130 = ssub.s32 %s19, %s26
      %p131 = scmp.eq.s32.totalorder %s130, 0
      %s133 = sadd.s32 %s132, 1
      %s134 = scalar_select %p131, %s132, %s133
      %p137 = pneg %p131
      %p138 = scmp.eq.s32.totalorder %s11, 3
      %p139 = por %p137, %p138
      %p140 = scmp.ne.s32.totalorder %s132, %s135
      %p141 = scmp.eq.s32.totalorder %s11, 0
      %p142 = por %p140, %p141
      %p143 = scmp.ne.s32.totalorder %s132, %s135
      %p144 = scmp.eq.s32.totalorder %s16, 3
      %p145 = por %p143, %p144
      %p146 = scmp.ne.s32.totalorder %s135, %s136
      %p147 = scmp.eq.s32.totalorder %s16, 0
      %p148 = por %p146, %p147
      %p149 = scmp.ne.s32.totalorder %s135, %s136
      %p150 = scmp.eq.s32.totalorder %s17, 3
      %p151 = por %p149, %p150
      %p153 = scmp.ne.s32.totalorder %s136, %s152
      %p154 = scmp.eq.s32.totalorder %s17, 0
      %p155 = por %p153, %p154
      %s156 = ssub.s32 %s18, %s30
      %p157 = scmp.eq.s32.totalorder %s156, 0
      %s159 = sadd.s32 %s158, 1
      %s160 = scalar_select %p157, %s158, %s159
      %p163 = pneg %p157
      %p164 = scmp.eq.s32.totalorder %s11, 3
      %p165 = por %p163, %p164
      %p166 = scmp.ne.s32.totalorder %s158, %s161
      %p167 = scmp.eq.s32.totalorder %s11, 0
      %p168 = por %p166, %p167
      %p169 = scmp.ne.s32.totalorder %s158, %s161
      %p170 = scmp.eq.s32.totalorder %s16, 3
      %p171 = por %p169, %p170
      %p172 = scmp.ne.s32.totalorder %s161, %s162
      %p173 = scmp.eq.s32.totalorder %s16, 0
      %p174 = por %p172, %p173
      %p175 = scmp.ne.s32.totalorder %s161, %s162
      %p176 = scmp.eq.s32.totalorder %s17, 3
      %p177 = por %p175, %p176
      %p179 = scmp.ne.s32.totalorder %s162, %s178
      %p180 = scmp.eq.s32.totalorder %s17, 0
      %p181 = por %p179, %p180
      %p182 = scmp.le.s32.totalorder 1, %s11
      %p183 = scmp.lt.s32.totalorder %s11, 5
      %p184 = pnand %p182, %p183
      %p185 = pneg %p184
      // Predicated region
      $region9: #{gemma_forward.9} parent=5 // pred_check
        _
      $region10: #{gemma_forward.9} parent=5 // pred_check_branch
        %187 = sbr.rel (%p184) target = $region12
      $region11: #{gemma_forward.9} parent=5 // pred_region
        %s188 = ssub.s32 %s11, 1
        // Predicated region
        $region13: #{gemma_forward.9} parent=11 // pred_check
          %p189 = pneg %p70
        $region14: #{gemma_forward.9} parent=11 // pred_check_branch
          %191 = sbr.rel (%p189) target = $region16
        $region15: #{gemma_forward.9} parent=11 // pred_region
          _
        $region16: #{gemma_forward.9} parent=11 // pred_fallthru
          _
      $region12: #{gemma_forward.9} parent=5 // pred_fallthru
        _
      %p192 = scmp.lt.s32.totalorder %s11, 4
      // Predicated region
      $region17: #{gemma_forward.9} parent=5 // pred_check
        %p193 = pneg %p192
      $region18: #{gemma_forward.9} parent=5 // pred_check_branch
        %195 = sbr.rel (%p193) target = $region20
      $region19: #{gemma_forward.9} parent=5 // pred_region
        // Predicated region
        $region21: #{gemma_forward.9} parent=19 // pred_check
          %p196 = pneg %p43
        $region22: #{gemma_forward.9} parent=19 // pred_check_branch
          %198 = sbr.rel (%p196) target = $region24
        $region23: #{gemma_forward.9} parent=19 // pred_region
          %s199 = smul.u32 2, %s18
          %p200 = scmp.lt.s32.totalorder %s199, 3
          %s201 = scalar_select %p200, %s199, 3
          %s202 = smul.addr %s201, 4
          %s203 = scalar_lea.vmem %s0, %s202
          %s204 = smul.u32 2, %s18
        $region24: #{gemma_forward.9} parent=19 // pred_fallthru
          _
        // Predicated region
        $region25: #{gemma_forward.9} parent=19 // pred_check
          %p205 = pneg %p90
        $region26: #{gemma_forward.9} parent=19 // pred_check_branch
          %207 = sbr.rel (%p205) target = $region28
        $region27: #{gemma_forward.9} parent=19 // pred_region
          %s208 = sand.u32 %s80, 1
          %s209 = sand.u32 %s80, 1
          %s210 = smul.addr %s209, 64
          %s211 = scalar_lea.vmem [#allocation3], %s210
          %s212 = smul.addr %s19, 4
          %s213 = scalar_lea.vmem %s2, %s212
          // Predicated region
          $region29: #{gemma_forward.9} parent=27 // pred_check
            _
          $region30: #{gemma_forward.9} parent=27 // pred_check_branch
            %215 = sbr.rel (0) target = $region32
          $region31: #{gemma_forward.9} parent=27 // pred_region
            // Predicated region
            $region33: #{gemma_forward.9} parent=31 // pred_check
              _
            $region34: #{gemma_forward.9} parent=31 // pred_check_branch
              %217 = sbr.rel target = $region36
            $region35: #{gemma_forward.9} parent=31 // pred_region
              // Predicated region
              $region48: #{gemma_forward.9} parent=35 // pred_check
                _
              $region49: #{gemma_forward.9} parent=35 // pred_check_branch
                %262 = sbr.rel (0) target = $region51
              $region50: #{gemma_forward.9} parent=35 // pred_region
                loop: start=0, step=1, limit=1
                $region52: #{gemma_forward.9} parent=50 // loop_pre_header
                  _
                $region53: #{gemma_forward.9} parent=50 // loop_header
                  %s264 = sphi 0, %s268
                  %p265 = scmp.ge.s32.totalorder %s264, 1
                  %s269 = sphi %s213, %s213
                  %s270 = sphi %s211, %s211
                $region54: #{gemma_forward.9} parent=50 // loop_header_branch
                  %267 = sbr.rel (%p265) target = $region58
                $region55: #{gemma_forward.9} parent=50 // loop_body
                  _
                $region56: #{gemma_forward.9} parent=50 // loop_footer
                  %s268 = sadd.s32 1, %s264
                $region57: #{gemma_forward.9} parent=50 // loop_footer_branch
                  %263 = sbr.rel target = $region53
                $region58: #{gemma_forward.9} parent=50 // loop_exit
                  _
                loop: start=0, step=1, limit=1
                $region59: #{gemma_forward.9} parent=50 // loop_pre_header
                  _
                $region60: #{gemma_forward.9} parent=50 // loop_header
                  %s273 = sphi 0, %s277
                  %p274 = scmp.ge.s32.totalorder %s273, 1
                  %s278 = sphi %s213, %s213
                  %s279 = sphi %s211, %s211
                $region61: #{gemma_forward.9} parent=50 // loop_header_branch
                  %276 = sbr.rel (%p274) target = $region65
                $region62: #{gemma_forward.9} parent=50 // loop_body
                  %v280 = vld [vmem:[%s278] sm:$0xf]
                  %281 = vst [vmem:[%s279] sm:$0xf] %v280
                  %v282 = vld [vmem:[%s278 + $0x8] sm:$0xf]
                  %283 = vst [vmem:[%s279 + $0x4] sm:$0xf] %v282
                  %v284 = vld [vmem:[%s278 + $0x10] sm:$0xf]
                  %285 = vst [vmem:[%s279 + $0x8] sm:$0xf] %v284
                  %v286 = vld [vmem:[%s278 + $0x18] sm:$0xf]
                  %287 = vst [vmem:[%s279 + $0xc] sm:$0xf] %v286
                  %v288 = vld [vmem:[%s278 + $0x20] sm:$0xf]
                  %289 = vst [vmem:[%s279 + $0x10] sm:$0xf] %v288
                  %v290 = vld [vmem:[%s278 + $0x28] sm:$0xf]
                  %291 = vst [vmem:[%s279 + $0x14] sm:$0xf] %v290
                  %v292 = vld [vmem:[%s278 + $0x30] sm:$0xf]
                  %293 = vst [vmem:[%s279 + $0x18] sm:$0xf] %v292
                  %v294 = vld [vmem:[%s278 + $0x38] sm:$0xf]
                  %295 = vst [vmem:[%s279 + $0x1c] sm:$0xf] %v294
                  %v296 = vld [vmem:[%s278 + $0x40] sm:$0xf]
                  %297 = vst [vmem:[%s279 + $0x20] sm:$0xf] %v296
                  %v298 = vld [vmem:[%s278 + $0x48] sm:$0xf]
                  %299 = vst [vmem:[%s279 + $0x24] sm:$0xf] %v298
                  %v300 = vld [vmem:[%s278 + $0x50] sm:$0xf]
                  %301 = vst [vmem:[%s279 + $0x28] sm:$0xf] %v300
                  %v302 = vld [vmem:[%s278 + $0x58] sm:$0xf]
                  %303 = vst [vmem:[%s279 + $0x2c] sm:$0xf] %v302
                  %v304 = vld [vmem:[%s278 + $0x60] sm:$0xf]
                  %305 = vst [vmem:[%s279 + $0x30] sm:$0xf] %v304
                  %v306 = vld [vmem:[%s278 + $0x68] sm:$0xf]
                  %307 = vst [vmem:[%s279 + $0x34] sm:$0xf] %v306
                  %v308 = vld [vmem:[%s278 + $0x70] sm:$0xf]
                  %309 = vst [vmem:[%s279 + $0x38] sm:$0xf] %v308
                  %v310 = vld [vmem:[%s278 + $0x78] sm:$0xf]
                  %311 = vst [vmem:[%s279 + $0x3c] sm:$0xf] %v310
                $region63: #{gemma_forward.9} parent=50 // loop_footer
                  %s277 = sadd.s32 1, %s273
                $region64: #{gemma_forward.9} parent=50 // loop_footer_branch
                  %272 = sbr.rel target = $region60
                $region65: #{gemma_forward.9} parent=50 // loop_exit
                  _
              $region51: #{gemma_forward.9} parent=35 // pred_fallthru
                _
            $region36: #{gemma_forward.9} parent=31 // pred_fallthru
              _
            // Predicated region
            $region37: #{gemma_forward.9} parent=31 // pred_check
              _
            $region38: #{gemma_forward.9} parent=31 // pred_check_branch
              %219 = sbr.rel (0) target = $region40
            $region39: #{gemma_forward.9} parent=31 // pred_region
              loop: start=0, step=1, limit=1
              $region41: #{gemma_forward.9} parent=39 // loop_pre_header
                _
              $region42: #{gemma_forward.9} parent=39 // loop_header
                %s222 = sphi 0, %s226
                %p223 = scmp.ge.s32.totalorder %s222, 1
                %s227 = sphi %s213, %s213
                %s228 = sphi %s211, %s211
              $region43: #{gemma_forward.9} parent=39 // loop_header_branch
                %225 = sbr.rel (%p223) target = $region47
              $region44: #{gemma_forward.9} parent=39 // loop_body
                %v229 = vld [vmem:[%s227] sm:$0xf]
                %230 = vst [vmem:[%s228] sm:$0xf] %v229
                %v231 = vld [vmem:[%s227 + $0x8] sm:$0xf]
                %232 = vst [vmem:[%s228 + $0x4] sm:$0xf] %v231
                %v233 = vld [vmem:[%s227 + $0x10] sm:$0xf]
                %234 = vst [vmem:[%s228 + $0x8] sm:$0xf] %v233
                %v235 = vld [vmem:[%s227 + $0x18] sm:$0xf]
                %236 = vst [vmem:[%s228 + $0xc] sm:$0xf] %v235
                %v237 = vld [vmem:[%s227 + $0x20] sm:$0xf]
                %238 = vst [vmem:[%s228 + $0x10] sm:$0xf] %v237
                %v239 = vld [vmem:[%s227 + $0x28] sm:$0xf]
                %240 = vst [vmem:[%s228 + $0x14] sm:$0xf] %v239
                %v241 = vld [vmem:[%s227 + $0x30] sm:$0xf]
                %242 = vst [vmem:[%s228 + $0x18] sm:$0xf] %v241
                %v243 = vld [vmem:[%s227 + $0x38] sm:$0xf]
                %244 = vst [vmem:[%s228 + $0x1c] sm:$0xf] %v243
                %v245 = vld [vmem:[%s227 + $0x40] sm:$0xf]
                %246 = vst [vmem:[%s228 + $0x20] sm:$0xf] %v245
                %v247 = vld [vmem:[%s227 + $0x48] sm:$0xf]
                %248 = vst [vmem:[%s228 + $0x24] sm:$0xf] %v247
                %v249 = vld [vmem:[%s227 + $0x50] sm:$0xf]
                %250 = vst [vmem:[%s228 + $0x28] sm:$0xf] %v249
                %v251 = vld [vmem:[%s227 + $0x58] sm:$0xf]
                %252 = vst [vmem:[%s228 + $0x2c] sm:$0xf] %v251
                %v253 = vld [vmem:[%s227 + $0x60] sm:$0xf]
                %254 = vst [vmem:[%s228 + $0x30] sm:$0xf] %v253
                %v255 = vld [vmem:[%s227 + $0x68] sm:$0xf]
                %256 = vst [vmem:[%s228 + $0x34] sm:$0xf] %v255
                %v257 = vld [vmem:[%s227 + $0x70] sm:$0xf]
                %258 = vst [vmem:[%s228 + $0x38] sm:$0xf] %v257
                %v259 = vld [vmem:[%s227 + $0x78] sm:$0xf]
                %260 = vst [vmem:[%s228 + $0x3c] sm:$0xf] %v259
              $region45: #{gemma_forward.9} parent=39 // loop_footer
                %s226 = sadd.s32 1, %s222
              $region46: #{gemma_forward.9} parent=39 // loop_footer_branch
                %221 = sbr.rel target = $region42
              $region47: #{gemma_forward.9} parent=39 // loop_exit
                _
            $region40: #{gemma_forward.9} parent=31 // pred_fallthru
              _
          $region32: #{gemma_forward.9} parent=27 // pred_fallthru
            _
          %312 = vnop
        $region28: #{gemma_forward.9} parent=19 // pred_fallthru
          _
        // Predicated region
        $region66: #{gemma_forward.9} parent=19 // pred_check
          %p313 = pneg %p116
        $region67: #{gemma_forward.9} parent=19 // pred_check_branch
          %315 = sbr.rel (%p313) target = $region69
        $region68: #{gemma_forward.9} parent=19 // pred_region
          %s316 = sand.u32 %s106, 1
          %s317 = sand.u32 %s106, 1
          %s318 = smul.addr %s317, 64
          %s319 = scalar_lea.vmem [#allocation4], %s318
          %s320 = smul.addr %s19, 4
          %s321 = scalar_lea.vmem %s3, %s320
          // Predicated region
          $region70: #{gemma_forward.9} parent=68 // pred_check
            _
          $region71: #{gemma_forward.9} parent=68 // pred_check_branch
            %323 = sbr.rel (0) target = $region73
          $region72: #{gemma_forward.9} parent=68 // pred_region
            // Predicated region
            $region74: #{gemma_forward.9} parent=72 // pred_check
              _
            $region75: #{gemma_forward.9} parent=72 // pred_check_branch
              %325 = sbr.rel target = $region77
            $region76: #{gemma_forward.9} parent=72 // pred_region
              // Predicated region
              $region89: #{gemma_forward.9} parent=76 // pred_check
                _
              $region90: #{gemma_forward.9} parent=76 // pred_check_branch
                %370 = sbr.rel (0) target = $region92
              $region91: #{gemma_forward.9} parent=76 // pred_region
                loop: start=0, step=1, limit=1
                $region93: #{gemma_forward.9} parent=91 // loop_pre_header
                  _
                $region94: #{gemma_forward.9} parent=91 // loop_header
                  %s372 = sphi 0, %s376
                  %p373 = scmp.ge.s32.totalorder %s372, 1
                  %s377 = sphi %s321, %s321
                  %s378 = sphi %s319, %s319
                $region95: #{gemma_forward.9} parent=91 // loop_header_branch
                  %375 = sbr.rel (%p373) target = $region99
                $region96: #{gemma_forward.9} parent=91 // loop_body
                  _
                $region97: #{gemma_forward.9} parent=91 // loop_footer
                  %s376 = sadd.s32 1, %s372
                $region98: #{gemma_forward.9} parent=91 // loop_footer_branch
                  %371 = sbr.rel target = $region94
                $region99: #{gemma_forward.9} parent=91 // loop_exit
                  _
                loop: start=0, step=1, limit=1
                $region100: #{gemma_forward.9} parent=91 // loop_pre_header
                  _
                $region101: #{gemma_forward.9} parent=91 // loop_header
                  %s381 = sphi 0, %s385
                  %p382 = scmp.ge.s32.totalorder %s381, 1
                  %s386 = sphi %s321, %s321
                  %s387 = sphi %s319, %s319
                $region102: #{gemma_forward.9} parent=91 // loop_header_branch
                  %384 = sbr.rel (%p382) target = $region106
                $region103: #{gemma_forward.9} parent=91 // loop_body
                  %v388 = vld [vmem:[%s386] sm:$0xf]
                  %389 = vst [vmem:[%s387] sm:$0xf] %v388
                  %v390 = vld [vmem:[%s386 + $0x8] sm:$0xf]
                  %391 = vst [vmem:[%s387 + $0x4] sm:$0xf] %v390
                  %v392 = vld [vmem:[%s386 + $0x10] sm:$0xf]
                  %393 = vst [vmem:[%s387 + $0x8] sm:$0xf] %v392
                  %v394 = vld [vmem:[%s386 + $0x18] sm:$0xf]
                  %395 = vst [vmem:[%s387 + $0xc] sm:$0xf] %v394
                  %v396 = vld [vmem:[%s386 + $0x20] sm:$0xf]
                  %397 = vst [vmem:[%s387 + $0x10] sm:$0xf] %v396
                  %v398 = vld [vmem:[%s386 + $0x28] sm:$0xf]
                  %399 = vst [vmem:[%s387 + $0x14] sm:$0xf] %v398
                  %v400 = vld [vmem:[%s386 + $0x30] sm:$0xf]
                  %401 = vst [vmem:[%s387 + $0x18] sm:$0xf] %v400
                  %v402 = vld [vmem:[%s386 + $0x38] sm:$0xf]
                  %403 = vst [vmem:[%s387 + $0x1c] sm:$0xf] %v402
                  %v404 = vld [vmem:[%s386 + $0x40] sm:$0xf]
                  %405 = vst [vmem:[%s387 + $0x20] sm:$0xf] %v404
                  %v406 = vld [vmem:[%s386 + $0x48] sm:$0xf]
                  %407 = vst [vmem:[%s387 + $0x24] sm:$0xf] %v406
                  %v408 = vld [vmem:[%s386 + $0x50] sm:$0xf]
                  %409 = vst [vmem:[%s387 + $0x28] sm:$0xf] %v408
                  %v410 = vld [vmem:[%s386 + $0x58] sm:$0xf]
                  %411 = vst [vmem:[%s387 + $0x2c] sm:$0xf] %v410
                  %v412 = vld [vmem:[%s386 + $0x60] sm:$0xf]
                  %413 = vst [vmem:[%s387 + $0x30] sm:$0xf] %v412
                  %v414 = vld [vmem:[%s386 + $0x68] sm:$0xf]
                  %415 = vst [vmem:[%s387 + $0x34] sm:$0xf] %v414
                  %v416 = vld [vmem:[%s386 + $0x70] sm:$0xf]
                  %417 = vst [vmem:[%s387 + $0x38] sm:$0xf] %v416
                  %v418 = vld [vmem:[%s386 + $0x78] sm:$0xf]
                  %419 = vst [vmem:[%s387 + $0x3c] sm:$0xf] %v418
                $region104: #{gemma_forward.9} parent=91 // loop_footer
                  %s385 = sadd.s32 1, %s381
                $region105: #{gemma_forward.9} parent=91 // loop_footer_branch
                  %380 = sbr.rel target = $region101
                $region106: #{gemma_forward.9} parent=91 // loop_exit
                  _
              $region92: #{gemma_forward.9} parent=76 // pred_fallthru
                _
            $region77: #{gemma_forward.9} parent=72 // pred_fallthru
              _
            // Predicated region
            $region78: #{gemma_forward.9} parent=72 // pred_check
              _
            $region79: #{gemma_forward.9} parent=72 // pred_check_branch
              %327 = sbr.rel (0) target = $region81
            $region80: #{gemma_forward.9} parent=72 // pred_region
              loop: start=0, step=1, limit=1
              $region82: #{gemma_forward.9} parent=80 // loop_pre_header
                _
              $region83: #{gemma_forward.9} parent=80 // loop_header
                %s330 = sphi 0, %s334
                %p331 = scmp.ge.s32.totalorder %s330, 1
                %s335 = sphi %s321, %s321
                %s336 = sphi %s319, %s319
              $region84: #{gemma_forward.9} parent=80 // loop_header_branch
                %333 = sbr.rel (%p331) target = $region88
              $region85: #{gemma_forward.9} parent=80 // loop_body
                %v337 = vld [vmem:[%s335] sm:$0xf]
                %338 = vst [vmem:[%s336] sm:$0xf] %v337
                %v339 = vld [vmem:[%s335 + $0x8] sm:$0xf]
                %340 = vst [vmem:[%s336 + $0x4] sm:$0xf] %v339
                %v341 = vld [vmem:[%s335 + $0x10] sm:$0xf]
                %342 = vst [vmem:[%s336 + $0x8] sm:$0xf] %v341
                %v343 = vld [vmem:[%s335 + $0x18] sm:$0xf]
                %344 = vst [vmem:[%s336 + $0xc] sm:$0xf] %v343
                %v345 = vld [vmem:[%s335 + $0x20] sm:$0xf]
                %346 = vst [vmem:[%s336 + $0x10] sm:$0xf] %v345
                %v347 = vld [vmem:[%s335 + $0x28] sm:$0xf]
                %348 = vst [vmem:[%s336 + $0x14] sm:$0xf] %v347
                %v349 = vld [vmem:[%s335 + $0x30] sm:$0xf]
                %350 = vst [vmem:[%s336 + $0x18] sm:$0xf] %v349
                %v351 = vld [vmem:[%s335 + $0x38] sm:$0xf]
                %352 = vst [vmem:[%s336 + $0x1c] sm:$0xf] %v351
                %v353 = vld [vmem:[%s335 + $0x40] sm:$0xf]
                %354 = vst [vmem:[%s336 + $0x20] sm:$0xf] %v353
                %v355 = vld [vmem:[%s335 + $0x48] sm:$0xf]
                %356 = vst [vmem:[%s336 + $0x24] sm:$0xf] %v355
                %v357 = vld [vmem:[%s335 + $0x50] sm:$0xf]
                %358 = vst [vmem:[%s336 + $0x28] sm:$0xf] %v357
                %v359 = vld [vmem:[%s335 + $0x58] sm:$0xf]
                %360 = vst [vmem:[%s336 + $0x2c] sm:$0xf] %v359
                %v361 = vld [vmem:[%s335 + $0x60] sm:$0xf]
                %362 = vst [vmem:[%s336 + $0x30] sm:$0xf] %v361
                %v363 = vld [vmem:[%s335 + $0x68] sm:$0xf]
                %364 = vst [vmem:[%s336 + $0x34] sm:$0xf] %v363
                %v365 = vld [vmem:[%s335 + $0x70] sm:$0xf]
                %366 = vst [vmem:[%s336 + $0x38] sm:$0xf] %v365
                %v367 = vld [vmem:[%s335 + $0x78] sm:$0xf]
                %368 = vst [vmem:[%s336 + $0x3c] sm:$0xf] %v367
              $region86: #{gemma_forward.9} parent=80 // loop_footer
                %s334 = sadd.s32 1, %s330
              $region87: #{gemma_forward.9} parent=80 // loop_footer_branch
                %329 = sbr.rel target = $region83
              $region88: #{gemma_forward.9} parent=80 // loop_exit
                _
            $region81: #{gemma_forward.9} parent=72 // pred_fallthru
              _
          $region73: #{gemma_forward.9} parent=68 // pred_fallthru
            _
          %420 = vnop
        $region69: #{gemma_forward.9} parent=19 // pred_fallthru
          _
        // Predicated region
        $region107: #{gemma_forward.9} parent=19 // pred_check
          %p421 = pneg %p142
        $region108: #{gemma_forward.9} parent=19 // pred_check_branch
          %423 = sbr.rel (%p421) target = $region110
        $region109: #{gemma_forward.9} parent=19 // pred_region
          %s424 = smul.u32 16, %s19
          %p425 = scmp.lt.s32.totalorder %s424, 31
          %s426 = scalar_select %p425, %s424, 31
          %s427 = smul.addr %s426, 4
          %s428 = scalar_lea.vmem %s4, %s427
          %s429 = smul.u32 16, %s19
        $region110: #{gemma_forward.9} parent=19 // pred_fallthru
          _
      $region20: #{gemma_forward.9} parent=5 // pred_fallthru
        _
      %p430 = scmp.le.s32.totalorder 1, %s11
      %p431 = scmp.lt.s32.totalorder %s11, 5
      %p432 = pnand %p430, %p431
      %p433 = pneg %p432
      // Predicated region
      $region111: #{gemma_forward.9} parent=5 // pred_check
        _
      $region112: #{gemma_forward.9} parent=5 // pred_check_branch
        %435 = sbr.rel (%p432) target = $region114
      $region113: #{gemma_forward.9} parent=5 // pred_region
        %s436 = ssub.s32 %s11, 1
        %s437 = sand.u32 %s83, 1
        %s438 = sand.u32 %s83, 1
        %s439 = smul.addr %s438, 64
        %s440 = scalar_lea.vmem [#allocation3], %s439
        // Predicated region
        $region115: #{gemma_forward.9} parent=113 // pred_check
          %p441 = pneg %p96
        $region116: #{gemma_forward.9} parent=113 // pred_check_branch
          %443 = sbr.rel (%p441) target = $region118
        $region117: #{gemma_forward.9} parent=113 // pred_region
          _
        $region118: #{gemma_forward.9} parent=113 // pred_fallthru
          _
        %s444 = sand.u32 %s109, 1
        %s445 = sand.u32 %s109, 1
        %s446 = smul.addr %s445, 64
        %s447 = scalar_lea.vmem [#allocation4], %s446
        // Predicated region
        $region119: #{gemma_forward.9} parent=113 // pred_check
          %p448 = pneg %p122
        $region120: #{gemma_forward.9} parent=113 // pred_check_branch
          %450 = sbr.rel (%p448) target = $region122
        $region121: #{gemma_forward.9} parent=113 // pred_region
          _
        $region122: #{gemma_forward.9} parent=113 // pred_fallthru
          _
        %s451 = smul.u32 2, %s20
        %p452 = scmp.lt.s32.totalorder %s451, 3
        %s453 = scalar_select %p452, %s451, 3
        %s454 = smul.addr %s453, 4
        %s455 = scalar_lea.vmem %s0, %s454
        %p456 = pneg %p49
        %p457 = pneg %p46
        %p458 = pneg %p70
        %p459 = pneg %p67
        %s460 = sand.u32 %s83, 1
        %s461 = sand.u32 %s83, 1
        %s462 = smul.addr %s461, 64
        %s463 = scalar_lea.vmem [#allocation3], %s462
        %p464 = pneg %p96
        %p465 = pneg %p93
        %s466 = sand.u32 %s109, 1
        %s467 = sand.u32 %s109, 1
        %s468 = smul.addr %s467, 64
        %s469 = scalar_lea.vmem [#allocation4], %s468
        %p470 = pneg %p122
        %p471 = pneg %p119
        %s472 = smul.u32 16, %s21
        %p473 = scmp.lt.s32.totalorder %s472, 31
        %s474 = scalar_select %p473, %s472, 31
        %s475 = smul.addr %s474, 4
        %s476 = scalar_lea.vmem %s4, %s475
        %p477 = pneg %p148
        %p478 = pneg %p145
        %p479 = pneg %p174
        %p480 = pneg %p171
        %s481 = smul.u32 2, %s20
        %p482 = scmp.lt.s32.totalorder %s481, 3
        %s483 = scalar_select %p482, %s481, 3
        %s484 = smul.addr %s483, 4
        %s485 = scalar_lea.vmem %s5, %s484
        %s486 = smul.u32 2, %s20
        %p487 = scmp.lt.s32.totalorder %s486, 3
        %s488 = scalar_select %p487, %s486, 3
        %s489 = smul.addr %s488, 4
        %s490 = scalar_lea.vmem %s0, %s489
        %s491 = smul.u32 2, %s20
        %s492 = smul.u32 16, %s21
        %p493 = scmp.lt.s32.totalorder %s492, 31
        %s494 = scalar_select %p493, %s492, 31
        %s495 = smul.addr %s494, 4
        %s496 = scalar_lea.vmem %s4, %s495
        %s497 = smul.u32 16, %s21
        %s498 = smul.u32 2, %s20
        %p499 = scmp.lt.s32.totalorder %s498, 3
        %s500 = scalar_select %p499, %s498, 3
        %s501 = smul.addr %s500, 4
        %s502 = scalar_lea.vmem %s5, %s501
        %s503 = smul.u32 2, %s20
        %p505 = scmp.eq.s32.totalorder %s21, 0
        // Predicated region
        $region123: #{gemma_forward.9} parent=113 // pred_check
          %p506 = pneg %p505
        $region124: #{gemma_forward.9} parent=113 // pred_check_branch
          %508 = sbr.rel (%p506) target = $region126
        $region125: #{gemma_forward.9} parent=113 // pred_region
          %509 = vst [vmem:[#allocation2] sm:$0xff] 0.0
          %510 = vst [vmem:[#allocation2 + $0x8] sm:$0xff] 0.0
        $region126: #{gemma_forward.9} parent=113 // pred_fallthru
          _
        %v511 = vld [vmem:[%s490] sm:$0xf]
        %v512 = vld [vmem:[%s490 + $0x4] sm:$0xf]
        %v513 = vunpack.c.l.bf16 %v511
        %v514 = vunpack.c.l.bf16 %v512
        %v515 = vmul.f32 %v513, %v513
        %v516 = vmul.f32 %v514, %v514
        %517 = vadd.xlane.f32.xlu0 %v515
        %v518 = vpop.xlane.xlu0 %517
        %519 = vadd.xlane.f32.xlu0 %v516
        %v520 = vpop.xlane.xlu0 %519
        %v521 = vrcp.pop 128.0
        %v522 = vmul.f32 %v518, %v521
        %v523 = vmul.f32 %v520, %v521
        %v524 = vadd.f32 %v522, 1e-06
        %v525 = vadd.f32 %v523, 1e-06
        %v526 = vrsqrt.pop %v524
        %v527 = vrsqrt.pop %v525
        %v528 = vmul.f32 %v513, %v526
        %v529 = vmul.f32 %v514, %v527
        %v530 = vld [vmem:[%s1] sm:$0x1]
        %v531 = vadd.f32 %v530, 1.0
        %v533 = vlaneseq
        %v534 = vshrl.u32 %v533, 7
        %v535 = vsub.s32 0, %v534
        %v536 = vrot.slane %v531, %v535
        %v538 = vmul.f32 %v528, %v536
        %v539 = vmul.f32 %v529, %v536
        %v540 = vpack.c.bf16 %v539, %v538
        %v541 = vld [vmem:[%s440] sm:$0xf]
        %v542 = vld [vmem:[%s440 + $0x4] sm:$0xf]
        %v543 = vld [vmem:[%s440 + $0x8] sm:$0xf]
        %v544 = vld [vmem:[%s440 + $0xc] sm:$0xf]
        %v545 = vld [vmem:[%s440 + $0x10] sm:$0xf]
        %v546 = vld [vmem:[%s440 + $0x14] sm:$0xf]
        %v547 = vld [vmem:[%s440 + $0x18] sm:$0xf]
        %v548 = vld [vmem:[%s440 + $0x1c] sm:$0xf]
        %v549 = vld [vmem:[%s440 + $0x20] sm:$0xf]
        %v550 = vld [vmem:[%s440 + $0x24] sm:$0xf]
        %v551 = vld [vmem:[%s440 + $0x28] sm:$0xf]
        %v552 = vld [vmem:[%s440 + $0x2c] sm:$0xf]
        %v553 = vld [vmem:[%s440 + $0x30] sm:$0xf]
        %v554 = vld [vmem:[%s440 + $0x34] sm:$0xf]
        %v555 = vld [vmem:[%s440 + $0x38] sm:$0xf]
        %v556 = vld [vmem:[%s440 + $0x3c] sm:$0xf]
        %v573 = vunpack.c.l.b16 %v541
        %v574 = vunpack.c.l.b16 %v542
        %v575 = vunpack.c.l.b16 %v543
        %v576 = vunpack.c.l.b16 %v544
        %v577 = vunpack.c.l.b16 %v545
        %v578 = vunpack.c.l.b16 %v546
        %v579 = vunpack.c.l.b16 %v547
        %v580 = vunpack.c.l.b16 %v548
        %v581 = vunpack.c.l.b16 %v549
        %v582 = vunpack.c.l.b16 %v550
        %v583 = vunpack.c.l.b16 %v551
        %v584 = vunpack.c.l.b16 %v552
        %v585 = vunpack.c.l.b16 %v553
        %v586 = vunpack.c.l.b16 %v554
        %v587 = vunpack.c.l.b16 %v555
        %v588 = vunpack.c.l.b16 %v556
        %v589 = vpack.c.b16 %v574, %v573
        %v590 = vpack.c.b16 %v576, %v575
        %v591 = vpack.c.b16 %v578, %v577
        %v592 = vpack.c.b16 %v580, %v579
        %v593 = vpack.c.b16 %v582, %v581
        %v594 = vpack.c.b16 %v584, %v583
        %v595 = vpack.c.b16 %v586, %v585
        %v596 = vpack.c.b16 %v588, %v587
        %605 = vmatprep.subr.bf16.mxu0 0
        %606 = vmatpush1.bf16.msra.mxu0 %v589
        %607 = vmatprep.subr.bf16.mxu0 0
        %608 = vmatpush1.bf16.msra.mxu0 %v590
        %609 = vmatprep.subr.bf16.mxu0 0
        %610 = vmatpush1.bf16.msra.mxu0 %v591
        %611 = vmatprep.subr.bf16.mxu0 0
        %612 = vmatpush1.bf16.msra.mxu0 %v592
        %613 = vmatprep.subr.bf16.mxu0 0
        %614 = vmatpush1.bf16.msra.mxu0 %v593
        %615 = vmatprep.subr.bf16.mxu0 0
        %616 = vmatpush1.bf16.msra.mxu0 %v594
        %617 = vmatprep.subr.bf16.mxu0 0
        %618 = vmatpush1.bf16.msra.mxu0 %v595
        %619 = vmatprep.subr.bf16.mxu0 0
        %620 = vmatpush1.bf16.msra.mxu0 %v596
        %621 = vmatprep.subr.bf16.mxu0 0
        %622 = vmatpush1.bf16.msra.mxu0 0
        %623 = vmatprep.subr.bf16.mxu0 0
        %624 = vmatpush1.bf16.msra.mxu0 0
        %625 = vmatprep.subr.bf16.mxu0 0
        %626 = vmatpush1.bf16.msra.mxu0 0
        %627 = vmatprep.subr.bf16.mxu0 0
        %628 = vmatpush1.bf16.msra.mxu0 0
        %629 = vmatprep.subr.bf16.mxu0 0
        %630 = vmatpush1.bf16.msra.mxu0 0
        %631 = vmatprep.subr.bf16.mxu0 0
        %632 = vmatpush1.bf16.msra.mxu0 0
        %633 = vmatprep.subr.bf16.mxu0 0
        %634 = vmatpush1.bf16.msra.mxu0 0
        %635 = vmatprep.subr.bf16.mxu0 0
        %636 = vmatpush1.bf16.msra.mxu0 0
        %637 = vmatprep.mubr.bf16.mxu0 0
        %638 = vmatmul.mubr.bf16.gmra.mrb[0].mxu0 %v540
        %v639 = vpop.f32.mrb[0].mxu0
        %v640 = vadd.f32 0.0, %v639
        %v641 = vpop.f32.mrb[0].mxu0
        %v642 = vpop.f32.mrb[0].mxu0
        %v643 = vadd.f32 0.0, %v642
        %v644 = vpop.f32.mrb[0].mxu0
        %645 = vdwg.mxu0
        %v646 = vld [vmem:[%s447] sm:$0xf]
        %v647 = vld [vmem:[%s447 + $0x4] sm:$0xf]
        %v648 = vld [vmem:[%s447 + $0x8] sm:$0xf]
        %v649 = vld [vmem:[%s447 + $0xc] sm:$0xf]
        %v650 = vld [vmem:[%s447 + $0x10] sm:$0xf]
        %v651 = vld [vmem:[%s447 + $0x14] sm:$0xf]
        %v652 = vld [vmem:[%s447 + $0x18] sm:$0xf]
        %v653 = vld [vmem:[%s447 + $0x1c] sm:$0xf]
        %v654 = vld [vmem:[%s447 + $0x20] sm:$0xf]
        %v655 = vld [vmem:[%s447 + $0x24] sm:$0xf]
        %v656 = vld [vmem:[%s447 + $0x28] sm:$0xf]
        %v657 = vld [vmem:[%s447 + $0x2c] sm:$0xf]
        %v658 = vld [vmem:[%s447 + $0x30] sm:$0xf]
        %v659 = vld [vmem:[%s447 + $0x34] sm:$0xf]
        %v660 = vld [vmem:[%s447 + $0x38] sm:$0xf]
        %v661 = vld [vmem:[%s447 + $0x3c] sm:$0xf]
        %v678 = vunpack.c.l.b16 %v646
        %v679 = vunpack.c.l.b16 %v647
        %v680 = vunpack.c.l.b16 %v648
        %v681 = vunpack.c.l.b16 %v649
        %v682 = vunpack.c.l.b16 %v650
        %v683 = vunpack.c.l.b16 %v651
        %v684 = vunpack.c.l.b16 %v652
        %v685 = vunpack.c.l.b16 %v653
        %v686 = vunpack.c.l.b16 %v654
        %v687 = vunpack.c.l.b16 %v655
        %v688 = vunpack.c.l.b16 %v656
        %v689 = vunpack.c.l.b16 %v657
        %v690 = vunpack.c.l.b16 %v658
        %v691 = vunpack.c.l.b16 %v659
        %v692 = vunpack.c.l.b16 %v660
        %v693 = vunpack.c.l.b16 %v661
        %v694 = vpack.c.b16 %v679, %v678
        %v695 = vpack.c.b16 %v681, %v680
        %v696 = vpack.c.b16 %v683, %v682
        %v697 = vpack.c.b16 %v685, %v684
        %v698 = vpack.c.b16 %v687, %v686
        %v699 = vpack.c.b16 %v689, %v688
        %v700 = vpack.c.b16 %v691, %v690
        %v701 = vpack.c.b16 %v693, %v692
        %710 = vmatprep.subr.bf16.mxu0 0
        %711 = vmatpush1.bf16.msra.mxu0 %v694
        %712 = vmatprep.subr.bf16.mxu0 0
        %713 = vmatpush1.bf16.msra.mxu0 %v695
        %714 = vmatprep.subr.bf16.mxu0 0
        %715 = vmatpush1.bf16.msra.mxu0 %v696
        %716 = vmatprep.subr.bf16.mxu0 0
        %717 = vmatpush1.bf16.msra.mxu0 %v697
        %718 = vmatprep.subr.bf16.mxu0 0
        %719 = vmatpush1.bf16.msra.mxu0 %v698
        %720 = vmatprep.subr.bf16.mxu0 0
        %721 = vmatpush1.bf16.msra.mxu0 %v699
        %722 = vmatprep.subr.bf16.mxu0 0
        %723 = vmatpush1.bf16.msra.mxu0 %v700
        %724 = vmatprep.subr.bf16.mxu0 0
        %725 = vmatpush1.bf16.msra.mxu0 %v701
        %726 = vmatprep.subr.bf16.mxu0 0
        %727 = vmatpush1.bf16.msra.mxu0 0
        %728 = vmatprep.subr.bf16.mxu0 0
        %729 = vmatpush1.bf16.msra.mxu0 0
        %730 = vmatprep.subr.bf16.mxu0 0
        %731 = vmatpush1.bf16.msra.mxu0 0
        %732 = vmatprep.subr.bf16.mxu0 0
        %733 = vmatpush1.bf16.msra.mxu0 0
        %734 = vmatprep.subr.bf16.mxu0 0
        %735 = vmatpush1.bf16.msra.mxu0 0
        %736 = vmatprep.subr.bf16.mxu0 0
        %737 = vmatpush1.bf16.msra.mxu0 0
        %738 = vmatprep.subr.bf16.mxu0 0
        %739 = vmatpush1.bf16.msra.mxu0 0
        %740 = vmatprep.subr.bf16.mxu0 0
        %741 = vmatpush1.bf16.msra.mxu0 0
        %742 = vmatprep.mubr.bf16.mxu0 0
        %743 = vmatmul.mubr.bf16.gmra.mrb[0].mxu0 %v540
        %v744 = vpop.f32.mrb[0].mxu0
        %v745 = vadd.f32 0.0, %v744
        %v746 = vpop.f32.mrb[0].mxu0
        %v747 = vpop.f32.mrb[0].mxu0
        %v748 = vadd.f32 0.0, %v747
        %v749 = vpop.f32.mrb[0].mxu0
        %750 = vdwg.mxu0
        %v751 = vmul.f32 %v640, 0.5
        %v752 = vmul.f32 %v643, 0.5
        %v753 = vmul.f32 %v640, 0.044715
        %v754 = vmul.f32 %v643, 0.044715
        %v755 = vmul.f32 %v753, %v640
        %v756 = vmul.f32 %v754, %v643
        %v757 = vmul.f32 %v755, %v640
        %v758 = vmul.f32 %v756, %v643
        %v759 = vadd.f32 %v640, %v757
        %v760 = vadd.f32 %v643, %v758
        %v761 = vmul.f32 %v759, 0.7978846
        %v762 = vmul.f32 %v760, 0.7978846
        %v763 = vtanh.pop %v761
        %v764 = vtanh.pop %v762
        %v765 = vadd.f32 %v763, 1.0
        %v766 = vadd.f32 %v764, 1.0
        %v767 = vmul.f32 %v751, %v765
        %v768 = vmul.f32 %v752, %v766
        %v769 = vmul.f32 %v767, %v745
        %v770 = vmul.f32 %v768, %v748
        %v771 = vpack.c.bf16 %v770, %v769
        %v772 = vld [vmem:[#allocation2] sm:$0xff]
        %v773 = vld [vmem:[#allocation2 + $0x8] sm:$0xff]
        %v774 = vld [vmem:[%s496] sm:$0xf]
        %v775 = vld [vmem:[%s496 + $0x4] sm:$0xf]
        %v776 = vld [vmem:[%s496 + $0x8] sm:$0xf]
        %v777 = vld [vmem:[%s496 + $0xc] sm:$0xf]
        %v778 = vld [vmem:[%s496 + $0x10] sm:$0xf]
        %v779 = vld [vmem:[%s496 + $0x14] sm:$0xf]
        %v780 = vld [vmem:[%s496 + $0x18] sm:$0xf]
        %v781 = vld [vmem:[%s496 + $0x1c] sm:$0xf]
        %v782 = vld [vmem:[%s496 + $0x20] sm:$0xf]
        %v783 = vld [vmem:[%s496 + $0x24] sm:$0xf]
        %v784 = vld [vmem:[%s496 + $0x28] sm:$0xf]
        %v785 = vld [vmem:[%s496 + $0x2c] sm:$0xf]
        %v786 = vld [vmem:[%s496 + $0x30] sm:$0xf]
        %v787 = vld [vmem:[%s496 + $0x34] sm:$0xf]
        %v788 = vld [vmem:[%s496 + $0x38] sm:$0xf]
        %v789 = vld [vmem:[%s496 + $0x3c] sm:$0xf]
        %v806 = vunpack.c.l.b16 %v774
        %v807 = vunpack.c.l.b16 %v775
        %v808 = vunpack.c.l.b16 %v776
        %v809 = vunpack.c.l.b16 %v777
        %v810 = vunpack.c.l.b16 %v778
        %v811 = vunpack.c.l.b16 %v779
        %v812 = vunpack.c.l.b16 %v780
        %v813 = vunpack.c.l.b16 %v781
        %v814 = vunpack.c.l.b16 %v782
        %v815 = vunpack.c.l.b16 %v783
        %v816 = vunpack.c.l.b16 %v784
        %v817 = vunpack.c.l.b16 %v785
        %v818 = vunpack.c.l.b16 %v786
        %v819 = vunpack.c.l.b16 %v787
        %v820 = vunpack.c.l.b16 %v788
        %v821 = vunpack.c.l.b16 %v789
        %v822 = vpack.c.b16 %v807, %v806
        %v823 = vpack.c.b16 %v809, %v808
        %v824 = vpack.c.b16 %v811, %v810
        %v825 = vpack.c.b16 %v813, %v812
        %v826 = vpack.c.b16 %v815, %v814
        %v827 = vpack.c.b16 %v817, %v816
        %v828 = vpack.c.b16 %v819, %v818
        %v829 = vpack.c.b16 %v821, %v820
        %838 = vmatprep.subr.bf16.mxu0 0
        %839 = vmatpush1.bf16.msra.mxu0 %v822
        %840 = vmatprep.subr.bf16.mxu0 0
        %841 = vmatpush1.bf16.msra.mxu0 %v823
        %842 = vmatprep.subr.bf16.mxu0 0
        %843 = vmatpush1.bf16.msra.mxu0 %v824
        %844 = vmatprep.subr.bf16.mxu0 0
        %845 = vmatpush1.bf16.msra.mxu0 %v825
        %846 = vmatprep.subr.bf16.mxu0 0
        %847 = vmatpush1.bf16.msra.mxu0 %v826
        %848 = vmatprep.subr.bf16.mxu0 0
        %849 = vmatpush1.bf16.msra.mxu0 %v827
        %850 = vmatprep.subr.bf16.mxu0 0
        %851 = vmatpush1.bf16.msra.mxu0 %v828
        %852 = vmatprep.subr.bf16.mxu0 0
        %853 = vmatpush1.bf16.msra.mxu0 %v829
        %854 = vmatprep.subr.bf16.mxu0 0
        %855 = vmatpush1.bf16.msra.mxu0 0
        %856 = vmatprep.subr.bf16.mxu0 0
        %857 = vmatpush1.bf16.msra.mxu0 0
        %858 = vmatprep.subr.bf16.mxu0 0
        %859 = vmatpush1.bf16.msra.mxu0 0
        %860 = vmatprep.subr.bf16.mxu0 0
        %861 = vmatpush1.bf16.msra.mxu0 0
        %862 = vmatprep.subr.bf16.mxu0 0
        %863 = vmatpush1.bf16.msra.mxu0 0
        %864 = vmatprep.subr.bf16.mxu0 0
        %865 = vmatpush1.bf16.msra.mxu0 0
        %866 = vmatprep.subr.bf16.mxu0 0
        %867 = vmatpush1.bf16.msra.mxu0 0
        %868 = vmatprep.subr.bf16.mxu0 0
        %869 = vmatpush1.bf16.msra.mxu0 0
        %870 = vmatprep.mubr.bf16.mxu0 0
        %871 = vmatmul.mubr.bf16.gmra.mrb[0].mxu0 %v771
        %v872 = vpop.f32.mrb[0].mxu0
        %v873 = vadd.f32 0.0, %v872
        %v874 = vpop.f32.mrb[0].mxu0
        %v875 = vpop.f32.mrb[0].mxu0
        %v876 = vadd.f32 0.0, %v875
        %v877 = vpop.f32.mrb[0].mxu0
        %878 = vdwg.mxu0
        %v879 = vadd.f32 %v772, %v873
        %v880 = vadd.f32 %v773, %v876
        %881 = vst [vmem:[#allocation2] sm:$0xff] %v879
        %882 = vst [vmem:[#allocation2 + $0x8] sm:$0xff] %v880
        %p883 = scmp.eq.s32.totalorder %s21, 1
        // Predicated region
        $region127: #{gemma_forward.9} parent=113 // pred_check
          %p884 = pneg %p883
        $region128: #{gemma_forward.9} parent=113 // pred_check_branch
          %886 = sbr.rel (%p884) target = $region130
        $region129: #{gemma_forward.9} parent=113 // pred_region
          %v887 = vld [vmem:[#allocation2] sm:$0xff]
          %v888 = vld [vmem:[#allocation2 + $0x8] sm:$0xff]
          %v889 = vadd.f32 %v887, %v513
          %v890 = vadd.f32 %v888, %v514
          %v891 = vpack.c.bf16 %v890, %v889
          %v893 = vunpack.c.l.b16 %v891
          %v894 = vunpack.c.h.b16 %v891
          %v895 = vpack.c.b16 %v893, %v893
          %v896 = vpack.c.b16 %v894, %v894
          %899 = vst [vmem:[%s502] sm:$0xf] %v895
          %900 = vst [vmem:[%s502 + $0x4] sm:$0xf] %v896
        $region130: #{gemma_forward.9} parent=113 // pred_fallthru
          _
        %s901 = smul.u32 2, %s20
        %p902 = scmp.lt.s32.totalorder %s901, 3
        %s903 = scalar_select %p902, %s901, 3
        %s904 = smul.addr %s903, 4
        %s905 = scalar_lea.vmem %s5, %s904
        // Predicated region
        $region131: #{gemma_forward.9} parent=113 // pred_check
          %p906 = pneg %p171
        $region132: #{gemma_forward.9} parent=113 // pred_check_branch
          %908 = sbr.rel (%p906) target = $region134
        $region133: #{gemma_forward.9} parent=113 // pred_region
          %s909 = smul.u32 2, %s20
        $region134: #{gemma_forward.9} parent=113 // pred_fallthru
          _
      $region114: #{gemma_forward.9} parent=5 // pred_fallthru
        _
      %p910 = scmp.le.s32.totalorder 2, %s11
      // Predicated region
      $region135: #{gemma_forward.9} parent=5 // pred_check
        %p911 = pneg %p910
      $region136: #{gemma_forward.9} parent=5 // pred_check_branch
        %913 = sbr.rel (%p911) target = $region138
      $region137: #{gemma_forward.9} parent=5 // pred_region
        %s914 = ssub.s32 %s11, 2
        // Predicated region
        $region139: #{gemma_forward.9} parent=137 // pred_check
          %p915 = pneg %p177
        $region140: #{gemma_forward.9} parent=137 // pred_check_branch
          %917 = sbr.rel (%p915) target = $region142
        $region141: #{gemma_forward.9} parent=137 // pred_region
          %s918 = smul.u32 2, %s22
          %p919 = scmp.lt.s32.totalorder %s918, 3
          %s920 = scalar_select %p919, %s918, 3
          %s921 = smul.addr %s920, 4
          %s922 = scalar_lea.vmem %s5, %s921
        $region142: #{gemma_forward.9} parent=137 // pred_fallthru
          _
      $region138: #{gemma_forward.9} parent=5 // pred_fallthru
        _
    $region6: #{gemma_forward.9} parent=1 // loop_footer
      %s15 = sadd.s32 1, %s11
    $region7: #{gemma_forward.9} parent=1 // loop_footer_branch
      %10 = sbr.rel target = $region3
    $region8: #{gemma_forward.9} parent=1 // loop_exit
      _

</llo_original>
